<compile_context>
chip_gen: v5e
topology: v5e:2x2
jax: 0.10.0
libtpu: 0.0.40
codegen_flags: <defaults>
</compile_context>

<pallas_src>
import jax
import jax.numpy as jnp
from jax.experimental import pallas as pl
from jax.experimental.pallas import tpu as pltpu


def _make_deconv_kernel(td, h, w):
    hw = h * w

    def kernel(*refs):
        # refs: td+1 depth-row inputs, then v_taps, bias, output.
        x_refs = refs[:td + 1]       # each (1, 1, H+1, W+1, Cin) bf16
        v_ref = refs[td + 1]         # (8, Cin, 8*Cout) bf16 (BN-scaled weight slabs)
        b_ref = refs[td + 2]         # (1, 8*Cout) f32 (BN bias tiled over parities)
        o_ref = refs[td + 3]         # (td*H*W, 8*Cout) f32
        cin = x_refs[0].shape[-1]
        kc = v_ref.shape[-1]

        b = b_ref[...]               # hoisted: read + broadcast once, not per row
        for t in range(td):          # static unroll over the depth rows of this tile
            xc = x_refs[t][0, 0]     # (H+1, W+1, Cin) current depth row
            xn = x_refs[t + 1][0, 0]  # depth halo row
            acc = jnp.zeros((hw, kc), jnp.float32)
            # Static unroll over the 8 spatial shifts; each is one MXU matmul
            # accumulated in f32.
            for dd, plane in ((0, xc), (1, xn)):
                for dh in (0, 1):
                    for dw in (0, 1):
                        tap = plane[dh:dh + h, dw:dw + w, :].reshape(hw, cin)
                        acc = acc + jnp.dot(
                            tap, v_ref[dd * 4 + dh * 2 + dw],
                            preferred_element_type=jnp.float32)
            y = jnp.maximum(acc + b, 0.0)       # fused BN bias + ReLU in f32
            o_ref[pl.ds(t * hw, hw), :] = y.astype(o_ref.dtype)

    return kernel


def _choose_depth_tile(D, H, W, cin, kc, max_td=8, vmem_budget=8 << 20):
    """Largest depth tile (divisor of D, <= max_td) whose double-buffered per-step
    footprint stays comfortably inside the default scoped-VMEM budget."""
    best = 1
    for td in range(1, min(D, max_td) + 1):
        if D % td:
            continue
        in_bytes = (td + 1) * (H + 1) * (W + 1) * cin * 2
        out_bytes = td * H * W * kc * 4
        if 2 * (in_bytes + out_bytes) <= vmem_budget:
            best = td
    return best


def deconv3d_bn_relu(x_ncdhw, v_taps, bias8, out_channels):
    """ConvTranspose3d(k=3,s=2,p=1,op=1,bias=False) + folded BN + ReLU.

    x_ncdhw: (N, Cin, D, H, W) f32.  Returns (N, Cout, 2D, 2H, 2W) f32.
    """
    N, Cin, D, H, W = x_ncdhw.shape
    assert (H * W) % 8 == 0, "H*W must be a multiple of 8 (sublane tiling)"
    KC = 8 * out_channels

    # NCDHW -> NDHWC, end-pad each spatial dim by 1 (the only padding the stride-2
    # transposed conv needs), cast the big operand to bf16 (halves HBM traffic).
    x = jnp.transpose(x_ncdhw, (0, 2, 3, 4, 1))
    xp = jnp.pad(x, ((0, 0), (0, 1), (0, 1), (0, 1), (0, 0))).astype(jnp.bfloat16)

    TD = _choose_depth_tile(D, H, W, Cin, KC)
    DG = D // TD

    def _row_spec(j):
        # Block of 1 along depth => block index == element index, so d*TD + j
        # addresses depth row j of this tile (j == TD is the halo row).
        return pl.BlockSpec((1, 1, H + 1, W + 1, Cin),
                            lambda n, d, j=j: (n, d * TD + j, 0, 0, 0))

    in_specs = ([_row_spec(j) for j in range(TD + 1)]
                + [pl.BlockSpec((8, Cin, KC), lambda n, d: (0, 0, 0)),
                   pl.BlockSpec((1, KC), lambda n, d: (0, 0))])

    flops = 2 * N * D * H * W * 8 * Cin * KC
    bytes_accessed = (int(xp.size) * 2 * (TD + 1) // TD
                      + int(v_taps.size) * 2
                      + N * D * H * W * KC * 4)

    out2d = pl.pallas_call(
        _make_deconv_kernel(TD, H, W),
        out_shape=jax.ShapeDtypeStruct((N * D * H * W, KC), jnp.float32),
        grid_spec=pltpu.PrefetchScalarGridSpec(
            num_scalar_prefetch=0,
            grid=(N, DG),
            in_specs=in_specs,
            out_specs=pl.BlockSpec((TD * H * W, KC),
                                   lambda n, d: (n * DG + d, 0)),
        ),
        compiler_params=pltpu.CompilerParams(
            dimension_semantics=("parallel", "parallel")),
        cost_estimate=pl.CostEstimate(flops=flops, transcendentals=0,
                                      bytes_accessed=bytes_accessed),
    )(*([xp] * (TD + 1)), v_taps, bias8.reshape(1, KC))

    # (N*D*H*W, 8*Cout) -> (N, D, H, W, r, s, t, Cout) -> NCDHW with parity interleave.
    out = out2d.reshape(N, D, H, W, 2, 2, 2, out_channels)
    out = jnp.transpose(out, (0, 7, 1, 4, 2, 5, 3, 6))
    return out.reshape(N, out_channels, 2 * D, 2 * H, 2 * W)


# Which ConvTranspose kernel index contributes for (input shift delta, output parity).
_TAP = {(0, 0): 1, (0, 1): 2, (1, 0): None, (1, 1): 0}


class TransitionUpPallas:
    """Mirror of torch TransitionUp(in_channels, out_channels)."""

    def __init__(self, in_channels, out_channels, key, eps=1e-5):
        self.out_channels = out_channels
        kw_key, g_key, b_key, m_key, v_key = jax.random.split(key, 5)

        # torch ConvTranspose3d weight layout: (Cin, Cout, kd, kh, kw), bias=False.
        w = 0.1 * jax.random.normal(kw_key, (in_channels, out_channels, 3, 3, 3),
                                    jnp.float32)
        gamma = 1.0 + 0.1 * jax.random.normal(g_key, (out_channels,), jnp.float32)
        beta = 0.1 * jax.random.normal(b_key, (out_channels,), jnp.float32)
        mean = 0.1 * jax.random.normal(m_key, (out_channels,), jnp.float32)
        var = jnp.abs(jax.random.normal(v_key, (out_channels,), jnp.float32)) + 0.5

        scale = gamma / jnp.sqrt(var + eps)      # eval-mode BN folding
        bias = beta - mean * scale
        w_fold = w * scale[None, :, None, None, None]   # fold BN scale into weights

        # Build per-shift weight slabs V[delta] : (Cin, 8*Cout), column = parity*Cout+co.
        V = jnp.zeros((8, in_channels, 8 * out_channels), jnp.float32)
        for dd in (0, 1):
            for dh in (0, 1):
                for dw in (0, 1):
                    di = dd * 4 + dh * 2 + dw
                    for r in (0, 1):
                        for s in (0, 1):
                            for t in (0, 1):
                                kd, kh, kw = _TAP[(dd, r)], _TAP[(dh, s)], _TAP[(dw, t)]
                                if kd is None or kh is None or kw is None:
                                    continue
                                p = (r * 2 + s) * 2 + t
                                V = V.at[di, :,
                                         p * out_channels:(p + 1) * out_channels].set(
                                    w_fold[:, :, kd, kh, kw])

        self.v_taps = V.astype(jnp.bfloat16)
        self.bias8 = jnp.tile(bias, 8)           # same BN bias for all 8 parities
        self.w_fold = w_fold                     # kept for the reference check
        self.bias = bias

    def __call__(self, x, skip):
        out = deconv3d_bn_relu(x, self.v_taps, self.bias8, self.out_channels)
        return out if skip is None else out + skip


def _reference_forward(x, w_fold, bias, skip):
    """Pure-JAX reference: ConvTranspose3d(s=2,p=1,op=1) == lhs-dilated conv with
    the spatially flipped kernel (in/out channels swapped), then bias+ReLU+skip."""
    rhs = jnp.transpose(jnp.flip(w_fold, axis=(2, 3, 4)), (1, 0, 2, 3, 4))
    y = jax.lax.conv_general_dilated(
        x, rhs, window_strides=(1, 1, 1),
        padding=((1, 2), (1, 2), (1, 2)), lhs_dilation=(2, 2, 2),
        dimension_numbers=("NCDHW", "OIDHW", "NCDHW"),
        precision=jax.lax.Precision.HIGHEST)
    y = jnp.maximum(y + bias[None, :, None, None, None], 0.0)
    return y if skip is None else y + skip


if __name__ == "__main__":
    key = jax.random.PRNGKey(0)
    N, Cin, Cout = 2, 16, 8
    D, H, W = 4, 8, 8

    xk, sk, mk = jax.random.split(key, 3)
    x = jax.random.normal(xk, (N, Cin, D, H, W), jnp.float32)
    skip = jax.random.normal(sk, (N, Cout, 2 * D, 2 * H, 2 * W), jnp.float32)

    model = TransitionUpPallas(Cin, Cout, mk)
    fwd = jax.jit(model.__call__)
    y = fwd(x, skip)
    jax.block_until_ready(y)
    assert y.shape == (N, Cout, 2 * D, 2 * H, 2 * W), y.shape

    # Reference uses the same bf16-quantized folded weights / inputs so the check
    # isolates the transposed-conv parity decomposition + kernel mechanics.
    xq = x.astype(jnp.bfloat16).astype(jnp.float32)
    wq = model.w_fold.astype(jnp.bfloat16).astype(jnp.float32)
    y_ref = _reference_forward(xq, wq, model.bias, skip)
    err = float(jnp.max(jnp.abs(y - y_ref)))
    assert err < 2e-3, err

    print("KERNEL_OK")
</pallas_src>

<mosaic_0001>
module attributes {stable_mosaic.version = 11 : i64} {
  func.func @kernel(%arg0: i32, %arg1: i32, %arg2: memref<1x1x9x9x16xbf16, #tpu.memory_space<vmem>>, %arg3: memref<1x1x9x9x16xbf16, #tpu.memory_space<vmem>>, %arg4: memref<1x1x9x9x16xbf16, #tpu.memory_space<vmem>>, %arg5: memref<1x1x9x9x16xbf16, #tpu.memory_space<vmem>>, %arg6: memref<1x1x9x9x16xbf16, #tpu.memory_space<vmem>>, %arg7: memref<8x16x64xbf16, #tpu.memory_space<vmem>>, %arg8: memref<1x64xf32, #tpu.memory_space<vmem>>, %arg9: memref<256x64xf32, #tpu.memory_space<vmem>>) attributes {dimension_semantics = [#tpu.dimension_semantics<parallel>, #tpu.dimension_semantics<parallel>], iteration_bounds = array<i64: 2, 1>, scalar_prefetch = 0 : i64, scratch_operands = 0 : i64, tpu.core_type = #tpu.core_type<tc>, window_params = [{transform_indices = @transform_0, window_bounds = array<i64: 1, 1, 9, 9, 16>}, {transform_indices = @transform_1, window_bounds = array<i64: 1, 1, 9, 9, 16>}, {transform_indices = @transform_2, window_bounds = array<i64: 1, 1, 9, 9, 16>}, {transform_indices = @transform_3, window_bounds = array<i64: 1, 1, 9, 9, 16>}, {transform_indices = @transform_4, window_bounds = array<i64: 1, 1, 9, 9, 16>}, {pipeline_mode = #tpu.pipeline_mode<synchronous>, transform_indices = @transform_5, window_bounds = array<i64: 8, 16, 64>}, {pipeline_mode = #tpu.pipeline_mode<synchronous>, transform_indices = @transform_6, window_bounds = array<i64: 1, 64>}, {transform_indices = @transform_7, window_bounds = array<i64: 256, 64>}]} {
    %c0 = arith.constant 0 : index
    %c0_0 = arith.constant 0 : index
    %0 = vector.load %arg8[%c0, %c0_0] : memref<1x64xf32, #tpu.memory_space<vmem>>, vector<1x64xf32>
    %c0_1 = arith.constant 0 : index
    %c0_2 = arith.constant 0 : index
    %c0_3 = arith.constant 0 : index
    %c0_4 = arith.constant 0 : index
    %c0_5 = arith.constant 0 : index
    %1 = vector.load %arg2[%c0_1, %c0_2, %c0_3, %c0_4, %c0_5] : memref<1x1x9x9x16xbf16, #tpu.memory_space<vmem>>, vector<1x1x9x9x16xbf16>
    %2 = vector.shape_cast %1 : vector<1x1x9x9x16xbf16> to vector<9x9x16xbf16>
    %c0_6 = arith.constant 0 : index
    %c0_7 = arith.constant 0 : index
    %c0_8 = arith.constant 0 : index
    %c0_9 = arith.constant 0 : index
    %c0_10 = arith.constant 0 : index
    %3 = vector.load %arg3[%c0_6, %c0_7, %c0_8, %c0_9, %c0_10] : memref<1x1x9x9x16xbf16, #tpu.memory_space<vmem>>, vector<1x1x9x9x16xbf16>
    %4 = vector.shape_cast %3 : vector<1x1x9x9x16xbf16> to vector<9x9x16xbf16>
    %cst = arith.constant 0.000000e+00 : f32
    %5 = vector.broadcast %cst : f32 to vector<64x64xf32>
    %6 = vector.extract_strided_slice %2 {offsets = [0, 0, 0], sizes = [8, 8, 16], strides = [1, 1, 1]} : vector<9x9x16xbf16> to vector<8x8x16xbf16>
    %7 = vector.shape_cast %6 : vector<8x8x16xbf16> to vector<64x16xbf16>
    %c0_11 = arith.constant 0 : index
    %c0_12 = arith.constant 0 : index
    %c0_13 = arith.constant 0 : index
    %8 = vector.load %arg7[%c0_11, %c0_12, %c0_13] : memref<8x16x64xbf16, #tpu.memory_space<vmem>>, vector<1x16x64xbf16>
    %9 = vector.shape_cast %8 : vector<1x16x64xbf16> to vector<16x64xbf16>
    %cst_14 = arith.constant dense<0.000000e+00> : vector<64x64xf32>
    %10 = tpu.matmul %7, %9, %cst_14 {dimension_numbers = #tpu.dot_dimension_numbers<[1], [0], [0], [1], [0, 0, 1, 1], [], []>} : vector<64x16xbf16>, vector<16x64xbf16>, vector<64x64xf32> -> vector<64x64xf32>
    %11 = arith.addf %5, %10 : vector<64x64xf32>
    %12 = vector.extract_strided_slice %2 {offsets = [0, 1, 0], sizes = [8, 8, 16], strides = [1, 1, 1]} : vector<9x9x16xbf16> to vector<8x8x16xbf16>
    %13 = vector.shape_cast %12 : vector<8x8x16xbf16> to vector<64x16xbf16>
    %c1 = arith.constant 1 : index
    %c0_15 = arith.constant 0 : index
    %c0_16 = arith.constant 0 : index
    %14 = vector.load %arg7[%c1, %c0_15, %c0_16] : memref<8x16x64xbf16, #tpu.memory_space<vmem>>, vector<1x16x64xbf16>
    %15 = vector.shape_cast %14 : vector<1x16x64xbf16> to vector<16x64xbf16>
    %cst_17 = arith.constant dense<0.000000e+00> : vector<64x64xf32>
    %16 = tpu.matmul %13, %15, %cst_17 {dimension_numbers = #tpu.dot_dimension_numbers<[1], [0], [0], [1], [0, 0, 1, 1], [], []>} : vector<64x16xbf16>, vector<16x64xbf16>, vector<64x64xf32> -> vector<64x64xf32>
    %17 = arith.addf %11, %16 : vector<64x64xf32>
    %18 = vector.extract_strided_slice %2 {offsets = [1, 0, 0], sizes = [8, 8, 16], strides = [1, 1, 1]} : vector<9x9x16xbf16> to vector<8x8x16xbf16>
    %19 = vector.shape_cast %18 : vector<8x8x16xbf16> to vector<64x16xbf16>
    %c2 = arith.constant 2 : index
    %c0_18 = arith.constant 0 : index
    %c0_19 = arith.constant 0 : index
    %20 = vector.load %arg7[%c2, %c0_18, %c0_19] : memref<8x16x64xbf16, #tpu.memory_space<vmem>>, vector<1x16x64xbf16>
    %21 = vector.shape_cast %20 : vector<1x16x64xbf16> to vector<16x64xbf16>
    %cst_20 = arith.constant dense<0.000000e+00> : vector<64x64xf32>
    %22 = tpu.matmul %19, %21, %cst_20 {dimension_numbers = #tpu.dot_dimension_numbers<[1], [0], [0], [1], [0, 0, 1, 1], [], []>} : vector<64x16xbf16>, vector<16x64xbf16>, vector<64x64xf32> -> vector<64x64xf32>
    %23 = arith.addf %17, %22 : vector<64x64xf32>
    %24 = vector.extract_strided_slice %2 {offsets = [1, 1, 0], sizes = [8, 8, 16], strides = [1, 1, 1]} : vector<9x9x16xbf16> to vector<8x8x16xbf16>
    %25 = vector.shape_cast %24 : vector<8x8x16xbf16> to vector<64x16xbf16>
    %c3 = arith.constant 3 : index
    %c0_21 = arith.constant 0 : index
    %c0_22 = arith.constant 0 : index
    %26 = vector.load %arg7[%c3, %c0_21, %c0_22] : memref<8x16x64xbf16, #tpu.memory_space<vmem>>, vector<1x16x64xbf16>
    %27 = vector.shape_cast %26 : vector<1x16x64xbf16> to vector<16x64xbf16>
    %cst_23 = arith.constant dense<0.000000e+00> : vector<64x64xf32>
    %28 = tpu.matmul %25, %27, %cst_23 {dimension_numbers = #tpu.dot_dimension_numbers<[1], [0], [0], [1], [0, 0, 1, 1], [], []>} : vector<64x16xbf16>, vector<16x64xbf16>, vector<64x64xf32> -> vector<64x64xf32>
    %29 = arith.addf %23, %28 : vector<64x64xf32>
    %30 = vector.extract_strided_slice %4 {offsets = [0, 0, 0], sizes = [8, 8, 16], strides = [1, 1, 1]} : vector<9x9x16xbf16> to vector<8x8x16xbf16>
    %31 = vector.shape_cast %30 : vector<8x8x16xbf16> to vector<64x16xbf16>
    %c4 = arith.constant 4 : index
    %c0_24 = arith.constant 0 : index
    %c0_25 = arith.constant 0 : index
    %32 = vector.load %arg7[%c4, %c0_24, %c0_25] : memref<8x16x64xbf16, #tpu.memory_space<vmem>>, vector<1x16x64xbf16>
    %33 = vector.shape_cast %32 : vector<1x16x64xbf16> to vector<16x64xbf16>
    %cst_26 = arith.constant dense<0.000000e+00> : vector<64x64xf32>
    %34 = tpu.matmul %31, %33, %cst_26 {dimension_numbers = #tpu.dot_dimension_numbers<[1], [0], [0], [1], [0, 0, 1, 1], [], []>} : vector<64x16xbf16>, vector<16x64xbf16>, vector<64x64xf32> -> vector<64x64xf32>
    %35 = arith.addf %29, %34 : vector<64x64xf32>
    %36 = vector.extract_strided_slice %4 {offsets = [0, 1, 0], sizes = [8, 8, 16], strides = [1, 1, 1]} : vector<9x9x16xbf16> to vector<8x8x16xbf16>
    %37 = vector.shape_cast %36 : vector<8x8x16xbf16> to vector<64x16xbf16>
    %c5 = arith.constant 5 : index
    %c0_27 = arith.constant 0 : index
    %c0_28 = arith.constant 0 : index
    %38 = vector.load %arg7[%c5, %c0_27, %c0_28] : memref<8x16x64xbf16, #tpu.memory_space<vmem>>, vector<1x16x64xbf16>
    %39 = vector.shape_cast %38 : vector<1x16x64xbf16> to vector<16x64xbf16>
    %cst_29 = arith.constant dense<0.000000e+00> : vector<64x64xf32>
    %40 = tpu.matmul %37, %39, %cst_29 {dimension_numbers = #tpu.dot_dimension_numbers<[1], [0], [0], [1], [0, 0, 1, 1], [], []>} : vector<64x16xbf16>, vector<16x64xbf16>, vector<64x64xf32> -> vector<64x64xf32>
    %41 = arith.addf %35, %40 : vector<64x64xf32>
    %42 = vector.extract_strided_slice %4 {offsets = [1, 0, 0], sizes = [8, 8, 16], strides = [1, 1, 1]} : vector<9x9x16xbf16> to vector<8x8x16xbf16>
    %43 = vector.shape_cast %42 : vector<8x8x16xbf16> to vector<64x16xbf16>
    %c6 = arith.constant 6 : index
    %c0_30 = arith.constant 0 : index
    %c0_31 = arith.constant 0 : index
    %44 = vector.load %arg7[%c6, %c0_30, %c0_31] : memref<8x16x64xbf16, #tpu.memory_space<vmem>>, vector<1x16x64xbf16>
    %45 = vector.shape_cast %44 : vector<1x16x64xbf16> to vector<16x64xbf16>
    %cst_32 = arith.constant dense<0.000000e+00> : vector<64x64xf32>
    %46 = tpu.matmul %43, %45, %cst_32 {dimension_numbers = #tpu.dot_dimension_numbers<[1], [0], [0], [1], [0, 0, 1, 1], [], []>} : vector<64x16xbf16>, vector<16x64xbf16>, vector<64x64xf32> -> vector<64x64xf32>
    %47 = arith.addf %41, %46 : vector<64x64xf32>
    %48 = vector.extract_strided_slice %4 {offsets = [1, 1, 0], sizes = [8, 8, 16], strides = [1, 1, 1]} : vector<9x9x16xbf16> to vector<8x8x16xbf16>
    %49 = vector.shape_cast %48 : vector<8x8x16xbf16> to vector<64x16xbf16>
    %c7 = arith.constant 7 : index
    %c0_33 = arith.constant 0 : index
    %c0_34 = arith.constant 0 : index
    %50 = vector.load %arg7[%c7, %c0_33, %c0_34] : memref<8x16x64xbf16, #tpu.memory_space<vmem>>, vector<1x16x64xbf16>
    %51 = vector.shape_cast %50 : vector<1x16x64xbf16> to vector<16x64xbf16>
    %cst_35 = arith.constant dense<0.000000e+00> : vector<64x64xf32>
    %52 = tpu.matmul %49, %51, %cst_35 {dimension_numbers = #tpu.dot_dimension_numbers<[1], [0], [0], [1], [0, 0, 1, 1], [], []>} : vector<64x16xbf16>, vector<16x64xbf16>, vector<64x64xf32> -> vector<64x64xf32>
    %53 = arith.addf %47, %52 : vector<64x64xf32>
    %54 = vector.broadcast %0 : vector<1x64xf32> to vector<64x64xf32>
    %55 = arith.addf %53, %54 : vector<64x64xf32>
    %cst_36 = arith.constant 0.000000e+00 : f32
    %56 = vector.broadcast %cst_36 : f32 to vector<64x64xf32>
    %57 = arith.maximumf %55, %56 : vector<64x64xf32>
    %c0_37 = arith.constant 0 : index
    %c0_38 = arith.constant 0 : index
    %58 = vector.load %arg9[%c0_37, %c0_38] : memref<256x64xf32, #tpu.memory_space<vmem>>, vector<64x64xf32>
    tpu.vector_store %arg9[%c0_37, %c0_38], %57 {strides = array<i32>} : memref<256x64xf32, #tpu.memory_space<vmem>>, vector<64x64xf32>,
    %c0_39 = arith.constant 0 : index
    %c0_40 = arith.constant 0 : index
    %c0_41 = arith.constant 0 : index
    %c0_42 = arith.constant 0 : index
    %c0_43 = arith.constant 0 : index
    %59 = vector.load %arg3[%c0_39, %c0_40, %c0_41, %c0_42, %c0_43] : memref<1x1x9x9x16xbf16, #tpu.memory_space<vmem>>, vector<1x1x9x9x16xbf16>
    %60 = vector.shape_cast %59 : vector<1x1x9x9x16xbf16> to vector<9x9x16xbf16>
    %c0_44 = arith.constant 0 : index
    %c0_45 = arith.constant 0 : index
    %c0_46 = arith.constant 0 : index
    %c0_47 = arith.constant 0 : index
    %c0_48 = arith.constant 0 : index
    %61 = vector.load %arg4[%c0_44, %c0_45, %c0_46, %c0_47, %c0_48] : memref<1x1x9x9x16xbf16, #tpu.memory_space<vmem>>, vector<1x1x9x9x16xbf16>
    %62 = vector.shape_cast %61 : vector<1x1x9x9x16xbf16> to vector<9x9x16xbf16>
    %cst_49 = arith.constant 0.000000e+00 : f32
    %63 = vector.broadcast %cst_49 : f32 to vector<64x64xf32>
    %64 = vector.extract_strided_slice %60 {offsets = [0, 0, 0], sizes = [8, 8, 16], strides = [1, 1, 1]} : vector<9x9x16xbf16> to vector<8x8x16xbf16>
    %65 = vector.shape_cast %64 : vector<8x8x16xbf16> to vector<64x16xbf16>
    %c0_50 = arith.constant 0 : index
    %c0_51 = arith.constant 0 : index
    %c0_52 = arith.constant 0 : index
    %66 = vector.load %arg7[%c0_50, %c0_51, %c0_52] : memref<8x16x64xbf16, #tpu.memory_space<vmem>>, vector<1x16x64xbf16>
    %67 = vector.shape_cast %66 : vector<1x16x64xbf16> to vector<16x64xbf16>
    %cst_53 = arith.constant dense<0.000000e+00> : vector<64x64xf32>
    %68 = tpu.matmul %65, %67, %cst_53 {dimension_numbers = #tpu.dot_dimension_numbers<[1], [0], [0], [1], [0, 0, 1, 1], [], []>} : vector<64x16xbf16>, vector<16x64xbf16>, vector<64x64xf32> -> vector<64x64xf32>
    %69 = arith.addf %63, %68 : vector<64x64xf32>
    %70 = vector.extract_strided_slice %60 {offsets = [0, 1, 0], sizes = [8, 8, 16], strides = [1, 1, 1]} : vector<9x9x16xbf16> to vector<8x8x16xbf16>
    %71 = vector.shape_cast %70 : vector<8x8x16xbf16> to vector<64x16xbf16>
    %c1_54 = arith.constant 1 : index
    %c0_55 = arith.constant 0 : index
    %c0_56 = arith.constant 0 : index
    %72 = vector.load %arg7[%c1_54, %c0_55, %c0_56] : memref<8x16x64xbf16, #tpu.memory_space<vmem>>, vector<1x16x64xbf16>
    %73 = vector.shape_cast %72 : vector<1x16x64xbf16> to vector<16x64xbf16>
    %cst_57 = arith.constant dense<0.000000e+00> : vector<64x64xf32>
    %74 = tpu.matmul %71, %73, %cst_57 {dimension_numbers = #tpu.dot_dimension_numbers<[1], [0], [0], [1], [0, 0, 1, 1], [], []>} : vector<64x16xbf16>, vector<16x64xbf16>, vector<64x64xf32> -> vector<64x64xf32>
    %75 = arith.addf %69, %74 : vector<64x64xf32>
    %76 = vector.extract_strided_slice %60 {offsets = [1, 0, 0], sizes = [8, 8, 16], strides = [1, 1, 1]} : vector<9x9x16xbf16> to vector<8x8x16xbf16>
    %77 = vector.shape_cast %76 : vector<8x8x16xbf16> to vector<64x16xbf16>
    %c2_58 = arith.constant 2 : index
    %c0_59 = arith.constant 0 : index
    %c0_60 = arith.constant 0 : index
    %78 = vector.load %arg7[%c2_58, %c0_59, %c0_60] : memref<8x16x64xbf16, #tpu.memory_space<vmem>>, vector<1x16x64xbf16>
    %79 = vector.shape_cast %78 : vector<1x16x64xbf16> to vector<16x64xbf16>
    %cst_61 = arith.constant dense<0.000000e+00> : vector<64x64xf32>
    %80 = tpu.matmul %77, %79, %cst_61 {dimension_numbers = #tpu.dot_dimension_numbers<[1], [0], [0], [1], [0, 0, 1, 1], [], []>} : vector<64x16xbf16>, vector<16x64xbf16>, vector<64x64xf32> -> vector<64x64xf32>
    %81 = arith.addf %75, %80 : vector<64x64xf32>
    %82 = vector.extract_strided_slice %60 {offsets = [1, 1, 0], sizes = [8, 8, 16], strides = [1, 1, 1]} : vector<9x9x16xbf16> to vector<8x8x16xbf16>
    %83 = vector.shape_cast %82 : vector<8x8x16xbf16> to vector<64x16xbf16>
    %c3_62 = arith.constant 3 : index
    %c0_63 = arith.constant 0 : index
    %c0_64 = arith.constant 0 : index
    %84 = vector.load %arg7[%c3_62, %c0_63, %c0_64] : memref<8x16x64xbf16, #tpu.memory_space<vmem>>, vector<1x16x64xbf16>
    %85 = vector.shape_cast %84 : vector<1x16x64xbf16> to vector<16x64xbf16>
    %cst_65 = arith.constant dense<0.000000e+00> : vector<64x64xf32>
    %86 = tpu.matmul %83, %85, %cst_65 {dimension_numbers = #tpu.dot_dimension_numbers<[1], [0], [0], [1], [0, 0, 1, 1], [], []>} : vector<64x16xbf16>, vector<16x64xbf16>, vector<64x64xf32> -> vector<64x64xf32>
    %87 = arith.addf %81, %86 : vector<64x64xf32>
    %88 = vector.extract_strided_slice %62 {offsets = [0, 0, 0], sizes = [8, 8, 16], strides = [1, 1, 1]} : vector<9x9x16xbf16> to vector<8x8x16xbf16>
    %89 = vector.shape_cast %88 : vector<8x8x16xbf16> to vector<64x16xbf16>
    %c4_66 = arith.constant 4 : index
    %c0_67 = arith.constant 0 : index
    %c0_68 = arith.constant 0 : index
    %90 = vector.load %arg7[%c4_66, %c0_67, %c0_68] : memref<8x16x64xbf16, #tpu.memory_space<vmem>>, vector<1x16x64xbf16>
    %91 = vector.shape_cast %90 : vector<1x16x64xbf16> to vector<16x64xbf16>
    %cst_69 = arith.constant dense<0.000000e+00> : vector<64x64xf32>
    %92 = tpu.matmul %89, %91, %cst_69 {dimension_numbers = #tpu.dot_dimension_numbers<[1], [0], [0], [1], [0, 0, 1, 1], [], []>} : vector<64x16xbf16>, vector<16x64xbf16>, vector<64x64xf32> -> vector<64x64xf32>
    %93 = arith.addf %87, %92 : vector<64x64xf32>
    %94 = vector.extract_strided_slice %62 {offsets = [0, 1, 0], sizes = [8, 8, 16], strides = [1, 1, 1]} : vector<9x9x16xbf16> to vector<8x8x16xbf16>
    %95 = vector.shape_cast %94 : vector<8x8x16xbf16> to vector<64x16xbf16>
    %c5_70 = arith.constant 5 : index
    %c0_71 = arith.constant 0 : index
    %c0_72 = arith.constant 0 : index
    %96 = vector.load %arg7[%c5_70, %c0_71, %c0_72] : memref<8x16x64xbf16, #tpu.memory_space<vmem>>, vector<1x16x64xbf16>
    %97 = vector.shape_cast %96 : vector<1x16x64xbf16> to vector<16x64xbf16>
    %cst_73 = arith.constant dense<0.000000e+00> : vector<64x64xf32>
    %98 = tpu.matmul %95, %97, %cst_73 {dimension_numbers = #tpu.dot_dimension_numbers<[1], [0], [0], [1], [0, 0, 1, 1], [], []>} : vector<64x16xbf16>, vector<16x64xbf16>, vector<64x64xf32> -> vector<64x64xf32>
    %99 = arith.addf %93, %98 : vector<64x64xf32>
    %100 = vector.extract_strided_slice %62 {offsets = [1, 0, 0], sizes = [8, 8, 16], strides = [1, 1, 1]} : vector<9x9x16xbf16> to vector<8x8x16xbf16>
    %101 = vector.shape_cast %100 : vector<8x8x16xbf16> to vector<64x16xbf16>
    %c6_74 = arith.constant 6 : index
    %c0_75 = arith.constant 0 : index
    %c0_76 = arith.constant 0 : index
    %102 = vector.load %arg7[%c6_74, %c0_75, %c0_76] : memref<8x16x64xbf16, #tpu.memory_space<vmem>>, vector<1x16x64xbf16>
    %103 = vector.shape_cast %102 : vector<1x16x64xbf16> to vector<16x64xbf16>
    %cst_77 = arith.constant dense<0.000000e+00> : vector<64x64xf32>
    %104 = tpu.matmul %101, %103, %cst_77 {dimension_numbers = #tpu.dot_dimension_numbers<[1], [0], [0], [1], [0, 0, 1, 1], [], []>} : vector<64x16xbf16>, vector<16x64xbf16>, vector<64x64xf32> -> vector<64x64xf32>
    %105 = arith.addf %99, %104 : vector<64x64xf32>
    %106 = vector.extract_strided_slice %62 {offsets = [1, 1, 0], sizes = [8, 8, 16], strides = [1, 1, 1]} : vector<9x9x16xbf16> to vector<8x8x16xbf16>
    %107 = vector.shape_cast %106 : vector<8x8x16xbf16> to vector<64x16xbf16>
    %c7_78 = arith.constant 7 : index
    %c0_79 = arith.constant 0 : index
    %c0_80 = arith.constant 0 : index
    %108 = vector.load %arg7[%c7_78, %c0_79, %c0_80] : memref<8x16x64xbf16, #tpu.memory_space<vmem>>, vector<1x16x64xbf16>
    %109 = vector.shape_cast %108 : vector<1x16x64xbf16> to vector<16x64xbf16>
    %cst_81 = arith.constant dense<0.000000e+00> : vector<64x64xf32>
    %110 = tpu.matmul %107, %109, %cst_81 {dimension_numbers = #tpu.dot_dimension_numbers<[1], [0], [0], [1], [0, 0, 1, 1], [], []>} : vector<64x16xbf16>, vector<16x64xbf16>, vector<64x64xf32> -> vector<64x64xf32>
    %111 = arith.addf %105, %110 : vector<64x64xf32>
    %112 = vector.broadcast %0 : vector<1x64xf32> to vector<64x64xf32>
    %113 = arith.addf %111, %112 : vector<64x64xf32>
    %cst_82 = arith.constant 0.000000e+00 : f32
    %114 = vector.broadcast %cst_82 : f32 to vector<64x64xf32>
    %115 = arith.maximumf %113, %114 : vector<64x64xf32>
    %c64 = arith.constant 64 : index
    %c0_83 = arith.constant 0 : index
    %116 = vector.load %arg9[%c64, %c0_83] : memref<256x64xf32, #tpu.memory_space<vmem>>, vector<64x64xf32>
    tpu.vector_store %arg9[%c64, %c0_83], %115 {strides = array<i32>} : memref<256x64xf32, #tpu.memory_space<vmem>>, vector<64x64xf32>,
    %c0_84 = arith.constant 0 : index
    %c0_85 = arith.constant 0 : index
    %c0_86 = arith.constant 0 : index
    %c0_87 = arith.constant 0 : index
    %c0_88 = arith.constant 0 : index
    %117 = vector.load %arg4[%c0_84, %c0_85, %c0_86, %c0_87, %c0_88] : memref<1x1x9x9x16xbf16, #tpu.memory_space<vmem>>, vector<1x1x9x9x16xbf16>
    %118 = vector.shape_cast %117 : vector<1x1x9x9x16xbf16> to vector<9x9x16xbf16>
    %c0_89 = arith.constant 0 : index
    %c0_90 = arith.constant 0 : index
    %c0_91 = arith.constant 0 : index
    %c0_92 = arith.constant 0 : index
    %c0_93 = arith.constant 0 : index
    %119 = vector.load %arg5[%c0_89, %c0_90, %c0_91, %c0_92, %c0_93] : memref<1x1x9x9x16xbf16, #tpu.memory_space<vmem>>, vector<1x1x9x9x16xbf16>
    %120 = vector.shape_cast %119 : vector<1x1x9x9x16xbf16> to vector<9x9x16xbf16>
    %cst_94 = arith.constant 0.000000e+00 : f32
    %121 = vector.broadcast %cst_94 : f32 to vector<64x64xf32>
    %122 = vector.extract_strided_slice %118 {offsets = [0, 0, 0], sizes = [8, 8, 16], strides = [1, 1, 1]} : vector<9x9x16xbf16> to vector<8x8x16xbf16>
    %123 = vector.shape_cast %122 : vector<8x8x16xbf16> to vector<64x16xbf16>
    %c0_95 = arith.constant 0 : index
    %c0_96 = arith.constant 0 : index
    %c0_97 = arith.constant 0 : index
    %124 = vector.load %arg7[%c0_95, %c0_96, %c0_97] : memref<8x16x64xbf16, #tpu.memory_space<vmem>>, vector<1x16x64xbf16>
    %125 = vector.shape_cast %124 : vector<1x16x64xbf16> to vector<16x64xbf16>
    %cst_98 = arith.constant dense<0.000000e+00> : vector<64x64xf32>
    %126 = tpu.matmul %123, %125, %cst_98 {dimension_numbers = #tpu.dot_dimension_numbers<[1], [0], [0], [1], [0, 0, 1, 1], [], []>} : vector<64x16xbf16>, vector<16x64xbf16>, vector<64x64xf32> -> vector<64x64xf32>
    %127 = arith.addf %121, %126 : vector<64x64xf32>
    %128 = vector.extract_strided_slice %118 {offsets = [0, 1, 0], sizes = [8, 8, 16], strides = [1, 1, 1]} : vector<9x9x16xbf16> to vector<8x8x16xbf16>
    %129 = vector.shape_cast %128 : vector<8x8x16xbf16> to vector<64x16xbf16>
    %c1_99 = arith.constant 1 : index
    %c0_100 = arith.constant 0 : index
    %c0_101 = arith.constant 0 : index
    %130 = vector.load %arg7[%c1_99, %c0_100, %c0_101] : memref<8x16x64xbf16, #tpu.memory_space<vmem>>, vector<1x16x64xbf16>
    %131 = vector.shape_cast %130 : vector<1x16x64xbf16> to vector<16x64xbf16>
    %cst_102 = arith.constant dense<0.000000e+00> : vector<64x64xf32>
    %132 = tpu.matmul %129, %131, %cst_102 {dimension_numbers = #tpu.dot_dimension_numbers<[1], [0], [0], [1], [0, 0, 1, 1], [], []>} : vector<64x16xbf16>, vector<16x64xbf16>, vector<64x64xf32> -> vector<64x64xf32>
    %133 = arith.addf %127, %132 : vector<64x64xf32>
    %134 = vector.extract_strided_slice %118 {offsets = [1, 0, 0], sizes = [8, 8, 16], strides = [1, 1, 1]} : vector<9x9x16xbf16> to vector<8x8x16xbf16>
    %135 = vector.shape_cast %134 : vector<8x8x16xbf16> to vector<64x16xbf16>
    %c2_103 = arith.constant 2 : index
    %c0_104 = arith.constant 0 : index
    %c0_105 = arith.constant 0 : index
    %136 = vector.load %arg7[%c2_103, %c0_104, %c0_105] : memref<8x16x64xbf16, #tpu.memory_space<vmem>>, vector<1x16x64xbf16>
    %137 = vector.shape_cast %136 : vector<1x16x64xbf16> to vector<16x64xbf16>
    %cst_106 = arith.constant dense<0.000000e+00> : vector<64x64xf32>
    %138 = tpu.matmul %135, %137, %cst_106 {dimension_numbers = #tpu.dot_dimension_numbers<[1], [0], [0], [1], [0, 0, 1, 1], [], []>} : vector<64x16xbf16>, vector<16x64xbf16>, vector<64x64xf32> -> vector<64x64xf32>
    %139 = arith.addf %133, %138 : vector<64x64xf32>
    %140 = vector.extract_strided_slice %118 {offsets = [1, 1, 0], sizes = [8, 8, 16], strides = [1, 1, 1]} : vector<9x9x16xbf16> to vector<8x8x16xbf16>
    %141 = vector.shape_cast %140 : vector<8x8x16xbf16> to vector<64x16xbf16>
    %c3_107 = arith.constant 3 : index
    %c0_108 = arith.constant 0 : index
    %c0_109 = arith.constant 0 : index
    %142 = vector.load %arg7[%c3_107, %c0_108, %c0_109] : memref<8x16x64xbf16, #tpu.memory_space<vmem>>, vector<1x16x64xbf16>
    %143 = vector.shape_cast %142 : vector<1x16x64xbf16> to vector<16x64xbf16>
    %cst_110 = arith.constant dense<0.000000e+00> : vector<64x64xf32>
    %144 = tpu.matmul %141, %143, %cst_110 {dimension_numbers = #tpu.dot_dimension_numbers<[1], [0], [0], [1], [0, 0, 1, 1], [], []>} : vector<64x16xbf16>, vector<16x64xbf16>, vector<64x64xf32> -> vector<64x64xf32>
    %145 = arith.addf %139, %144 : vector<64x64xf32>
    %146 = vector.extract_strided_slice %120 {offsets = [0, 0, 0], sizes = [8, 8, 16], strides = [1, 1, 1]} : vector<9x9x16xbf16> to vector<8x8x16xbf16>
    %147 = vector.shape_cast %146 : vector<8x8x16xbf16> to vector<64x16xbf16>
    %c4_111 = arith.constant 4 : index
    %c0_112 = arith.constant 0 : index
    %c0_113 = arith.constant 0 : index
    %148 = vector.load %arg7[%c4_111, %c0_112, %c0_113] : memref<8x16x64xbf16, #tpu.memory_space<vmem>>, vector<1x16x64xbf16>
    %149 = vector.shape_cast %148 : vector<1x16x64xbf16> to vector<16x64xbf16>
    %cst_114 = arith.constant dense<0.000000e+00> : vector<64x64xf32>
    %150 = tpu.matmul %147, %149, %cst_114 {dimension_numbers = #tpu.dot_dimension_numbers<[1], [0], [0], [1], [0, 0, 1, 1], [], []>} : vector<64x16xbf16>, vector<16x64xbf16>, vector<64x64xf32> -> vector<64x64xf32>
    %151 = arith.addf %145, %150 : vector<64x64xf32>
    %152 = vector.extract_strided_slice %120 {offsets = [0, 1, 0], sizes = [8, 8, 16], strides = [1, 1, 1]} : vector<9x9x16xbf16> to vector<8x8x16xbf16>
    %153 = vector.shape_cast %152 : vector<8x8x16xbf16> to vector<64x16xbf16>
    %c5_115 = arith.constant 5 : index
    %c0_116 = arith.constant 0 : index
    %c0_117 = arith.constant 0 : index
    %154 = vector.load %arg7[%c5_115, %c0_116, %c0_117] : memref<8x16x64xbf16, #tpu.memory_space<vmem>>, vector<1x16x64xbf16>
    %155 = vector.shape_cast %154 : vector<1x16x64xbf16> to vector<16x64xbf16>
    %cst_118 = arith.constant dense<0.000000e+00> : vector<64x64xf32>
    %156 = tpu.matmul %153, %155, %cst_118 {dimension_numbers = #tpu.dot_dimension_numbers<[1], [0], [0], [1], [0, 0, 1, 1], [], []>} : vector<64x16xbf16>, vector<16x64xbf16>, vector<64x64xf32> -> vector<64x64xf32>
    %157 = arith.addf %151, %156 : vector<64x64xf32>
    %158 = vector.extract_strided_slice %120 {offsets = [1, 0, 0], sizes = [8, 8, 16], strides = [1, 1, 1]} : vector<9x9x16xbf16> to vector<8x8x16xbf16>
    %159 = vector.shape_cast %158 : vector<8x8x16xbf16> to vector<64x16xbf16>
    %c6_119 = arith.constant 6 : index
    %c0_120 = arith.constant 0 : index
    %c0_121 = arith.constant 0 : index
    %160 = vector.load %arg7[%c6_119, %c0_120, %c0_121] : memref<8x16x64xbf16, #tpu.memory_space<vmem>>, vector<1x16x64xbf16>
    %161 = vector.shape_cast %160 : vector<1x16x64xbf16> to vector<16x64xbf16>
    %cst_122 = arith.constant dense<0.000000e+00> : vector<64x64xf32>
    %162 = tpu.matmul %159, %161, %cst_122 {dimension_numbers = #tpu.dot_dimension_numbers<[1], [0], [0], [1], [0, 0, 1, 1], [], []>} : vector<64x16xbf16>, vector<16x64xbf16>, vector<64x64xf32> -> vector<64x64xf32>
    %163 = arith.addf %157, %162 : vector<64x64xf32>
    %164 = vector.extract_strided_slice %120 {offsets = [1, 1, 0], sizes = [8, 8, 16], strides = [1, 1, 1]} : vector<9x9x16xbf16> to vector<8x8x16xbf16>
    %165 = vector.shape_cast %164 : vector<8x8x16xbf16> to vector<64x16xbf16>
    %c7_123 = arith.constant 7 : index
    %c0_124 = arith.constant 0 : index
    %c0_125 = arith.constant 0 : index
    %166 = vector.load %arg7[%c7_123, %c0_124, %c0_125] : memref<8x16x64xbf16, #tpu.memory_space<vmem>>, vector<1x16x64xbf16>
    %167 = vector.shape_cast %166 : vector<1x16x64xbf16> to vector<16x64xbf16>
    %cst_126 = arith.constant dense<0.000000e+00> : vector<64x64xf32>
    %168 = tpu.matmul %165, %167, %cst_126 {dimension_numbers = #tpu.dot_dimension_numbers<[1], [0], [0], [1], [0, 0, 1, 1], [], []>} : vector<64x16xbf16>, vector<16x64xbf16>, vector<64x64xf32> -> vector<64x64xf32>
    %169 = arith.addf %163, %168 : vector<64x64xf32>
    %170 = vector.broadcast %0 : vector<1x64xf32> to vector<64x64xf32>
    %171 = arith.addf %169, %170 : vector<64x64xf32>
    %cst_127 = arith.constant 0.000000e+00 : f32
    %172 = vector.broadcast %cst_127 : f32 to vector<64x64xf32>
    %173 = arith.maximumf %171, %172 : vector<64x64xf32>
    %c128 = arith.constant 128 : index
    %c0_128 = arith.constant 0 : index
    %174 = vector.load %arg9[%c128, %c0_128] : memref<256x64xf32, #tpu.memory_space<vmem>>, vector<64x64xf32>
    tpu.vector_store %arg9[%c128, %c0_128], %173 {strides = array<i32>} : memref<256x64xf32, #tpu.memory_space<vmem>>, vector<64x64xf32>,
    %c0_129 = arith.constant 0 : index
    %c0_130 = arith.constant 0 : index
    %c0_131 = arith.constant 0 : index
    %c0_132 = arith.constant 0 : index
    %c0_133 = arith.constant 0 : index
    %175 = vector.load %arg5[%c0_129, %c0_130, %c0_131, %c0_132, %c0_133] : memref<1x1x9x9x16xbf16, #tpu.memory_space<vmem>>, vector<1x1x9x9x16xbf16>
    %176 = vector.shape_cast %175 : vector<1x1x9x9x16xbf16> to vector<9x9x16xbf16>
    %c0_134 = arith.constant 0 : index
    %c0_135 = arith.constant 0 : index
    %c0_136 = arith.constant 0 : index
    %c0_137 = arith.constant 0 : index
    %c0_138 = arith.constant 0 : index
    %177 = vector.load %arg6[%c0_134, %c0_135, %c0_136, %c0_137, %c0_138] : memref<1x1x9x9x16xbf16, #tpu.memory_space<vmem>>, vector<1x1x9x9x16xbf16>
    %178 = vector.shape_cast %177 : vector<1x1x9x9x16xbf16> to vector<9x9x16xbf16>
    %cst_139 = arith.constant 0.000000e+00 : f32
    %179 = vector.broadcast %cst_139 : f32 to vector<64x64xf32>
    %180 = vector.extract_strided_slice %176 {offsets = [0, 0, 0], sizes = [8, 8, 16], strides = [1, 1, 1]} : vector<9x9x16xbf16> to vector<8x8x16xbf16>
    %181 = vector.shape_cast %180 : vector<8x8x16xbf16> to vector<64x16xbf16>
    %c0_140 = arith.constant 0 : index
    %c0_141 = arith.constant 0 : index
    %c0_142 = arith.constant 0 : index
    %182 = vector.load %arg7[%c0_140, %c0_141, %c0_142] : memref<8x16x64xbf16, #tpu.memory_space<vmem>>, vector<1x16x64xbf16>
    %183 = vector.shape_cast %182 : vector<1x16x64xbf16> to vector<16x64xbf16>
    %cst_143 = arith.constant dense<0.000000e+00> : vector<64x64xf32>
    %184 = tpu.matmul %181, %183, %cst_143 {dimension_numbers = #tpu.dot_dimension_numbers<[1], [0], [0], [1], [0, 0, 1, 1], [], []>} : vector<64x16xbf16>, vector<16x64xbf16>, vector<64x64xf32> -> vector<64x64xf32>
    %185 = arith.addf %179, %184 : vector<64x64xf32>
    %186 = vector.extract_strided_slice %176 {offsets = [0, 1, 0], sizes = [8, 8, 16], strides = [1, 1, 1]} : vector<9x9x16xbf16> to vector<8x8x16xbf16>
    %187 = vector.shape_cast %186 : vector<8x8x16xbf16> to vector<64x16xbf16>
    %c1_144 = arith.constant 1 : index
    %c0_145 = arith.constant 0 : index
    %c0_146 = arith.constant 0 : index
    %188 = vector.load %arg7[%c1_144, %c0_145, %c0_146] : memref<8x16x64xbf16, #tpu.memory_space<vmem>>, vector<1x16x64xbf16>
    %189 = vector.shape_cast %188 : vector<1x16x64xbf16> to vector<16x64xbf16>
    %cst_147 = arith.constant dense<0.000000e+00> : vector<64x64xf32>
    %190 = tpu.matmul %187, %189, %cst_147 {dimension_numbers = #tpu.dot_dimension_numbers<[1], [0], [0], [1], [0, 0, 1, 1], [], []>} : vector<64x16xbf16>, vector<16x64xbf16>, vector<64x64xf32> -> vector<64x64xf32>
    %191 = arith.addf %185, %190 : vector<64x64xf32>
    %192 = vector.extract_strided_slice %176 {offsets = [1, 0, 0], sizes = [8, 8, 16], strides = [1, 1, 1]} : vector<9x9x16xbf16> to vector<8x8x16xbf16>
    %193 = vector.shape_cast %192 : vector<8x8x16xbf16> to vector<64x16xbf16>
    %c2_148 = arith.constant 2 : index
    %c0_149 = arith.constant 0 : index
    %c0_150 = arith.constant 0 : index
    %194 = vector.load %arg7[%c2_148, %c0_149, %c0_150] : memref<8x16x64xbf16, #tpu.memory_space<vmem>>, vector<1x16x64xbf16>
    %195 = vector.shape_cast %194 : vector<1x16x64xbf16> to vector<16x64xbf16>
    %cst_151 = arith.constant dense<0.000000e+00> : vector<64x64xf32>
    %196 = tpu.matmul %193, %195, %cst_151 {dimension_numbers = #tpu.dot_dimension_numbers<[1], [0], [0], [1], [0, 0, 1, 1], [], []>} : vector<64x16xbf16>, vector<16x64xbf16>, vector<64x64xf32> -> vector<64x64xf32>
    %197 = arith.addf %191, %196 : vector<64x64xf32>
    %198 = vector.extract_strided_slice %176 {offsets = [1, 1, 0], sizes = [8, 8, 16], strides = [1, 1, 1]} : vector<9x9x16xbf16> to vector<8x8x16xbf16>
    %199 = vector.shape_cast %198 : vector<8x8x16xbf16> to vector<64x16xbf16>
    %c3_152 = arith.constant 3 : index
    %c0_153 = arith.constant 0 : index
    %c0_154 = arith.constant 0 : index
    %200 = vector.load %arg7[%c3_152, %c0_153, %c0_154] : memref<8x16x64xbf16, #tpu.memory_space<vmem>>, vector<1x16x64xbf16>
    %201 = vector.shape_cast %200 : vector<1x16x64xbf16> to vector<16x64xbf16>
    %cst_155 = arith.constant dense<0.000000e+00> : vector<64x64xf32>
    %202 = tpu.matmul %199, %201, %cst_155 {dimension_numbers = #tpu.dot_dimension_numbers<[1], [0], [0], [1], [0, 0, 1, 1], [], []>} : vector<64x16xbf16>, vector<16x64xbf16>, vector<64x64xf32> -> vector<64x64xf32>
    %203 = arith.addf %197, %202 : vector<64x64xf32>
    %204 = vector.extract_strided_slice %178 {offsets = [0, 0, 0], sizes = [8, 8, 16], strides = [1, 1, 1]} : vector<9x9x16xbf16> to vector<8x8x16xbf16>
    %205 = vector.shape_cast %204 : vector<8x8x16xbf16> to vector<64x16xbf16>
    %c4_156 = arith.constant 4 : index
    %c0_157 = arith.constant 0 : index
    %c0_158 = arith.constant 0 : index
    %206 = vector.load %arg7[%c4_156, %c0_157, %c0_158] : memref<8x16x64xbf16, #tpu.memory_space<vmem>>, vector<1x16x64xbf16>
    %207 = vector.shape_cast %206 : vector<1x16x64xbf16> to vector<16x64xbf16>
    %cst_159 = arith.constant dense<0.000000e+00> : vector<64x64xf32>
    %208 = tpu.matmul %205, %207, %cst_159 {dimension_numbers = #tpu.dot_dimension_numbers<[1], [0], [0], [1], [0, 0, 1, 1], [], []>} : vector<64x16xbf16>, vector<16x64xbf16>, vector<64x64xf32> -> vector<64x64xf32>
    %209 = arith.addf %203, %208 : vector<64x64xf32>
    %210 = vector.extract_strided_slice %178 {offsets = [0, 1, 0], sizes = [8, 8, 16], strides = [1, 1, 1]} : vector<9x9x16xbf16> to vector<8x8x16xbf16>
    %211 = vector.shape_cast %210 : vector<8x8x16xbf16> to vector<64x16xbf16>
    %c5_160 = arith.constant 5 : index
    %c0_161 = arith.constant 0 : index
    %c0_162 = arith.constant 0 : index
    %212 = vector.load %arg7[%c5_160, %c0_161, %c0_162] : memref<8x16x64xbf16, #tpu.memory_space<vmem>>, vector<1x16x64xbf16>
    %213 = vector.shape_cast %212 : vector<1x16x64xbf16> to vector<16x64xbf16>
    %cst_163 = arith.constant dense<0.000000e+00> : vector<64x64xf32>
    %214 = tpu.matmul %211, %213, %cst_163 {dimension_numbers = #tpu.dot_dimension_numbers<[1], [0], [0], [1], [0, 0, 1, 1], [], []>} : vector<64x16xbf16>, vector<16x64xbf16>, vector<64x64xf32> -> vector<64x64xf32>
    %215 = arith.addf %209, %214 : vector<64x64xf32>
    %216 = vector.extract_strided_slice %178 {offsets = [1, 0, 0], sizes = [8, 8, 16], strides = [1, 1, 1]} : vector<9x9x16xbf16> to vector<8x8x16xbf16>
    %217 = vector.shape_cast %216 : vector<8x8x16xbf16> to vector<64x16xbf16>
    %c6_164 = arith.constant 6 : index
    %c0_165 = arith.constant 0 : index
    %c0_166 = arith.constant 0 : index
    %218 = vector.load %arg7[%c6_164, %c0_165, %c0_166] : memref<8x16x64xbf16, #tpu.memory_space<vmem>>, vector<1x16x64xbf16>
    %219 = vector.shape_cast %218 : vector<1x16x64xbf16> to vector<16x64xbf16>
    %cst_167 = arith.constant dense<0.000000e+00> : vector<64x64xf32>
    %220 = tpu.matmul %217, %219, %cst_167 {dimension_numbers = #tpu.dot_dimension_numbers<[1], [0], [0], [1], [0, 0, 1, 1], [], []>} : vector<64x16xbf16>, vector<16x64xbf16>, vector<64x64xf32> -> vector<64x64xf32>
    %221 = arith.addf %215, %220 : vector<64x64xf32>
    %222 = vector.extract_strided_slice %178 {offsets = [1, 1, 0], sizes = [8, 8, 16], strides = [1, 1, 1]} : vector<9x9x16xbf16> to vector<8x8x16xbf16>
    %223 = vector.shape_cast %222 : vector<8x8x16xbf16> to vector<64x16xbf16>
    %c7_168 = arith.constant 7 : index
    %c0_169 = arith.constant 0 : index
    %c0_170 = arith.constant 0 : index
    %224 = vector.load %arg7[%c7_168, %c0_169, %c0_170] : memref<8x16x64xbf16, #tpu.memory_space<vmem>>, vector<1x16x64xbf16>
    %225 = vector.shape_cast %224 : vector<1x16x64xbf16> to vector<16x64xbf16>
    %cst_171 = arith.constant dense<0.000000e+00> : vector<64x64xf32>
    %226 = tpu.matmul %223, %225, %cst_171 {dimension_numbers = #tpu.dot_dimension_numbers<[1], [0], [0], [1], [0, 0, 1, 1], [], []>} : vector<64x16xbf16>, vector<16x64xbf16>, vector<64x64xf32> -> vector<64x64xf32>
    %227 = arith.addf %221, %226 : vector<64x64xf32>
    %228 = vector.broadcast %0 : vector<1x64xf32> to vector<64x64xf32>
    %229 = arith.addf %227, %228 : vector<64x64xf32>
    %cst_172 = arith.constant 0.000000e+00 : f32
    %230 = vector.broadcast %cst_172 : f32 to vector<64x64xf32>
    %231 = arith.maximumf %229, %230 : vector<64x64xf32>
    %c192 = arith.constant 192 : index
    %c0_173 = arith.constant 0 : index
    %232 = vector.load %arg9[%c192, %c0_173] : memref<256x64xf32, #tpu.memory_space<vmem>>, vector<64x64xf32>
    tpu.vector_store %arg9[%c192, %c0_173], %231 {strides = array<i32>} : memref<256x64xf32, #tpu.memory_space<vmem>>, vector<64x64xf32>,
    return
  }
  func.func @transform_0(%arg0: i32, %arg1: i32) -> (i32, i32, i32, i32, i32) {
    %c4_i32 = arith.constant 4 : i32
    %0 = arith.muli %arg1, %c4_i32 : i32
    %c0_i32 = arith.constant 0 : i32
    %1 = arith.addi %0, %c0_i32 : i32
    %c0_i32_0 = arith.constant 0 : i32
    %c0_i32_1 = arith.constant 0 : i32
    %c0_i32_2 = arith.constant 0 : i32
    %c0_i32_3 = arith.constant 0 : i32
    return %arg0, %1, %c0_i32_0, %c0_i32_1, %c0_i32_2 : i32, i32, i32, i32, i32
  }
  func.func @transform_1(%arg0: i32, %arg1: i32) -> (i32, i32, i32, i32, i32) {
    %c4_i32 = arith.constant 4 : i32
    %0 = arith.muli %arg1, %c4_i32 : i32
    %c1_i32 = arith.constant 1 : i32
    %1 = arith.addi %0, %c1_i32 : i32
    %c0_i32 = arith.constant 0 : i32
    %c0_i32_0 = arith.constant 0 : i32
    %c0_i32_1 = arith.constant 0 : i32
    %c0_i32_2 = arith.constant 0 : i32
    return %arg0, %1, %c0_i32, %c0_i32_0, %c0_i32_1 : i32, i32, i32, i32, i32
  }
  func.func @transform_2(%arg0: i32, %arg1: i32) -> (i32, i32, i32, i32, i32) {
    %c4_i32 = arith.constant 4 : i32
    %0 = arith.muli %arg1, %c4_i32 : i32
    %c2_i32 = arith.constant 2 : i32
    %1 = arith.addi %0, %c2_i32 : i32
    %c0_i32 = arith.constant 0 : i32
    %c0_i32_0 = arith.constant 0 : i32
    %c0_i32_1 = arith.constant 0 : i32
    %c0_i32_2 = arith.constant 0 : i32
    return %arg0, %1, %c0_i32, %c0_i32_0, %c0_i32_1 : i32, i32, i32, i32, i32
  }
  func.func @transform_3(%arg0: i32, %arg1: i32) -> (i32, i32, i32, i32, i32) {
    %c4_i32 = arith.constant 4 : i32
    %0 = arith.muli %arg1, %c4_i32 : i32
    %c3_i32 = arith.constant 3 : i32
    %1 = arith.addi %0, %c3_i32 : i32
    %c0_i32 = arith.constant 0 : i32
    %c0_i32_0 = arith.constant 0 : i32
    %c0_i32_1 = arith.constant 0 : i32
    %c0_i32_2 = arith.constant 0 : i32
    return %arg0, %1, %c0_i32, %c0_i32_0, %c0_i32_1 : i32, i32, i32, i32, i32
  }
  func.func @transform_4(%arg0: i32, %arg1: i32) -> (i32, i32, i32, i32, i32) {
    %c4_i32 = arith.constant 4 : i32
    %0 = arith.muli %arg1, %c4_i32 : i32
    %c4_i32_0 = arith.constant 4 : i32
    %1 = arith.addi %0, %c4_i32_0 : i32
    %c0_i32 = arith.constant 0 : i32
    %c0_i32_1 = arith.constant 0 : i32
    %c0_i32_2 = arith.constant 0 : i32
    %c0_i32_3 = arith.constant 0 : i32
    return %arg0, %1, %c0_i32, %c0_i32_1, %c0_i32_2 : i32, i32, i32, i32, i32
  }
  func.func @transform_5(%arg0: i32, %arg1: i32) -> (i32, i32, i32) {
    %c0_i32 = arith.constant 0 : i32
    %c0_i32_0 = arith.constant 0 : i32
    %c0_i32_1 = arith.constant 0 : i32
    %c0_i32_2 = arith.constant 0 : i32
    return %c0_i32, %c0_i32_0, %c0_i32_1 : i32, i32, i32
  }
  func.func @transform_6(%arg0: i32, %arg1: i32) -> (i32, i32) {
    %c0_i32 = arith.constant 0 : i32
    %c0_i32_0 = arith.constant 0 : i32
    %c0_i32_1 = arith.constant 0 : i32
    return %c0_i32, %c0_i32_0 : i32, i32
  }
  func.func @transform_7(%arg0: i32, %arg1: i32) -> (i32, i32) {
    %c1_i32 = arith.constant 1 : i32
    %0 = arith.muli %arg0, %c1_i32 : i32
    %1 = arith.addi %0, %arg1 : i32
    %c0_i32 = arith.constant 0 : i32
    %c0_i32_0 = arith.constant 0 : i32
    return %1, %c0_i32 : i32, i32
  }
}

</mosaic_0001>

<llo_original>
// kernel: a_call__.1
$region0: #{a_call__.1}
  #allocation0 [shape = 'u32[]', space=smem, size = 0x4, offset = 0x4, fixed_abs, tag = 'smem constant byte address 0x4 - core index']
  #allocation1 [shape = 'u32[72,128]{1,0:T(1,128)}', space=vmem, size = 0x9000, scoped, tag = 'internal scratch']
  %s0 = inlined_call_operand.vmem [shape: bf16[2,5,9,9,16], index: 0, kind: input, shape index: {}, may-alias: {0,1,2,3,4}]
  %s1 = inlined_call_operand.vmem [shape: bf16[2,5,9,9,16], index: 1, kind: input, shape index: {}, may-alias: {0,1,2,3,4}]
  %s2 = inlined_call_operand.vmem [shape: bf16[2,5,9,9,16], index: 2, kind: input, shape index: {}, may-alias: {0,1,2,3,4}]
  %s3 = inlined_call_operand.vmem [shape: bf16[2,5,9,9,16], index: 3, kind: input, shape index: {}, may-alias: {0,1,2,3,4}]
  %s4 = inlined_call_operand.vmem [shape: bf16[2,5,9,9,16], index: 4, kind: input, shape index: {}, may-alias: {0,1,2,3,4}]
  %s5 = inlined_call_operand.hbm [shape: bf16[8,16,64], index: 5, kind: input, shape index: {}]
  %s6 = inlined_call_operand.hbm [shape: f32[1,64], index: 6, kind: input, shape index: {}]
  %s7 = inlined_call_operand.vmem [shape: f32[512,64], index: 7, kind: output, shape index: {}]
  %s8 = sld [smem:[#allocation0]]
  $region69: #{a_call__.1} parent=0
    _
  %s10 = ssub.s32 1, %s8
  %s11 = scalar_select 0, %s10, %s8
  $region1: #{a_call__.1} parent=0
    #allocation2 [shape = 'u8[32768]{0}', space=vmem, size = 0x8000, scoped, tag = 'input window, operand 5, single buffered']
    #allocation3 [shape = 's32[2]{0}', space=sflag, size = 0x8, scoped, tag = 'scoped memory for a_call__.1']
    #allocation4 [shape = 'u8[512]{0}', space=vmem, size = 0x400, scoped, tag = 'input window, operand 6, single buffered']
    #allocation5 [shape = 's32[1]{0}', space=sflag, size = 0x4, scoped, tag = 'scoped memory for a_call__.1']
    %12 = vsyncpa [#allocation3], 0
    %13 = vsyncpa [#allocation5], 0
    loop: start=0, step=1, limit=4
    $region2: #{a_call__.1} parent=1 // loop_pre_header
      _
    $region3: #{a_call__.1} parent=1 // loop_header
      %s15 = sphi 0, %s19
      %p16 = scmp.ge.s32.totalorder %s15, 4
      %s22 = sphi 0, %s34
      %s23 = sphi 0, %s30
      %s24 = sphi 0, %s22
      %s25 = sphi 0, %s23
      %s26 = sphi 0, %s24
      %s27 = sphi 0, %s25
      %s41 = sphi 0, %s43
      %s44 = sphi 0, %s41
      %s45 = sphi 0, %s44
      %s61 = sphi 0, %s45
      %s73 = sphi 0, %s75
      %s76 = sphi 0, %s73
      %s77 = sphi 0, %s76
      %s93 = sphi 0, %s77
      %s105 = sphi 0, %s107
      %s108 = sphi 0, %s105
      %s109 = sphi 0, %s108
      %s125 = sphi 0, %s109
      %s137 = sphi 0, %s139
      %s140 = sphi 0, %s137
      %s141 = sphi 0, %s140
      %s157 = sphi 0, %s141
      %s169 = sphi 0, %s171
      %s172 = sphi 0, %s169
      %s173 = sphi 0, %s172
      %s189 = sphi 0, %s173
      %s193 = sphi 0, %s193
      %s195 = sphi 0, %s193
      %s196 = sphi 0, %s195
      %s210 = sphi 0, %s196
      %s214 = sphi 0, %s214
      %s216 = sphi 0, %s214
      %s217 = sphi 0, %s216
      %s231 = sphi 0, %s217
      %s239 = sphi 0, %s241
      %s242 = sphi 0, %s239
      %s243 = sphi 0, %s242
      %s259 = sphi 0, %s243
    $region4: #{a_call__.1} parent=1 // loop_header_branch
      %18 = sbr.rel (%p16) target = $region8
    $region5: #{a_call__.1} parent=1 // loop_body
      %s20 = ssub.s32 %s15, 1
      %s21 = ssub.s32 %s15, 2
      %s28 = sadd.s32 1, %s23
      %p29 = scmp.ge.s32.totalorder %s28, 1
      %s30 = scalar_select %p29, 0, %s28
      %s31 = sadd.s32 1, %s22
      %s32 = scalar_select %p29, %s31, %s22
      %p33 = scmp.ge.s32.totalorder %s32, 2
      %s34 = scalar_select %p33, 0, %s32
      %s35 = smul.u32 %s23, 4
      %s36 = smul.u32 %s30, 4
      %s37 = ssub.s32 %s22, %s34
      %s38 = ssub.s32 %s35, %s36
      %s39 = sor.u32 %s37, %s38
      %p40 = scmp.eq.s32.totalorder %s39, 0
      %s42 = sadd.s32 %s41, 1
      %s43 = scalar_select %p40, %s41, %s42
      %p46 = pneg %p40
      %p47 = scmp.eq.s32.totalorder %s15, 1
      %p48 = por %p46, %p47
      %p49 = scmp.ne.s32.totalorder %s41, %s44
      %p50 = scmp.eq.s32.totalorder %s15, 0
      %p51 = por %p49, %p50
      %p52 = scmp.ne.s32.totalorder %s41, %s44
      %p53 = scmp.eq.s32.totalorder %s20, 1
      %p54 = por %p52, %p53
      %p55 = scmp.ne.s32.totalorder %s44, %s45
      %p56 = scmp.eq.s32.totalorder %s20, 0
      %p57 = por %p55, %p56
      %p58 = scmp.ne.s32.totalorder %s44, %s45
      %p59 = scmp.eq.s32.totalorder %s21, 1
      %p60 = por %p58, %p59
      %p62 = scmp.ne.s32.totalorder %s45, %s61
      %p63 = scmp.eq.s32.totalorder %s21, 0
      %p64 = por %p62, %p63
      %s65 = smul.u32 %s23, 4
      %s66 = sadd.s32 %s65, 1
      %s67 = smul.u32 %s30, 4
      %s68 = sadd.s32 %s67, 1
      %s69 = ssub.s32 %s22, %s34
      %s70 = ssub.s32 %s66, %s68
      %s71 = sor.u32 %s69, %s70
      %p72 = scmp.eq.s32.totalorder %s71, 0
      %s74 = sadd.s32 %s73, 1
      %s75 = scalar_select %p72, %s73, %s74
      %p78 = pneg %p72
      %p79 = scmp.eq.s32.totalorder %s15, 1
      %p80 = por %p78, %p79
      %p81 = scmp.ne.s32.totalorder %s73, %s76
      %p82 = scmp.eq.s32.totalorder %s15, 0
      %p83 = por %p81, %p82
      %p84 = scmp.ne.s32.totalorder %s73, %s76
      %p85 = scmp.eq.s32.totalorder %s20, 1
      %p86 = por %p84, %p85
      %p87 = scmp.ne.s32.totalorder %s76, %s77
      %p88 = scmp.eq.s32.totalorder %s20, 0
      %p89 = por %p87, %p88
      %p90 = scmp.ne.s32.totalorder %s76, %s77
      %p91 = scmp.eq.s32.totalorder %s21, 1
      %p92 = por %p90, %p91
      %p94 = scmp.ne.s32.totalorder %s77, %s93
      %p95 = scmp.eq.s32.totalorder %s21, 0
      %p96 = por %p94, %p95
      %s97 = smul.u32 %s23, 4
      %s98 = sadd.s32 %s97, 2
      %s99 = smul.u32 %s30, 4
      %s100 = sadd.s32 %s99, 2
      %s101 = ssub.s32 %s22, %s34
      %s102 = ssub.s32 %s98, %s100
      %s103 = sor.u32 %s101, %s102
      %p104 = scmp.eq.s32.totalorder %s103, 0
      %s106 = sadd.s32 %s105, 1
      %s107 = scalar_select %p104, %s105, %s106
      %p110 = pneg %p104
      %p111 = scmp.eq.s32.totalorder %s15, 1
      %p112 = por %p110, %p111
      %p113 = scmp.ne.s32.totalorder %s105, %s108
      %p114 = scmp.eq.s32.totalorder %s15, 0
      %p115 = por %p113, %p114
      %p116 = scmp.ne.s32.totalorder %s105, %s108
      %p117 = scmp.eq.s32.totalorder %s20, 1
      %p118 = por %p116, %p117
      %p119 = scmp.ne.s32.totalorder %s108, %s109
      %p120 = scmp.eq.s32.totalorder %s20, 0
      %p121 = por %p119, %p120
      %p122 = scmp.ne.s32.totalorder %s108, %s109
      %p123 = scmp.eq.s32.totalorder %s21, 1
      %p124 = por %p122, %p123
      %p126 = scmp.ne.s32.totalorder %s109, %s125
      %p127 = scmp.eq.s32.totalorder %s21, 0
      %p128 = por %p126, %p127
      %s129 = smul.u32 %s23, 4
      %s130 = sadd.s32 %s129, 3
      %s131 = smul.u32 %s30, 4
      %s132 = sadd.s32 %s131, 3
      %s133 = ssub.s32 %s22, %s34
      %s134 = ssub.s32 %s130, %s132
      %s135 = sor.u32 %s133, %s134
      %p136 = scmp.eq.s32.totalorder %s135, 0
      %s138 = sadd.s32 %s137, 1
      %s139 = scalar_select %p136, %s137, %s138
      %p142 = pneg %p136
      %p143 = scmp.eq.s32.totalorder %s15, 1
      %p144 = por %p142, %p143
      %p145 = scmp.ne.s32.totalorder %s137, %s140
      %p146 = scmp.eq.s32.totalorder %s15, 0
      %p147 = por %p145, %p146
      %p148 = scmp.ne.s32.totalorder %s137, %s140
      %p149 = scmp.eq.s32.totalorder %s20, 1
      %p150 = por %p148, %p149
      %p151 = scmp.ne.s32.totalorder %s140, %s141
      %p152 = scmp.eq.s32.totalorder %s20, 0
      %p153 = por %p151, %p152
      %p154 = scmp.ne.s32.totalorder %s140, %s141
      %p155 = scmp.eq.s32.totalorder %s21, 1
      %p156 = por %p154, %p155
      %p158 = scmp.ne.s32.totalorder %s141, %s157
      %p159 = scmp.eq.s32.totalorder %s21, 0
      %p160 = por %p158, %p159
      %s161 = smul.u32 %s23, 4
      %s162 = sadd.s32 %s161, 4
      %s163 = smul.u32 %s30, 4
      %s164 = sadd.s32 %s163, 4
      %s165 = ssub.s32 %s22, %s34
      %s166 = ssub.s32 %s162, %s164
      %s167 = sor.u32 %s165, %s166
      %p168 = scmp.eq.s32.totalorder %s167, 0
      %s170 = sadd.s32 %s169, 1
      %s171 = scalar_select %p168, %s169, %s170
      %p174 = pneg %p168
      %p175 = scmp.eq.s32.totalorder %s15, 1
      %p176 = por %p174, %p175
      %p177 = scmp.ne.s32.totalorder %s169, %s172
      %p178 = scmp.eq.s32.totalorder %s15, 0
      %p179 = por %p177, %p178
      %p180 = scmp.ne.s32.totalorder %s169, %s172
      %p181 = scmp.eq.s32.totalorder %s20, 1
      %p182 = por %p180, %p181
      %p183 = scmp.ne.s32.totalorder %s172, %s173
      %p184 = scmp.eq.s32.totalorder %s20, 0
      %p185 = por %p183, %p184
      %p186 = scmp.ne.s32.totalorder %s172, %s173
      %p187 = scmp.eq.s32.totalorder %s21, 1
      %p188 = por %p186, %p187
      %p190 = scmp.ne.s32.totalorder %s173, %s189
      %p191 = scmp.eq.s32.totalorder %s21, 0
      %p192 = por %p190, %p191
      %s194 = sadd.s32 %s193, 1
      %p197 = scmp.eq.s32.totalorder %s15, 1
      %p198 = scmp.ne.s32.totalorder %s193, %s195
      %p199 = scmp.eq.s32.totalorder %s15, 0
      %p200 = por %p198, %p199
      %p201 = scmp.ne.s32.totalorder %s193, %s195
      %p202 = scmp.eq.s32.totalorder %s20, 1
      %p203 = por %p201, %p202
      %p204 = scmp.ne.s32.totalorder %s195, %s196
      %p205 = scmp.eq.s32.totalorder %s20, 0
      %p206 = por %p204, %p205
      %p207 = scmp.ne.s32.totalorder %s195, %s196
      %p208 = scmp.eq.s32.totalorder %s21, 1
      %p209 = por %p207, %p208
      %p211 = scmp.ne.s32.totalorder %s196, %s210
      %p212 = scmp.eq.s32.totalorder %s21, 0
      %p213 = por %p211, %p212
      %s215 = sadd.s32 %s214, 1
      %p218 = scmp.eq.s32.totalorder %s15, 1
      %p219 = scmp.ne.s32.totalorder %s214, %s216
      %p220 = scmp.eq.s32.totalorder %s15, 0
      %p221 = por %p219, %p220
      %p222 = scmp.ne.s32.totalorder %s214, %s216
      %p223 = scmp.eq.s32.totalorder %s20, 1
      %p224 = por %p222, %p223
      %p225 = scmp.ne.s32.totalorder %s216, %s217
      %p226 = scmp.eq.s32.totalorder %s20, 0
      %p227 = por %p225, %p226
      %p228 = scmp.ne.s32.totalorder %s216, %s217
      %p229 = scmp.eq.s32.totalorder %s21, 1
      %p230 = por %p228, %p229
      %p232 = scmp.ne.s32.totalorder %s217, %s231
      %p233 = scmp.eq.s32.totalorder %s21, 0
      %p234 = por %p232, %p233
      %s235 = sadd.s32 %s22, %s23
      %s236 = sadd.s32 %s34, %s30
      %s237 = ssub.s32 %s235, %s236
      %p238 = scmp.eq.s32.totalorder %s237, 0
      %s240 = sadd.s32 %s239, 1
      %s241 = scalar_select %p238, %s239, %s240
      %p244 = pneg %p238
      %p245 = scmp.eq.s32.totalorder %s15, 1
      %p246 = por %p244, %p245
      %p247 = scmp.ne.s32.totalorder %s239, %s242
      %p248 = scmp.eq.s32.totalorder %s15, 0
      %p249 = por %p247, %p248
      %p250 = scmp.ne.s32.totalorder %s239, %s242
      %p251 = scmp.eq.s32.totalorder %s20, 1
      %p252 = por %p250, %p251
      %p253 = scmp.ne.s32.totalorder %s242, %s243
      %p254 = scmp.eq.s32.totalorder %s20, 0
      %p255 = por %p253, %p254
      %p256 = scmp.ne.s32.totalorder %s242, %s243
      %p257 = scmp.eq.s32.totalorder %s21, 1
      %p258 = por %p256, %p257
      %p260 = scmp.ne.s32.totalorder %s243, %s259
      %p261 = scmp.eq.s32.totalorder %s21, 0
      %p262 = por %p260, %p261
      %p263 = scmp.le.s32.totalorder 1, %s15
      %p264 = scmp.lt.s32.totalorder %s15, 3
      %p265 = pnand %p263, %p264
      %p266 = pneg %p265
      // Predicated region
      $region9: #{a_call__.1} parent=5 // pred_check
        _
      $region10: #{a_call__.1} parent=5 // pred_check_branch
        %268 = sbr.rel (%p265) target = $region12
      $region11: #{a_call__.1} parent=5 // pred_region
        %s269 = ssub.s32 %s15, 1
        // Predicated region
        $region13: #{a_call__.1} parent=11 // pred_check
          %p270 = pneg %p206
        $region14: #{a_call__.1} parent=11 // pred_check_branch
          %272 = sbr.rel (%p270) target = $region16
        $region15: #{a_call__.1} parent=11 // pred_region
          %274 = vsyncadd [#allocation3], 0
          %s275 = sshll.u32 %s5, 4
          %s276 = int_to_ptr.hbm [resolvable:$true] %s275
          %s277 = sshll.u32 [#allocation2], 4
          %s278 = int_to_ptr.vmem [resolvable:$true] %s277
          %283 = dma.hbm_to_vmem [thread:$0]  %s276, 1024, %s278, [#allocation3], 64, 64, 4
        $region16: #{a_call__.1} parent=11 // pred_fallthru
          _
        // Predicated region
        $region17: #{a_call__.1} parent=11 // pred_check
          %p284 = pneg %p227
        $region18: #{a_call__.1} parent=11 // pred_check_branch
          %286 = sbr.rel (%p284) target = $region20
        $region19: #{a_call__.1} parent=11 // pred_region
          %288 = vsyncadd [#allocation5], 0
          %s290 = sshll.u32 %s6, 4
          %s291 = int_to_ptr.hbm [resolvable:$true] %s290
          %s292 = sshll.u32 [#allocation4], 4
          %s293 = int_to_ptr.vmem [resolvable:$true] %s292
          %295 = dma.hbm_to_vmem [thread:$0]  %s291, 16, %s293, [#allocation5]
        $region20: #{a_call__.1} parent=11 // pred_fallthru
          _
      $region12: #{a_call__.1} parent=5 // pred_fallthru
        _
      %p296 = scmp.lt.s32.totalorder %s15, 2
      // Predicated region
      $region21: #{a_call__.1} parent=5 // pred_check
        %p297 = pneg %p296
      $region22: #{a_call__.1} parent=5 // pred_check_branch
        %299 = sbr.rel (%p297) target = $region24
      $region23: #{a_call__.1} parent=5 // pred_region
        // Predicated region
        $region25: #{a_call__.1} parent=23 // pred_check
          %p300 = pneg %p51
        $region26: #{a_call__.1} parent=23 // pred_check_branch
          %302 = sbr.rel (%p300) target = $region28
        $region27: #{a_call__.1} parent=23 // pred_region
          %s303 = smul.u32 %s23, 4
          %p304 = scmp.lt.s32.totalorder %s22, 1
          %s305 = scalar_select %p304, %s22, 1
          %p306 = scmp.lt.s32.totalorder %s303, 4
          %s307 = scalar_select %p306, %s303, 4
          %s308 = smul.addr %s307, 18
          %s309 = smul.addr %s305, 90
          %s310 = sadd.s32 %s308, %s309
          %s311 = smul.addr %s310, 4
          %s312 = scalar_lea.vmem %s0, %s311
          %s313 = smul.u32 %s23, 4
        $region28: #{a_call__.1} parent=23 // pred_fallthru
          _
        // Predicated region
        $region29: #{a_call__.1} parent=23 // pred_check
          %p314 = pneg %p83
        $region30: #{a_call__.1} parent=23 // pred_check_branch
          %316 = sbr.rel (%p314) target = $region32
        $region31: #{a_call__.1} parent=23 // pred_region
          %s317 = smul.u32 %s23, 4
          %s318 = sadd.s32 %s317, 1
          %p319 = scmp.lt.s32.totalorder %s22, 1
          %s320 = scalar_select %p319, %s22, 1
          %p321 = scmp.lt.s32.totalorder %s318, 4
          %s322 = scalar_select %p321, %s318, 4
          %s323 = smul.addr %s322, 18
          %s324 = smul.addr %s320, 90
          %s325 = sadd.s32 %s323, %s324
          %s326 = smul.addr %s325, 4
          %s327 = scalar_lea.vmem %s1, %s326
          %s328 = smul.u32 %s23, 4
          %s329 = sadd.s32 %s328, 1
        $region32: #{a_call__.1} parent=23 // pred_fallthru
          _
        // Predicated region
        $region33: #{a_call__.1} parent=23 // pred_check
          %p330 = pneg %p115
        $region34: #{a_call__.1} parent=23 // pred_check_branch
          %332 = sbr.rel (%p330) target = $region36
        $region35: #{a_call__.1} parent=23 // pred_region
          %s333 = smul.u32 %s23, 4
          %s334 = sadd.s32 %s333, 2
          %p335 = scmp.lt.s32.totalorder %s22, 1
          %s336 = scalar_select %p335, %s22, 1
          %p337 = scmp.lt.s32.totalorder %s334, 4
          %s338 = scalar_select %p337, %s334, 4
          %s339 = smul.addr %s338, 18
          %s340 = smul.addr %s336, 90
          %s341 = sadd.s32 %s339, %s340
          %s342 = smul.addr %s341, 4
          %s343 = scalar_lea.vmem %s2, %s342
          %s344 = smul.u32 %s23, 4
          %s345 = sadd.s32 %s344, 2
        $region36: #{a_call__.1} parent=23 // pred_fallthru
          _
        // Predicated region
        $region37: #{a_call__.1} parent=23 // pred_check
          %p346 = pneg %p147
        $region38: #{a_call__.1} parent=23 // pred_check_branch
          %348 = sbr.rel (%p346) target = $region40
        $region39: #{a_call__.1} parent=23 // pred_region
          %s349 = smul.u32 %s23, 4
          %s350 = sadd.s32 %s349, 3
          %p351 = scmp.lt.s32.totalorder %s22, 1
          %s352 = scalar_select %p351, %s22, 1
          %p353 = scmp.lt.s32.totalorder %s350, 4
          %s354 = scalar_select %p353, %s350, 4
          %s355 = smul.addr %s354, 18
          %s356 = smul.addr %s352, 90
          %s357 = sadd.s32 %s355, %s356
          %s358 = smul.addr %s357, 4
          %s359 = scalar_lea.vmem %s3, %s358
          %s360 = smul.u32 %s23, 4
          %s361 = sadd.s32 %s360, 3
        $region40: #{a_call__.1} parent=23 // pred_fallthru
          _
        // Predicated region
        $region41: #{a_call__.1} parent=23 // pred_check
          %p362 = pneg %p179
        $region42: #{a_call__.1} parent=23 // pred_check_branch
          %364 = sbr.rel (%p362) target = $region44
        $region43: #{a_call__.1} parent=23 // pred_region
          %s365 = smul.u32 %s23, 4
          %s366 = sadd.s32 %s365, 4
          %p367 = scmp.lt.s32.totalorder %s22, 1
          %s368 = scalar_select %p367, %s22, 1
          %p369 = scmp.lt.s32.totalorder %s366, 4
          %s370 = scalar_select %p369, %s366, 4
          %s371 = smul.addr %s370, 18
          %s372 = smul.addr %s368, 90
          %s373 = sadd.s32 %s371, %s372
          %s374 = smul.addr %s373, 4
          %s375 = scalar_lea.vmem %s4, %s374
          %s376 = smul.u32 %s23, 4
          %s377 = sadd.s32 %s376, 4
        $region44: #{a_call__.1} parent=23 // pred_fallthru
          _
      $region24: #{a_call__.1} parent=5 // pred_fallthru
        _
      %p378 = scmp.le.s32.totalorder 1, %s15
      %p379 = scmp.lt.s32.totalorder %s15, 3
      %p380 = pnand %p378, %p379
      %p381 = pneg %p380
      // Predicated region
      $region45: #{a_call__.1} parent=5 // pred_check
        _
      $region46: #{a_call__.1} parent=5 // pred_check_branch
        %383 = sbr.rel (%p380) target = $region48
      $region47: #{a_call__.1} parent=5 // pred_region
        %s384 = ssub.s32 %s15, 1
        // Predicated region
        $region49: #{a_call__.1} parent=47 // pred_check
          %p385 = pneg %p206
        $region50: #{a_call__.1} parent=47 // pred_check_branch
          %387 = sbr.rel (%p385) target = $region52
        $region51: #{a_call__.1} parent=47 // pred_region
          %389 = dma.done [#allocation3], 1024
        $region52: #{a_call__.1} parent=47 // pred_fallthru
          _
        // Predicated region
        $region53: #{a_call__.1} parent=47 // pred_check
          %p390 = pneg %p227
        $region54: #{a_call__.1} parent=47 // pred_check_branch
          %392 = sbr.rel (%p390) target = $region56
        $region55: #{a_call__.1} parent=47 // pred_region
          %394 = dma.done [#allocation5], 16
        $region56: #{a_call__.1} parent=47 // pred_fallthru
          _
        %s395 = smul.u32 %s25, 4
        %p396 = scmp.lt.s32.totalorder %s24, 1
        %s397 = scalar_select %p396, %s24, 1
        %p398 = scmp.lt.s32.totalorder %s395, 4
        %s399 = scalar_select %p398, %s395, 4
        %s400 = smul.addr %s399, 18
        %s401 = smul.addr %s397, 90
        %s402 = sadd.s32 %s400, %s401
        %s403 = smul.addr %s402, 4
        %s404 = scalar_lea.vmem %s0, %s403
        %p405 = pneg %p57
        %p406 = pneg %p54
        %s407 = smul.u32 %s25, 4
        %s408 = sadd.s32 %s407, 1
        %p409 = scmp.lt.s32.totalorder %s24, 1
        %s410 = scalar_select %p409, %s24, 1
        %p411 = scmp.lt.s32.totalorder %s408, 4
        %s412 = scalar_select %p411, %s408, 4
        %s413 = smul.addr %s412, 18
        %s414 = smul.addr %s410, 90
        %s415 = sadd.s32 %s413, %s414
        %s416 = smul.addr %s415, 4
        %s417 = scalar_lea.vmem %s1, %s416
        %p418 = pneg %p89
        %p419 = pneg %p86
        %s420 = smul.u32 %s25, 4
        %s421 = sadd.s32 %s420, 2
        %p422 = scmp.lt.s32.totalorder %s24, 1
        %s423 = scalar_select %p422, %s24, 1
        %p424 = scmp.lt.s32.totalorder %s421, 4
        %s425 = scalar_select %p424, %s421, 4
        %s426 = smul.addr %s425, 18
        %s427 = smul.addr %s423, 90
        %s428 = sadd.s32 %s426, %s427
        %s429 = smul.addr %s428, 4
        %s430 = scalar_lea.vmem %s2, %s429
        %p431 = pneg %p121
        %p432 = pneg %p118
        %s433 = smul.u32 %s25, 4
        %s434 = sadd.s32 %s433, 3
        %p435 = scmp.lt.s32.totalorder %s24, 1
        %s436 = scalar_select %p435, %s24, 1
        %p437 = scmp.lt.s32.totalorder %s434, 4
        %s438 = scalar_select %p437, %s434, 4
        %s439 = smul.addr %s438, 18
        %s440 = smul.addr %s436, 90
        %s441 = sadd.s32 %s439, %s440
        %s442 = smul.addr %s441, 4
        %s443 = scalar_lea.vmem %s3, %s442
        %p444 = pneg %p153
        %p445 = pneg %p150
        %s446 = smul.u32 %s25, 4
        %s447 = sadd.s32 %s446, 4
        %p448 = scmp.lt.s32.totalorder %s24, 1
        %s449 = scalar_select %p448, %s24, 1
        %p450 = scmp.lt.s32.totalorder %s447, 4
        %s451 = scalar_select %p450, %s447, 4
        %s452 = smul.addr %s451, 18
        %s453 = smul.addr %s449, 90
        %s454 = sadd.s32 %s452, %s453
        %s455 = smul.addr %s454, 4
        %s456 = scalar_lea.vmem %s4, %s455
        %p457 = pneg %p185
        %p458 = pneg %p182
        %p459 = pneg %p206
        %p460 = pneg %p203
        %p461 = pneg %p227
        %p462 = pneg %p224
        %p463 = pneg %p255
        %p464 = pneg %p252
        %s465 = sadd.s32 %s24, %s25
        %s466 = smul.u32 32, %s465
        %p467 = scmp.lt.s32.totalorder %s466, 63
        %s468 = scalar_select %p467, %s466, 63
        %s469 = smul.addr %s468, 8
        %s470 = scalar_lea.vmem %s7, %s469
        %s471 = smul.u32 %s25, 4
        %p472 = scmp.lt.s32.totalorder %s24, 1
        %s473 = scalar_select %p472, %s24, 1
        %p474 = scmp.lt.s32.totalorder %s471, 4
        %s475 = scalar_select %p474, %s471, 4
        %s476 = smul.addr %s475, 18
        %s477 = smul.addr %s473, 90
        %s478 = sadd.s32 %s476, %s477
        %s479 = smul.addr %s478, 4
        %s480 = scalar_lea.vmem %s0, %s479
        %s481 = smul.u32 %s25, 4
        %s482 = smul.u32 %s25, 4
        %s483 = sadd.s32 %s482, 1
        %p484 = scmp.lt.s32.totalorder %s24, 1
        %s485 = scalar_select %p484, %s24, 1
        %p486 = scmp.lt.s32.totalorder %s483, 4
        %s487 = scalar_select %p486, %s483, 4
        %s488 = smul.addr %s487, 18
        %s489 = smul.addr %s485, 90
        %s490 = sadd.s32 %s488, %s489
        %s491 = smul.addr %s490, 4
        %s492 = scalar_lea.vmem %s1, %s491
        %s493 = smul.u32 %s25, 4
        %s494 = sadd.s32 %s493, 1
        %s495 = smul.u32 %s25, 4
        %s496 = sadd.s32 %s495, 2
        %p497 = scmp.lt.s32.totalorder %s24, 1
        %s498 = scalar_select %p497, %s24, 1
        %p499 = scmp.lt.s32.totalorder %s496, 4
        %s500 = scalar_select %p499, %s496, 4
        %s501 = smul.addr %s500, 18
        %s502 = smul.addr %s498, 90
        %s503 = sadd.s32 %s501, %s502
        %s504 = smul.addr %s503, 4
        %s505 = scalar_lea.vmem %s2, %s504
        %s506 = smul.u32 %s25, 4
        %s507 = sadd.s32 %s506, 2
        %s508 = smul.u32 %s25, 4
        %s509 = sadd.s32 %s508, 3
        %p510 = scmp.lt.s32.totalorder %s24, 1
        %s511 = scalar_select %p510, %s24, 1
        %p512 = scmp.lt.s32.totalorder %s509, 4
        %s513 = scalar_select %p512, %s509, 4
        %s514 = smul.addr %s513, 18
        %s515 = smul.addr %s511, 90
        %s516 = sadd.s32 %s514, %s515
        %s517 = smul.addr %s516, 4
        %s518 = scalar_lea.vmem %s3, %s517
        %s519 = smul.u32 %s25, 4
        %s520 = sadd.s32 %s519, 3
        %s521 = smul.u32 %s25, 4
        %s522 = sadd.s32 %s521, 4
        %p523 = scmp.lt.s32.totalorder %s24, 1
        %s524 = scalar_select %p523, %s24, 1
        %p525 = scmp.lt.s32.totalorder %s522, 4
        %s526 = scalar_select %p525, %s522, 4
        %s527 = smul.addr %s526, 18
        %s528 = smul.addr %s524, 90
        %s529 = sadd.s32 %s527, %s528
        %s530 = smul.addr %s529, 4
        %s531 = scalar_lea.vmem %s4, %s530
        %s532 = smul.u32 %s25, 4
        %s533 = sadd.s32 %s532, 4
        %s534 = sadd.s32 %s24, %s25
        %s535 = smul.u32 32, %s534
        %p536 = scmp.lt.s32.totalorder %s535, 63
        %s537 = scalar_select %p536, %s535, 63
        %s538 = smul.addr %s537, 8
        %s539 = scalar_lea.vmem %s7, %s538
        %s540 = sadd.s32 %s24, %s25
        %s541 = smul.u32 32, %s540
        %v543 = vld [vmem:[#allocation4] sm:$0x1]
        %v544 = vld [vmem:[%s480] sm:$0xf]
        %v545 = vld [vmem:[%s480 + $0x4] sm:$0x1]
        %v546 = vld [vmem:[%s480 + $0x8] sm:$0xf]
        %v547 = vld [vmem:[%s480 + $0xc] sm:$0x1]
        %v548 = vld [vmem:[%s480 + $0x10] sm:$0xf]
        %v549 = vld [vmem:[%s480 + $0x14] sm:$0x1]
        %v550 = vld [vmem:[%s480 + $0x18] sm:$0xf]
        %v551 = vld [vmem:[%s480 + $0x1c] sm:$0x1]
        %v552 = vld [vmem:[%s480 + $0x20] sm:$0xf]
        %v553 = vld [vmem:[%s480 + $0x24] sm:$0x1]
        %v554 = vld [vmem:[%s480 + $0x28] sm:$0xf]
        %v555 = vld [vmem:[%s480 + $0x2c] sm:$0x1]
        %v556 = vld [vmem:[%s480 + $0x30] sm:$0xf]
        %v557 = vld [vmem:[%s480 + $0x34] sm:$0x1]
        %v558 = vld [vmem:[%s480 + $0x38] sm:$0xf]
        %v559 = vld [vmem:[%s480 + $0x3c] sm:$0x1]
        %v560 = vld [vmem:[%s480 + $0x40] sm:$0xf]
        %v561 = vld [vmem:[%s480 + $0x44] sm:$0x1]
        %v562 = vld [vmem:[%s492] sm:$0xf]
        %v563 = vld [vmem:[%s492 + $0x4] sm:$0x1]
        %v564 = vld [vmem:[%s492 + $0x8] sm:$0xf]
        %v565 = vld [vmem:[%s492 + $0xc] sm:$0x1]
        %v566 = vld [vmem:[%s492 + $0x10] sm:$0xf]
        %v567 = vld [vmem:[%s492 + $0x14] sm:$0x1]
        %v568 = vld [vmem:[%s492 + $0x18] sm:$0xf]
        %v569 = vld [vmem:[%s492 + $0x1c] sm:$0x1]
        %v570 = vld [vmem:[%s492 + $0x20] sm:$0xf]
        %v571 = vld [vmem:[%s492 + $0x24] sm:$0x1]
        %v572 = vld [vmem:[%s492 + $0x28] sm:$0xf]
        %v573 = vld [vmem:[%s492 + $0x2c] sm:$0x1]
        %v574 = vld [vmem:[%s492 + $0x30] sm:$0xf]
        %v575 = vld [vmem:[%s492 + $0x34] sm:$0x1]
        %v576 = vld [vmem:[%s492 + $0x38] sm:$0xf]
        %v577 = vld [vmem:[%s492 + $0x3c] sm:$0x1]
        %v578 = vld [vmem:[%s492 + $0x40] sm:$0xf]
        %v579 = vld [vmem:[%s492 + $0x44] sm:$0x1]
        %v580 = vld [vmem:[#allocation2] sm:$0xf]
        %v581 = vld [vmem:[#allocation2 + $0x4] sm:$0xf]
        %vm582 = vsmask.f32 3328
        %vm583 = vsmask.f32 7440
        %vm584 = vmor %vm582, %vm583
        %v586 = vshrl.u32 %v544, 16
        %v588 = vrot.slane %v586, 4
        %v589 = vshll.u32 %v544, 16
        %v591 = vrot.slane %v589, 5
        %v592 = vor.u32 %v588, %v591
        %v593 = vrot.slane %v592, 4
        %v595 = vshll.u32 %v545, 16
        %v597 = vrot.slane %v595, 5
        %v598 = vsel %vm584, %v593, %v597
        %v600 = vshrl.u32 %v546, 16
        %v602 = vrot.slane %v600, 4
        %v603 = vshll.u32 %v546, 16
        %v605 = vrot.slane %v603, 5
        %v606 = vor.u32 %v602, %v605
        %v607 = vrot.slane %v606, 4
        %v609 = vshll.u32 %v547, 16
        %v611 = vrot.slane %v609, 5
        %v612 = vsel %vm584, %v607, %v611
        %v614 = vshrl.u32 %v548, 16
        %v616 = vrot.slane %v614, 4
        %v617 = vshll.u32 %v548, 16
        %v619 = vrot.slane %v617, 5
        %v620 = vor.u32 %v616, %v619
        %v621 = vrot.slane %v620, 4
        %v623 = vshll.u32 %v549, 16
        %v625 = vrot.slane %v623, 5
        %v626 = vsel %vm584, %v621, %v625
        %v628 = vshrl.u32 %v550, 16
        %v630 = vrot.slane %v628, 4
        %v631 = vshll.u32 %v550, 16
        %v633 = vrot.slane %v631, 5
        %v634 = vor.u32 %v630, %v633
        %v635 = vrot.slane %v634, 4
        %v637 = vshll.u32 %v551, 16
        %v639 = vrot.slane %v637, 5
        %v640 = vsel %vm584, %v635, %v639
        %v642 = vshrl.u32 %v552, 16
        %v644 = vrot.slane %v642, 4
        %v645 = vshll.u32 %v552, 16
        %v647 = vrot.slane %v645, 5
        %v648 = vor.u32 %v644, %v647
        %v649 = vrot.slane %v648, 4
        %v651 = vshll.u32 %v553, 16
        %v653 = vrot.slane %v651, 5
        %v654 = vsel %vm584, %v649, %v653
        %v656 = vshrl.u32 %v554, 16
        %v658 = vrot.slane %v656, 4
        %v659 = vshll.u32 %v554, 16
        %v661 = vrot.slane %v659, 5
        %v662 = vor.u32 %v658, %v661
        %v663 = vrot.slane %v662, 4
        %v665 = vshll.u32 %v555, 16
        %v667 = vrot.slane %v665, 5
        %v668 = vsel %vm584, %v663, %v667
        %v670 = vshrl.u32 %v556, 16
        %v672 = vrot.slane %v670, 4
        %v673 = vshll.u32 %v556, 16
        %v675 = vrot.slane %v673, 5
        %v676 = vor.u32 %v672, %v675
        %v677 = vrot.slane %v676, 4
        %v679 = vshll.u32 %v557, 16
        %v681 = vrot.slane %v679, 5
        %v682 = vsel %vm584, %v677, %v681
        %v684 = vshrl.u32 %v558, 16
        %v686 = vrot.slane %v684, 4
        %v687 = vshll.u32 %v558, 16
        %v689 = vrot.slane %v687, 5
        %v690 = vor.u32 %v686, %v689
        %v691 = vrot.slane %v690, 4
        %v693 = vshll.u32 %v559, 16
        %v695 = vrot.slane %v693, 5
        %v696 = vsel %vm584, %v691, %v695
        %s697 = scalar_lea.vmem [#allocation2], 8
        %v698 = vld [vmem:[%s697] sm:$0xf]
        %v699 = vld [vmem:[%s697 + $0x4] sm:$0xf]
        %v700 = vunpack.c.l.b16 %v598
        %v701 = vunpack.c.l.b16 %v612
        %v702 = vunpack.c.l.b16 %v626
        %v703 = vunpack.c.l.b16 %v640
        %v704 = vunpack.c.l.b16 %v654
        %v705 = vunpack.c.l.b16 %v668
        %v706 = vunpack.c.l.b16 %v682
        %v707 = vunpack.c.l.b16 %v696
        %v708 = vpack.c.b16 %v701, %v700
        %v709 = vpack.c.b16 %v703, %v702
        %v710 = vpack.c.b16 %v705, %v704
        %v711 = vpack.c.b16 %v707, %v706
        %v714 = vunpack.c.l.b16 %v698
        %v715 = vunpack.c.l.b16 %v699
        %v716 = vpack.c.b16 %v715, %v714
        %vm718 = vcmask 130048
        %v720 = vsel %vm718, %v708, 0
        %v723 = vsel %vm718, %v709, 0
        %v726 = vsel %vm718, %v710, 0
        %v729 = vsel %vm718, %v711, 0
        %731 = vmatpush.bf16.msra.mxu0 0
        %732 = vmatpush.bf16.msra.mxu0 0
        %733 = vmatpush.bf16.msra.mxu0 0
        %734 = vmatpush.bf16.msra.mxu0 0
        %735 = vmatpush.bf16.msra.mxu0 0
        %736 = vmatpush.bf16.msra.mxu0 0
        %737 = vmatpush.bf16.msra.mxu0 0
        %738 = vmatpush.bf16.msra.mxu0 %v716
        %739 = vmatmul.bf16.gmra.mxu0 %v720
        %v740 = vpop.f32.mrf.mxu0
        %v741 = vadd.f32 0.0, %v740
        %v742 = vpop.f32.mrf.mxu0
        %v743 = vadd.f32 0.0, %v742
        %744 = vmatmul.bf16.gmra.mxu0 %v723
        %v745 = vpop.f32.mrf.mxu0
        %v746 = vadd.f32 0.0, %v745
        %v747 = vpop.f32.mrf.mxu0
        %v748 = vadd.f32 0.0, %v747
        %749 = vmatmul.bf16.gmra.mxu0 %v726
        %v750 = vpop.f32.mrf.mxu0
        %v751 = vadd.f32 0.0, %v750
        %v752 = vpop.f32.mrf.mxu0
        %v753 = vadd.f32 0.0, %v752
        %754 = vmatmul.bf16.gmra.mxu0 %v729
        %v755 = vpop.f32.mrf.mxu0
        %v756 = vadd.f32 0.0, %v755
        %v757 = vpop.f32.mrf.mxu0
        %v758 = vadd.f32 0.0, %v757
        %759 = vdwg.mxu0
        %v768 = vunpack.c.l.b16 %v544
        %v769 = vunpack.c.l.b16 %v546
        %v770 = vunpack.c.l.b16 %v548
        %v771 = vunpack.c.l.b16 %v550
        %v772 = vunpack.c.l.b16 %v552
        %v773 = vunpack.c.l.b16 %v554
        %v774 = vunpack.c.l.b16 %v556
        %v775 = vunpack.c.l.b16 %v558
        %v776 = vpack.c.b16 %v769, %v768
        %v777 = vpack.c.b16 %v771, %v770
        %v778 = vpack.c.b16 %v773, %v772
        %v779 = vpack.c.b16 %v775, %v774
        %v782 = vunpack.c.l.b16 %v580
        %v783 = vunpack.c.l.b16 %v581
        %v784 = vpack.c.b16 %v783, %v782
        %v787 = vsel %vm718, %v776, 0
        %v790 = vsel %vm718, %v777, 0
        %v793 = vsel %vm718, %v778, 0
        %v796 = vsel %vm718, %v779, 0
        %798 = vmatpush.bf16.msra.mxu0 0
        %799 = vmatpush.bf16.msra.mxu0 0
        %800 = vmatpush.bf16.msra.mxu0 0
        %801 = vmatpush.bf16.msra.mxu0 0
        %802 = vmatpush.bf16.msra.mxu0 0
        %803 = vmatpush.bf16.msra.mxu0 0
        %804 = vmatpush.bf16.msra.mxu0 0
        %805 = vmatpush.bf16.msra.mxu0 %v784
        %806 = vmatmul.bf16.gmra.mxu0 %v787
        %v807 = vpop.f32.mrf.mxu0
        %v808 = vadd.f32 %v741, %v807
        %v809 = vpop.f32.mrf.mxu0
        %v810 = vadd.f32 %v743, %v809
        %811 = vmatmul.bf16.gmra.mxu0 %v790
        %v812 = vpop.f32.mrf.mxu0
        %v813 = vadd.f32 %v746, %v812
        %v814 = vpop.f32.mrf.mxu0
        %v815 = vadd.f32 %v748, %v814
        %816 = vmatmul.bf16.gmra.mxu0 %v793
        %v817 = vpop.f32.mrf.mxu0
        %v818 = vadd.f32 %v751, %v817
        %v819 = vpop.f32.mrf.mxu0
        %v820 = vadd.f32 %v753, %v819
        %821 = vmatmul.bf16.gmra.mxu0 %v796
        %v822 = vpop.f32.mrf.mxu0
        %v823 = vadd.f32 %v756, %v822
        %v824 = vpop.f32.mrf.mxu0
        %v825 = vadd.f32 %v758, %v824
        %826 = vdwg.mxu0
        %s827 = scalar_lea.vmem [#allocation2], 16
        %v828 = vld [vmem:[%s827] sm:$0xf]
        %v829 = vld [vmem:[%s827 + $0x4] sm:$0xf]
        %v831 = vunpack.c.l.b16 %v560
        %v832 = vpack.c.b16 %v770, %v769
        %v833 = vpack.c.b16 %v772, %v771
        %v834 = vpack.c.b16 %v774, %v773
        %v835 = vpack.c.b16 %v831, %v775
        %v838 = vunpack.c.l.b16 %v828
        %v839 = vunpack.c.l.b16 %v829
        %v840 = vpack.c.b16 %v839, %v838
        %v843 = vsel %vm718, %v832, 0
        %v846 = vsel %vm718, %v833, 0
        %v849 = vsel %vm718, %v834, 0
        %v852 = vsel %vm718, %v835, 0
        %854 = vmatpush.bf16.msra.mxu0 0
        %855 = vmatpush.bf16.msra.mxu0 0
        %856 = vmatpush.bf16.msra.mxu0 0
        %857 = vmatpush.bf16.msra.mxu0 0
        %858 = vmatpush.bf16.msra.mxu0 0
        %859 = vmatpush.bf16.msra.mxu0 0
        %860 = vmatpush.bf16.msra.mxu0 0
        %861 = vmatpush.bf16.msra.mxu0 %v840
        %862 = vmatmul.bf16.gmra.mxu0 %v843
        %v863 = vpop.f32.mrf.mxu0
        %v864 = vadd.f32 0.0, %v863
        %v865 = vpop.f32.mrf.mxu0
        %v866 = vadd.f32 0.0, %v865
        %867 = vmatmul.bf16.gmra.mxu0 %v846
        %v868 = vpop.f32.mrf.mxu0
        %v869 = vadd.f32 0.0, %v868
        %v870 = vpop.f32.mrf.mxu0
        %v871 = vadd.f32 0.0, %v870
        %872 = vmatmul.bf16.gmra.mxu0 %v849
        %v873 = vpop.f32.mrf.mxu0
        %v874 = vadd.f32 0.0, %v873
        %v875 = vpop.f32.mrf.mxu0
        %v876 = vadd.f32 0.0, %v875
        %877 = vmatmul.bf16.gmra.mxu0 %v852
        %v878 = vpop.f32.mrf.mxu0
        %v879 = vadd.f32 0.0, %v878
        %v880 = vpop.f32.mrf.mxu0
        %v881 = vadd.f32 0.0, %v880
        %882 = vdwg.mxu0
        %v883 = vadd.f32 %v808, %v864
        %v884 = vadd.f32 %v810, %v866
        %v885 = vadd.f32 %v813, %v869
        %v886 = vadd.f32 %v815, %v871
        %v887 = vadd.f32 %v818, %v874
        %v888 = vadd.f32 %v820, %v876
        %v889 = vadd.f32 %v823, %v879
        %v890 = vadd.f32 %v825, %v881
        %v892 = vshrl.u32 %v560, 16
        %v894 = vrot.slane %v892, 4
        %v895 = vshll.u32 %v560, 16
        %v897 = vrot.slane %v895, 5
        %v898 = vor.u32 %v894, %v897
        %v899 = vrot.slane %v898, 4
        %v901 = vshll.u32 %v561, 16
        %v903 = vrot.slane %v901, 5
        %v904 = vsel %vm584, %v899, %v903
        %s905 = scalar_lea.vmem [#allocation2], 24
        %v906 = vld [vmem:[%s905] sm:$0xf]
        %v907 = vld [vmem:[%s905 + $0x4] sm:$0xf]
        %v908 = vunpack.c.l.b16 %v904
        %v909 = vpack.c.b16 %v702, %v701
        %v910 = vpack.c.b16 %v704, %v703
        %v911 = vpack.c.b16 %v706, %v705
        %v912 = vpack.c.b16 %v908, %v707
        %v915 = vunpack.c.l.b16 %v906
        %v916 = vunpack.c.l.b16 %v907
        %v917 = vpack.c.b16 %v916, %v915
        %v920 = vsel %vm718, %v909, 0
        %v923 = vsel %vm718, %v910, 0
        %v926 = vsel %vm718, %v911, 0
        %v929 = vsel %vm718, %v912, 0
        %931 = vmatpush.bf16.msra.mxu0 0
        %932 = vmatpush.bf16.msra.mxu0 0
        %933 = vmatpush.bf16.msra.mxu0 0
        %934 = vmatpush.bf16.msra.mxu0 0
        %935 = vmatpush.bf16.msra.mxu0 0
        %936 = vmatpush.bf16.msra.mxu0 0
        %937 = vmatpush.bf16.msra.mxu0 0
        %938 = vmatpush.bf16.msra.mxu0 %v917
        %939 = vmatmul.bf16.gmra.mxu0 %v920
        %v940 = vpop.f32.mrf.mxu0
        %v941 = vadd.f32 0.0, %v940
        %v942 = vpop.f32.mrf.mxu0
        %v943 = vadd.f32 0.0, %v942
        %944 = vmatmul.bf16.gmra.mxu0 %v923
        %v945 = vpop.f32.mrf.mxu0
        %v946 = vadd.f32 0.0, %v945
        %v947 = vpop.f32.mrf.mxu0
        %v948 = vadd.f32 0.0, %v947
        %949 = vmatmul.bf16.gmra.mxu0 %v926
        %v950 = vpop.f32.mrf.mxu0
        %v951 = vadd.f32 0.0, %v950
        %v952 = vpop.f32.mrf.mxu0
        %v953 = vadd.f32 0.0, %v952
        %954 = vmatmul.bf16.gmra.mxu0 %v929
        %v955 = vpop.f32.mrf.mxu0
        %v956 = vadd.f32 0.0, %v955
        %v957 = vpop.f32.mrf.mxu0
        %v958 = vadd.f32 0.0, %v957
        %959 = vdwg.mxu0
        %v960 = vadd.f32 %v883, %v941
        %v961 = vadd.f32 %v884, %v943
        %v962 = vadd.f32 %v885, %v946
        %v963 = vadd.f32 %v886, %v948
        %v964 = vadd.f32 %v887, %v951
        %v965 = vadd.f32 %v888, %v953
        %v966 = vadd.f32 %v889, %v956
        %v967 = vadd.f32 %v890, %v958
        %s968 = scalar_lea.vmem [#allocation2], 32
        %v969 = vld [vmem:[%s968] sm:$0xf]
        %v970 = vld [vmem:[%s968 + $0x4] sm:$0xf]
        %v979 = vunpack.c.l.b16 %v562
        %v980 = vunpack.c.l.b16 %v564
        %v981 = vunpack.c.l.b16 %v566
        %v982 = vunpack.c.l.b16 %v568
        %v983 = vunpack.c.l.b16 %v570
        %v984 = vunpack.c.l.b16 %v572
        %v985 = vunpack.c.l.b16 %v574
        %v986 = vunpack.c.l.b16 %v576
        %v987 = vpack.c.b16 %v980, %v979
        %v988 = vpack.c.b16 %v982, %v981
        %v989 = vpack.c.b16 %v984, %v983
        %v990 = vpack.c.b16 %v986, %v985
        %v993 = vunpack.c.l.b16 %v969
        %v994 = vunpack.c.l.b16 %v970
        %v995 = vpack.c.b16 %v994, %v993
        %v998 = vsel %vm718, %v987, 0
        %v1001 = vsel %vm718, %v988, 0
        %v1004 = vsel %vm718, %v989, 0
        %v1007 = vsel %vm718, %v990, 0
        %1009 = vmatpush.bf16.msra.mxu0 0
        %1010 = vmatpush.bf16.msra.mxu0 0
        %1011 = vmatpush.bf16.msra.mxu0 0
        %1012 = vmatpush.bf16.msra.mxu0 0
        %1013 = vmatpush.bf16.msra.mxu0 0
        %1014 = vmatpush.bf16.msra.mxu0 0
        %1015 = vmatpush.bf16.msra.mxu0 0
        %1016 = vmatpush.bf16.msra.mxu0 %v995
        %1017 = vmatmul.bf16.gmra.mxu0 %v998
        %v1018 = vpop.f32.mrf.mxu0
        %v1019 = vadd.f32 0.0, %v1018
        %v1020 = vpop.f32.mrf.mxu0
        %v1021 = vadd.f32 0.0, %v1020
        %1022 = vmatmul.bf16.gmra.mxu0 %v1001
        %v1023 = vpop.f32.mrf.mxu0
        %v1024 = vadd.f32 0.0, %v1023
        %v1025 = vpop.f32.mrf.mxu0
        %v1026 = vadd.f32 0.0, %v1025
        %1027 = vmatmul.bf16.gmra.mxu0 %v1004
        %v1028 = vpop.f32.mrf.mxu0
        %v1029 = vadd.f32 0.0, %v1028
        %v1030 = vpop.f32.mrf.mxu0
        %v1031 = vadd.f32 0.0, %v1030
        %1032 = vmatmul.bf16.gmra.mxu0 %v1007
        %v1033 = vpop.f32.mrf.mxu0
        %v1034 = vadd.f32 0.0, %v1033
        %v1035 = vpop.f32.mrf.mxu0
        %v1036 = vadd.f32 0.0, %v1035
        %1037 = vdwg.mxu0
        %v1038 = vadd.f32 %v960, %v1019
        %v1039 = vadd.f32 %v961, %v1021
        %v1040 = vadd.f32 %v962, %v1024
        %v1041 = vadd.f32 %v963, %v1026
        %v1042 = vadd.f32 %v964, %v1029
        %v1043 = vadd.f32 %v965, %v1031
        %v1044 = vadd.f32 %v966, %v1034
        %v1045 = vadd.f32 %v967, %v1036
        %v1047 = vshrl.u32 %v562, 16
        %v1049 = vrot.slane %v1047, 4
        %v1050 = vshll.u32 %v562, 16
        %v1052 = vrot.slane %v1050, 5
        %v1053 = vor.u32 %v1049, %v1052
        %v1054 = vrot.slane %v1053, 4
        %v1056 = vshll.u32 %v563, 16
        %v1058 = vrot.slane %v1056, 5
        %v1059 = vsel %vm584, %v1054, %v1058
        %v1061 = vshrl.u32 %v564, 16
        %v1063 = vrot.slane %v1061, 4
        %v1064 = vshll.u32 %v564, 16
        %v1066 = vrot.slane %v1064, 5
        %v1067 = vor.u32 %v1063, %v1066
        %v1068 = vrot.slane %v1067, 4
        %v1070 = vshll.u32 %v565, 16
        %v1072 = vrot.slane %v1070, 5
        %v1073 = vsel %vm584, %v1068, %v1072
        %v1075 = vshrl.u32 %v566, 16
        %v1077 = vrot.slane %v1075, 4
        %v1078 = vshll.u32 %v566, 16
        %v1080 = vrot.slane %v1078, 5
        %v1081 = vor.u32 %v1077, %v1080
        %v1082 = vrot.slane %v1081, 4
        %v1084 = vshll.u32 %v567, 16
        %v1086 = vrot.slane %v1084, 5
        %v1087 = vsel %vm584, %v1082, %v1086
        %v1089 = vshrl.u32 %v568, 16
        %v1091 = vrot.slane %v1089, 4
        %v1092 = vshll.u32 %v568, 16
        %v1094 = vrot.slane %v1092, 5
        %v1095 = vor.u32 %v1091, %v1094
        %v1096 = vrot.slane %v1095, 4
        %v1098 = vshll.u32 %v569, 16
        %v1100 = vrot.slane %v1098, 5
        %v1101 = vsel %vm584, %v1096, %v1100
        %v1103 = vshrl.u32 %v570, 16
        %v1105 = vrot.slane %v1103, 4
        %v1106 = vshll.u32 %v570, 16
        %v1108 = vrot.slane %v1106, 5
        %v1109 = vor.u32 %v1105, %v1108
        %v1110 = vrot.slane %v1109, 4
        %v1112 = vshll.u32 %v571, 16
        %v1114 = vrot.slane %v1112, 5
        %v1115 = vsel %vm584, %v1110, %v1114
        %v1117 = vshrl.u32 %v572, 16
        %v1119 = vrot.slane %v1117, 4
        %v1120 = vshll.u32 %v572, 16
        %v1122 = vrot.slane %v1120, 5
        %v1123 = vor.u32 %v1119, %v1122
        %v1124 = vrot.slane %v1123, 4
        %v1126 = vshll.u32 %v573, 16
        %v1128 = vrot.slane %v1126, 5
        %v1129 = vsel %vm584, %v1124, %v1128
        %v1131 = vshrl.u32 %v574, 16
        %v1133 = vrot.slane %v1131, 4
        %v1134 = vshll.u32 %v574, 16
        %v1136 = vrot.slane %v1134, 5
        %v1137 = vor.u32 %v1133, %v1136
        %v1138 = vrot.slane %v1137, 4
        %v1140 = vshll.u32 %v575, 16
        %v1142 = vrot.slane %v1140, 5
        %v1143 = vsel %vm584, %v1138, %v1142
        %v1145 = vshrl.u32 %v576, 16
        %v1147 = vrot.slane %v1145, 4
        %v1148 = vshll.u32 %v576, 16
        %v1150 = vrot.slane %v1148, 5
        %v1151 = vor.u32 %v1147, %v1150
        %v1152 = vrot.slane %v1151, 4
        %v1154 = vshll.u32 %v577, 16
        %v1156 = vrot.slane %v1154, 5
        %v1157 = vsel %vm584, %v1152, %v1156
        %s1158 = scalar_lea.vmem [#allocation2], 40
        %v1159 = vld [vmem:[%s1158] sm:$0xf]
        %v1160 = vld [vmem:[%s1158 + $0x4] sm:$0xf]
        %v1161 = vunpack.c.l.b16 %v1059
        %v1162 = vunpack.c.l.b16 %v1073
        %v1163 = vunpack.c.l.b16 %v1087
        %v1164 = vunpack.c.l.b16 %v1101
        %v1165 = vunpack.c.l.b16 %v1115
        %v1166 = vunpack.c.l.b16 %v1129
        %v1167 = vunpack.c.l.b16 %v1143
        %v1168 = vunpack.c.l.b16 %v1157
        %v1169 = vpack.c.b16 %v1162, %v1161
        %v1170 = vpack.c.b16 %v1164, %v1163
        %v1171 = vpack.c.b16 %v1166, %v1165
        %v1172 = vpack.c.b16 %v1168, %v1167
        %v1175 = vunpack.c.l.b16 %v1159
        %v1176 = vunpack.c.l.b16 %v1160
        %v1177 = vpack.c.b16 %v1176, %v1175
        %v1180 = vsel %vm718, %v1169, 0
        %v1183 = vsel %vm718, %v1170, 0
        %v1186 = vsel %vm718, %v1171, 0
        %v1189 = vsel %vm718, %v1172, 0
        %1191 = vmatpush.bf16.msra.mxu0 0
        %1192 = vmatpush.bf16.msra.mxu0 0
        %1193 = vmatpush.bf16.msra.mxu0 0
        %1194 = vmatpush.bf16.msra.mxu0 0
        %1195 = vmatpush.bf16.msra.mxu0 0
        %1196 = vmatpush.bf16.msra.mxu0 0
        %1197 = vmatpush.bf16.msra.mxu0 0
        %1198 = vmatpush.bf16.msra.mxu0 %v1177
        %1199 = vmatmul.bf16.gmra.mxu0 %v1180
        %v1200 = vpop.f32.mrf.mxu0
        %v1201 = vadd.f32 0.0, %v1200
        %v1202 = vpop.f32.mrf.mxu0
        %v1203 = vadd.f32 0.0, %v1202
        %1204 = vmatmul.bf16.gmra.mxu0 %v1183
        %v1205 = vpop.f32.mrf.mxu0
        %v1206 = vadd.f32 0.0, %v1205
        %v1207 = vpop.f32.mrf.mxu0
        %v1208 = vadd.f32 0.0, %v1207
        %1209 = vmatmul.bf16.gmra.mxu0 %v1186
        %v1210 = vpop.f32.mrf.mxu0
        %v1211 = vadd.f32 0.0, %v1210
        %v1212 = vpop.f32.mrf.mxu0
        %v1213 = vadd.f32 0.0, %v1212
        %1214 = vmatmul.bf16.gmra.mxu0 %v1189
        %v1215 = vpop.f32.mrf.mxu0
        %v1216 = vadd.f32 0.0, %v1215
        %v1217 = vpop.f32.mrf.mxu0
        %v1218 = vadd.f32 0.0, %v1217
        %1219 = vdwg.mxu0
        %v1220 = vadd.f32 %v1038, %v1201
        %v1221 = vadd.f32 %v1039, %v1203
        %v1222 = vadd.f32 %v1040, %v1206
        %v1223 = vadd.f32 %v1041, %v1208
        %v1224 = vadd.f32 %v1042, %v1211
        %v1225 = vadd.f32 %v1043, %v1213
        %v1226 = vadd.f32 %v1044, %v1216
        %v1227 = vadd.f32 %v1045, %v1218
        %s1228 = scalar_lea.vmem [#allocation2], 48
        %v1229 = vld [vmem:[%s1228] sm:$0xf]
        %v1230 = vld [vmem:[%s1228 + $0x4] sm:$0xf]
        %v1232 = vunpack.c.l.b16 %v578
        %v1233 = vpack.c.b16 %v981, %v980
        %v1234 = vpack.c.b16 %v983, %v982
        %v1235 = vpack.c.b16 %v985, %v984
        %v1236 = vpack.c.b16 %v1232, %v986
        %v1239 = vunpack.c.l.b16 %v1229
        %v1240 = vunpack.c.l.b16 %v1230
        %v1241 = vpack.c.b16 %v1240, %v1239
        %v1244 = vsel %vm718, %v1233, 0
        %v1247 = vsel %vm718, %v1234, 0
        %v1250 = vsel %vm718, %v1235, 0
        %v1253 = vsel %vm718, %v1236, 0
        %1255 = vmatpush.bf16.msra.mxu0 0
        %1256 = vmatpush.bf16.msra.mxu0 0
        %1257 = vmatpush.bf16.msra.mxu0 0
        %1258 = vmatpush.bf16.msra.mxu0 0
        %1259 = vmatpush.bf16.msra.mxu0 0
        %1260 = vmatpush.bf16.msra.mxu0 0
        %1261 = vmatpush.bf16.msra.mxu0 0
        %1262 = vmatpush.bf16.msra.mxu0 %v1241
        %1263 = vmatmul.bf16.gmra.mxu0 %v1244
        %v1264 = vpop.f32.mrf.mxu0
        %v1265 = vadd.f32 0.0, %v1264
        %v1266 = vpop.f32.mrf.mxu0
        %v1267 = vadd.f32 0.0, %v1266
        %1268 = vmatmul.bf16.gmra.mxu0 %v1247
        %v1269 = vpop.f32.mrf.mxu0
        %v1270 = vadd.f32 0.0, %v1269
        %v1271 = vpop.f32.mrf.mxu0
        %v1272 = vadd.f32 0.0, %v1271
        %1273 = vmatmul.bf16.gmra.mxu0 %v1250
        %v1274 = vpop.f32.mrf.mxu0
        %v1275 = vadd.f32 0.0, %v1274
        %v1276 = vpop.f32.mrf.mxu0
        %v1277 = vadd.f32 0.0, %v1276
        %1278 = vmatmul.bf16.gmra.mxu0 %v1253
        %v1279 = vpop.f32.mrf.mxu0
        %v1280 = vadd.f32 0.0, %v1279
        %v1281 = vpop.f32.mrf.mxu0
        %v1282 = vadd.f32 0.0, %v1281
        %1283 = vdwg.mxu0
        %v1284 = vadd.f32 %v1220, %v1265
        %v1285 = vadd.f32 %v1221, %v1267
        %v1286 = vadd.f32 %v1222, %v1270
        %v1287 = vadd.f32 %v1223, %v1272
        %v1288 = vadd.f32 %v1224, %v1275
        %v1289 = vadd.f32 %v1225, %v1277
        %v1290 = vadd.f32 %v1226, %v1280
        %v1291 = vadd.f32 %v1227, %v1282
        %v1293 = vshrl.u32 %v578, 16
        %v1295 = vrot.slane %v1293, 4
        %v1296 = vshll.u32 %v578, 16
        %v1298 = vrot.slane %v1296, 5
        %v1299 = vor.u32 %v1295, %v1298
        %v1300 = vrot.slane %v1299, 4
        %v1302 = vshll.u32 %v579, 16
        %v1304 = vrot.slane %v1302, 5
        %v1305 = vsel %vm584, %v1300, %v1304
        %s1306 = scalar_lea.vmem [#allocation2], 56
        %v1307 = vld [vmem:[%s1306] sm:$0xf]
        %v1308 = vld [vmem:[%s1306 + $0x4] sm:$0xf]
        %v1309 = vunpack.c.l.b16 %v1305
        %v1310 = vpack.c.b16 %v1163, %v1162
        %v1311 = vpack.c.b16 %v1165, %v1164
        %v1312 = vpack.c.b16 %v1167, %v1166
        %v1313 = vpack.c.b16 %v1309, %v1168
        %v1316 = vunpack.c.l.b16 %v1307
        %v1317 = vunpack.c.l.b16 %v1308
        %v1318 = vpack.c.b16 %v1317, %v1316
        %v1321 = vsel %vm718, %v1310, 0
        %v1324 = vsel %vm718, %v1311, 0
        %v1327 = vsel %vm718, %v1312, 0
        %v1330 = vsel %vm718, %v1313, 0
        %1332 = vmatpush.bf16.msra.mxu0 0
        %1333 = vmatpush.bf16.msra.mxu0 0
        %1334 = vmatpush.bf16.msra.mxu0 0
        %1335 = vmatpush.bf16.msra.mxu0 0
        %1336 = vmatpush.bf16.msra.mxu0 0
        %1337 = vmatpush.bf16.msra.mxu0 0
        %1338 = vmatpush.bf16.msra.mxu0 0
        %1339 = vmatpush.bf16.msra.mxu0 %v1318
        %1340 = vmatmul.bf16.gmra.mxu0 %v1321
        %v1341 = vpop.f32.mrf.mxu0
        %v1342 = vadd.f32 0.0, %v1341
        %v1343 = vpop.f32.mrf.mxu0
        %v1344 = vadd.f32 0.0, %v1343
        %1345 = vmatmul.bf16.gmra.mxu0 %v1324
        %v1346 = vpop.f32.mrf.mxu0
        %v1347 = vadd.f32 0.0, %v1346
        %v1348 = vpop.f32.mrf.mxu0
        %v1349 = vadd.f32 0.0, %v1348
        %1350 = vmatmul.bf16.gmra.mxu0 %v1327
        %v1351 = vpop.f32.mrf.mxu0
        %v1352 = vadd.f32 0.0, %v1351
        %v1353 = vpop.f32.mrf.mxu0
        %v1354 = vadd.f32 0.0, %v1353
        %1355 = vmatmul.bf16.gmra.mxu0 %v1330
        %v1356 = vpop.f32.mrf.mxu0
        %v1357 = vadd.f32 0.0, %v1356
        %v1358 = vpop.f32.mrf.mxu0
        %v1359 = vadd.f32 0.0, %v1358
        %1360 = vdwg.mxu0
        %v1361 = vadd.f32 %v1284, %v1342
        %v1362 = vadd.f32 %v1285, %v1344
        %v1363 = vadd.f32 %v1286, %v1347
        %v1364 = vadd.f32 %v1287, %v1349
        %v1365 = vadd.f32 %v1288, %v1352
        %v1366 = vadd.f32 %v1289, %v1354
        %v1367 = vadd.f32 %v1290, %v1357
        %v1368 = vadd.f32 %v1291, %v1359
        %v1370 = vperm.slane %v543, 0
        %v1372 = vadd.f32 %v1361, %v1370
        %v1373 = vadd.f32 %v1362, %v1370
        %v1374 = vadd.f32 %v1363, %v1370
        %v1375 = vadd.f32 %v1364, %v1370
        %v1376 = vadd.f32 %v1365, %v1370
        %v1377 = vadd.f32 %v1366, %v1370
        %v1378 = vadd.f32 %v1367, %v1370
        %v1379 = vadd.f32 %v1368, %v1370
        %v1380 = vmax.f32 %v1372, 0.0
        %v1381 = vmax.f32 %v1373, 0.0
        %v1382 = vmax.f32 %v1374, 0.0
        %v1383 = vmax.f32 %v1375, 0.0
        %v1384 = vmax.f32 %v1376, 0.0
        %v1385 = vmax.f32 %v1377, 0.0
        %v1386 = vmax.f32 %v1378, 0.0
        %v1387 = vmax.f32 %v1379, 0.0
        %vm1388 = vcmask 523264
        %1389 = vst.msk [vmem:[%s539] sm:$0xff] %vm1388, %v1380
        %1390 = vst.msk [vmem:[%s539 + $0x8] sm:$0xff] %vm1388, %v1381
        %1391 = vst.msk [vmem:[%s539 + $0x10] sm:$0xff] %vm1388, %v1382
        %1392 = vst.msk [vmem:[%s539 + $0x18] sm:$0xff] %vm1388, %v1383
        %1393 = vst.msk [vmem:[%s539 + $0x20] sm:$0xff] %vm1388, %v1384
        %1394 = vst.msk [vmem:[%s539 + $0x28] sm:$0xff] %vm1388, %v1385
        %1395 = vst.msk [vmem:[%s539 + $0x30] sm:$0xff] %vm1388, %v1386
        %1396 = vst.msk [vmem:[%s539 + $0x38] sm:$0xff] %vm1388, %v1387
        %v1397 = vld [vmem:[%s492] sm:$0xf]
        %v1398 = vld [vmem:[%s492 + $0x4] sm:$0x1]
        %v1399 = vld [vmem:[%s492 + $0x8] sm:$0xf]
        %v1400 = vld [vmem:[%s492 + $0xc] sm:$0x1]
        %v1401 = vld [vmem:[%s492 + $0x10] sm:$0xf]
        %v1402 = vld [vmem:[%s492 + $0x14] sm:$0x1]
        %v1403 = vld [vmem:[%s492 + $0x18] sm:$0xf]
        %v1404 = vld [vmem:[%s492 + $0x1c] sm:$0x1]
        %v1405 = vld [vmem:[%s492 + $0x20] sm:$0xf]
        %v1406 = vld [vmem:[%s492 + $0x24] sm:$0x1]
        %v1407 = vld [vmem:[%s492 + $0x28] sm:$0xf]
        %v1408 = vld [vmem:[%s492 + $0x2c] sm:$0x1]
        %v1409 = vld [vmem:[%s492 + $0x30] sm:$0xf]
        %v1410 = vld [vmem:[%s492 + $0x34] sm:$0x1]
        %v1411 = vld [vmem:[%s492 + $0x38] sm:$0xf]
        %v1412 = vld [vmem:[%s492 + $0x3c] sm:$0x1]
        %v1413 = vld [vmem:[%s492 + $0x40] sm:$0xf]
        %v1414 = vld [vmem:[%s492 + $0x44] sm:$0x1]
        %v1415 = vld [vmem:[%s505] sm:$0xf]
        %v1416 = vld [vmem:[%s505 + $0x4] sm:$0x1]
        %v1417 = vld [vmem:[%s505 + $0x8] sm:$0xf]
        %v1418 = vld [vmem:[%s505 + $0xc] sm:$0x1]
        %v1419 = vld [vmem:[%s505 + $0x10] sm:$0xf]
        %v1420 = vld [vmem:[%s505 + $0x14] sm:$0x1]
        %v1421 = vld [vmem:[%s505 + $0x18] sm:$0xf]
        %v1422 = vld [vmem:[%s505 + $0x1c] sm:$0x1]
        %v1423 = vld [vmem:[%s505 + $0x20] sm:$0xf]
        %v1424 = vld [vmem:[%s505 + $0x24] sm:$0x1]
        %v1425 = vld [vmem:[%s505 + $0x28] sm:$0xf]
        %v1426 = vld [vmem:[%s505 + $0x2c] sm:$0x1]
        %v1427 = vld [vmem:[%s505 + $0x30] sm:$0xf]
        %v1428 = vld [vmem:[%s505 + $0x34] sm:$0x1]
        %v1429 = vld [vmem:[%s505 + $0x38] sm:$0xf]
        %v1430 = vld [vmem:[%s505 + $0x3c] sm:$0x1]
        %v1431 = vld [vmem:[%s505 + $0x40] sm:$0xf]
        %v1432 = vld [vmem:[%s505 + $0x44] sm:$0x1]
        %v1433 = vld [vmem:[#allocation2] sm:$0xf]
        %v1434 = vld [vmem:[#allocation2 + $0x4] sm:$0xf]
        %v1436 = vshrl.u32 %v1397, 16
        %v1438 = vrot.slane %v1436, 4
        %v1439 = vshll.u32 %v1397, 16
        %v1441 = vrot.slane %v1439, 5
        %v1442 = vor.u32 %v1438, %v1441
        %v1443 = vrot.slane %v1442, 4
        %v1445 = vshll.u32 %v1398, 16
        %v1447 = vrot.slane %v1445, 5
        %v1448 = vsel %vm584, %v1443, %v1447
        %v1450 = vshrl.u32 %v1399, 16
        %v1452 = vrot.slane %v1450, 4
        %v1453 = vshll.u32 %v1399, 16
        %v1455 = vrot.slane %v1453, 5
        %v1456 = vor.u32 %v1452, %v1455
        %v1457 = vrot.slane %v1456, 4
        %v1459 = vshll.u32 %v1400, 16
        %v1461 = vrot.slane %v1459, 5
        %v1462 = vsel %vm584, %v1457, %v1461
        %v1464 = vshrl.u32 %v1401, 16
        %v1466 = vrot.slane %v1464, 4
        %v1467 = vshll.u32 %v1401, 16
        %v1469 = vrot.slane %v1467, 5
        %v1470 = vor.u32 %v1466, %v1469
        %v1471 = vrot.slane %v1470, 4
        %v1473 = vshll.u32 %v1402, 16
        %v1475 = vrot.slane %v1473, 5
        %v1476 = vsel %vm584, %v1471, %v1475
        %v1478 = vshrl.u32 %v1403, 16
        %v1480 = vrot.slane %v1478, 4
        %v1481 = vshll.u32 %v1403, 16
        %v1483 = vrot.slane %v1481, 5
        %v1484 = vor.u32 %v1480, %v1483
        %v1485 = vrot.slane %v1484, 4
        %v1487 = vshll.u32 %v1404, 16
        %v1489 = vrot.slane %v1487, 5
        %v1490 = vsel %vm584, %v1485, %v1489
        %v1492 = vshrl.u32 %v1405, 16
        %v1494 = vrot.slane %v1492, 4
        %v1495 = vshll.u32 %v1405, 16
        %v1497 = vrot.slane %v1495, 5
        %v1498 = vor.u32 %v1494, %v1497
        %v1499 = vrot.slane %v1498, 4
        %v1501 = vshll.u32 %v1406, 16
        %v1503 = vrot.slane %v1501, 5
        %v1504 = vsel %vm584, %v1499, %v1503
        %v1506 = vshrl.u32 %v1407, 16
        %v1508 = vrot.slane %v1506, 4
        %v1509 = vshll.u32 %v1407, 16
        %v1511 = vrot.slane %v1509, 5
        %v1512 = vor.u32 %v1508, %v1511
        %v1513 = vrot.slane %v1512, 4
        %v1515 = vshll.u32 %v1408, 16
        %v1517 = vrot.slane %v1515, 5
        %v1518 = vsel %vm584, %v1513, %v1517
        %v1520 = vshrl.u32 %v1409, 16
        %v1522 = vrot.slane %v1520, 4
        %v1523 = vshll.u32 %v1409, 16
        %v1525 = vrot.slane %v1523, 5
        %v1526 = vor.u32 %v1522, %v1525
        %v1527 = vrot.slane %v1526, 4
        %v1529 = vshll.u32 %v1410, 16
        %v1531 = vrot.slane %v1529, 5
        %v1532 = vsel %vm584, %v1527, %v1531
        %v1534 = vshrl.u32 %v1411, 16
        %v1536 = vrot.slane %v1534, 4
        %v1537 = vshll.u32 %v1411, 16
        %v1539 = vrot.slane %v1537, 5
        %v1540 = vor.u32 %v1536, %v1539
        %v1541 = vrot.slane %v1540, 4
        %v1543 = vshll.u32 %v1412, 16
        %v1545 = vrot.slane %v1543, 5
        %v1546 = vsel %vm584, %v1541, %v1545
        %v1547 = vld [vmem:[%s697] sm:$0xf]
        %v1548 = vld [vmem:[%s697 + $0x4] sm:$0xf]
        %v1549 = vunpack.c.l.b16 %v1448
        %v1550 = vunpack.c.l.b16 %v1462
        %v1551 = vunpack.c.l.b16 %v1476
        %v1552 = vunpack.c.l.b16 %v1490
        %v1553 = vunpack.c.l.b16 %v1504
        %v1554 = vunpack.c.l.b16 %v1518
        %v1555 = vunpack.c.l.b16 %v1532
        %v1556 = vunpack.c.l.b16 %v1546
        %v1557 = vpack.c.b16 %v1550, %v1549
        %v1558 = vpack.c.b16 %v1552, %v1551
        %v1559 = vpack.c.b16 %v1554, %v1553
        %v1560 = vpack.c.b16 %v1556, %v1555
        %v1563 = vunpack.c.l.b16 %v1547
        %v1564 = vunpack.c.l.b16 %v1548
        %v1565 = vpack.c.b16 %v1564, %v1563
        %v1568 = vsel %vm718, %v1557, 0
        %v1571 = vsel %vm718, %v1558, 0
        %v1574 = vsel %vm718, %v1559, 0
        %v1577 = vsel %vm718, %v1560, 0
        %1579 = vmatpush.bf16.msra.mxu0 0
        %1580 = vmatpush.bf16.msra.mxu0 0
        %1581 = vmatpush.bf16.msra.mxu0 0
        %1582 = vmatpush.bf16.msra.mxu0 0
        %1583 = vmatpush.bf16.msra.mxu0 0
        %1584 = vmatpush.bf16.msra.mxu0 0
        %1585 = vmatpush.bf16.msra.mxu0 0
        %1586 = vmatpush.bf16.msra.mxu0 %v1565
        %1587 = vmatmul.bf16.gmra.mxu0 %v1568
        %v1588 = vpop.f32.mrf.mxu0
        %v1589 = vadd.f32 0.0, %v1588
        %v1590 = vpop.f32.mrf.mxu0
        %v1591 = vadd.f32 0.0, %v1590
        %1592 = vmatmul.bf16.gmra.mxu0 %v1571
        %v1593 = vpop.f32.mrf.mxu0
        %v1594 = vadd.f32 0.0, %v1593
        %v1595 = vpop.f32.mrf.mxu0
        %v1596 = vadd.f32 0.0, %v1595
        %1597 = vmatmul.bf16.gmra.mxu0 %v1574
        %v1598 = vpop.f32.mrf.mxu0
        %v1599 = vadd.f32 0.0, %v1598
        %v1600 = vpop.f32.mrf.mxu0
        %v1601 = vadd.f32 0.0, %v1600
        %1602 = vmatmul.bf16.gmra.mxu0 %v1577
        %v1603 = vpop.f32.mrf.mxu0
        %v1604 = vadd.f32 0.0, %v1603
        %v1605 = vpop.f32.mrf.mxu0
        %v1606 = vadd.f32 0.0, %v1605
        %1607 = vdwg.mxu0
        %v1616 = vunpack.c.l.b16 %v1397
        %v1617 = vunpack.c.l.b16 %v1399
        %v1618 = vunpack.c.l.b16 %v1401
        %v1619 = vunpack.c.l.b16 %v1403
        %v1620 = vunpack.c.l.b16 %v1405
        %v1621 = vunpack.c.l.b16 %v1407
        %v1622 = vunpack.c.l.b16 %v1409
        %v1623 = vunpack.c.l.b16 %v1411
        %v1624 = vpack.c.b16 %v1617, %v1616
        %v1625 = vpack.c.b16 %v1619, %v1618
        %v1626 = vpack.c.b16 %v1621, %v1620
        %v1627 = vpack.c.b16 %v1623, %v1622
        %v1630 = vunpack.c.l.b16 %v1433
        %v1631 = vunpack.c.l.b16 %v1434
        %v1632 = vpack.c.b16 %v1631, %v1630
        %v1635 = vsel %vm718, %v1624, 0
        %v1638 = vsel %vm718, %v1625, 0
        %v1641 = vsel %vm718, %v1626, 0
        %v1644 = vsel %vm718, %v1627, 0
        %1646 = vmatpush.bf16.msra.mxu0 0
        %1647 = vmatpush.bf16.msra.mxu0 0
        %1648 = vmatpush.bf16.msra.mxu0 0
        %1649 = vmatpush.bf16.msra.mxu0 0
        %1650 = vmatpush.bf16.msra.mxu0 0
        %1651 = vmatpush.bf16.msra.mxu0 0
        %1652 = vmatpush.bf16.msra.mxu0 0
        %1653 = vmatpush.bf16.msra.mxu0 %v1632
        %1654 = vmatmul.bf16.gmra.mxu0 %v1635
        %v1655 = vpop.f32.mrf.mxu0
        %v1656 = vadd.f32 %v1589, %v1655
        %v1657 = vpop.f32.mrf.mxu0
        %v1658 = vadd.f32 %v1591, %v1657
        %1659 = vmatmul.bf16.gmra.mxu0 %v1638
        %v1660 = vpop.f32.mrf.mxu0
        %v1661 = vadd.f32 %v1594, %v1660
        %v1662 = vpop.f32.mrf.mxu0
        %v1663 = vadd.f32 %v1596, %v1662
        %1664 = vmatmul.bf16.gmra.mxu0 %v1641
        %v1665 = vpop.f32.mrf.mxu0
        %v1666 = vadd.f32 %v1599, %v1665
        %v1667 = vpop.f32.mrf.mxu0
        %v1668 = vadd.f32 %v1601, %v1667
        %1669 = vmatmul.bf16.gmra.mxu0 %v1644
        %v1670 = vpop.f32.mrf.mxu0
        %v1671 = vadd.f32 %v1604, %v1670
        %v1672 = vpop.f32.mrf.mxu0
        %v1673 = vadd.f32 %v1606, %v1672
        %1674 = vdwg.mxu0
        %v1675 = vld [vmem:[%s827] sm:$0xf]
        %v1676 = vld [vmem:[%s827 + $0x4] sm:$0xf]
        %v1678 = vunpack.c.l.b16 %v1413
        %v1679 = vpack.c.b16 %v1618, %v1617
        %v1680 = vpack.c.b16 %v1620, %v1619
        %v1681 = vpack.c.b16 %v1622, %v1621
        %v1682 = vpack.c.b16 %v1678, %v1623
        %v1685 = vunpack.c.l.b16 %v1675
        %v1686 = vunpack.c.l.b16 %v1676
        %v1687 = vpack.c.b16 %v1686, %v1685
        %v1690 = vsel %vm718, %v1679, 0
        %v1693 = vsel %vm718, %v1680, 0
        %v1696 = vsel %vm718, %v1681, 0
        %v1699 = vsel %vm718, %v1682, 0
        %1701 = vmatpush.bf16.msra.mxu0 0
        %1702 = vmatpush.bf16.msra.mxu0 0
        %1703 = vmatpush.bf16.msra.mxu0 0
        %1704 = vmatpush.bf16.msra.mxu0 0
        %1705 = vmatpush.bf16.msra.mxu0 0
        %1706 = vmatpush.bf16.msra.mxu0 0
        %1707 = vmatpush.bf16.msra.mxu0 0
        %1708 = vmatpush.bf16.msra.mxu0 %v1687
        %1709 = vmatmul.bf16.gmra.mxu0 %v1690
        %v1710 = vpop.f32.mrf.mxu0
        %v1711 = vadd.f32 0.0, %v1710
        %v1712 = vpop.f32.mrf.mxu0
        %v1713 = vadd.f32 0.0, %v1712
        %1714 = vmatmul.bf16.gmra.mxu0 %v1693
        %v1715 = vpop.f32.mrf.mxu0
        %v1716 = vadd.f32 0.0, %v1715
        %v1717 = vpop.f32.mrf.mxu0
        %v1718 = vadd.f32 0.0, %v1717
        %1719 = vmatmul.bf16.gmra.mxu0 %v1696
        %v1720 = vpop.f32.mrf.mxu0
        %v1721 = vadd.f32 0.0, %v1720
        %v1722 = vpop.f32.mrf.mxu0
        %v1723 = vadd.f32 0.0, %v1722
        %1724 = vmatmul.bf16.gmra.mxu0 %v1699
        %v1725 = vpop.f32.mrf.mxu0
        %v1726 = vadd.f32 0.0, %v1725
        %v1727 = vpop.f32.mrf.mxu0
        %v1728 = vadd.f32 0.0, %v1727
        %1729 = vdwg.mxu0
        %v1730 = vadd.f32 %v1656, %v1711
        %v1731 = vadd.f32 %v1658, %v1713
        %v1732 = vadd.f32 %v1661, %v1716
        %v1733 = vadd.f32 %v1663, %v1718
        %v1734 = vadd.f32 %v1666, %v1721
        %v1735 = vadd.f32 %v1668, %v1723
        %v1736 = vadd.f32 %v1671, %v1726
        %v1737 = vadd.f32 %v1673, %v1728
        %v1739 = vshrl.u32 %v1413, 16
        %v1741 = vrot.slane %v1739, 4
        %v1742 = vshll.u32 %v1413, 16
        %v1744 = vrot.slane %v1742, 5
        %v1745 = vor.u32 %v1741, %v1744
        %v1746 = vrot.slane %v1745, 4
        %v1748 = vshll.u32 %v1414, 16
        %v1750 = vrot.slane %v1748, 5
        %v1751 = vsel %vm584, %v1746, %v1750
        %v1752 = vld [vmem:[%s905] sm:$0xf]
        %v1753 = vld [vmem:[%s905 + $0x4] sm:$0xf]
        %v1754 = vunpack.c.l.b16 %v1751
        %v1755 = vpack.c.b16 %v1551, %v1550
        %v1756 = vpack.c.b16 %v1553, %v1552
        %v1757 = vpack.c.b16 %v1555, %v1554
        %v1758 = vpack.c.b16 %v1754, %v1556
        %v1761 = vunpack.c.l.b16 %v1752
        %v1762 = vunpack.c.l.b16 %v1753
        %v1763 = vpack.c.b16 %v1762, %v1761
        %v1766 = vsel %vm718, %v1755, 0
        %v1769 = vsel %vm718, %v1756, 0
        %v1772 = vsel %vm718, %v1757, 0
        %v1775 = vsel %vm718, %v1758, 0
        %1777 = vmatpush.bf16.msra.mxu0 0
        %1778 = vmatpush.bf16.msra.mxu0 0
        %1779 = vmatpush.bf16.msra.mxu0 0
        %1780 = vmatpush.bf16.msra.mxu0 0
        %1781 = vmatpush.bf16.msra.mxu0 0
        %1782 = vmatpush.bf16.msra.mxu0 0
        %1783 = vmatpush.bf16.msra.mxu0 0
        %1784 = vmatpush.bf16.msra.mxu0 %v1763
        %1785 = vmatmul.bf16.gmra.mxu0 %v1766
        %v1786 = vpop.f32.mrf.mxu0
        %v1787 = vadd.f32 0.0, %v1786
        %v1788 = vpop.f32.mrf.mxu0
        %v1789 = vadd.f32 0.0, %v1788
        %1790 = vmatmul.bf16.gmra.mxu0 %v1769
        %v1791 = vpop.f32.mrf.mxu0
        %v1792 = vadd.f32 0.0, %v1791
        %v1793 = vpop.f32.mrf.mxu0
        %v1794 = vadd.f32 0.0, %v1793
        %1795 = vmatmul.bf16.gmra.mxu0 %v1772
        %v1796 = vpop.f32.mrf.mxu0
        %v1797 = vadd.f32 0.0, %v1796
        %v1798 = vpop.f32.mrf.mxu0
        %v1799 = vadd.f32 0.0, %v1798
        %1800 = vmatmul.bf16.gmra.mxu0 %v1775
        %v1801 = vpop.f32.mrf.mxu0
        %v1802 = vadd.f32 0.0, %v1801
        %v1803 = vpop.f32.mrf.mxu0
        %v1804 = vadd.f32 0.0, %v1803
        %1805 = vdwg.mxu0
        %v1806 = vadd.f32 %v1730, %v1787
        %v1807 = vadd.f32 %v1731, %v1789
        %v1808 = vadd.f32 %v1732, %v1792
        %v1809 = vadd.f32 %v1733, %v1794
        %v1810 = vadd.f32 %v1734, %v1797
        %v1811 = vadd.f32 %v1735, %v1799
        %v1812 = vadd.f32 %v1736, %v1802
        %v1813 = vadd.f32 %v1737, %v1804
        %v1814 = vld [vmem:[%s968] sm:$0xf]
        %v1815 = vld [vmem:[%s968 + $0x4] sm:$0xf]
        %v1824 = vunpack.c.l.b16 %v1415
        %v1825 = vunpack.c.l.b16 %v1417
        %v1826 = vunpack.c.l.b16 %v1419
        %v1827 = vunpack.c.l.b16 %v1421
        %v1828 = vunpack.c.l.b16 %v1423
        %v1829 = vunpack.c.l.b16 %v1425
        %v1830 = vunpack.c.l.b16 %v1427
        %v1831 = vunpack.c.l.b16 %v1429
        %v1832 = vpack.c.b16 %v1825, %v1824
        %v1833 = vpack.c.b16 %v1827, %v1826
        %v1834 = vpack.c.b16 %v1829, %v1828
        %v1835 = vpack.c.b16 %v1831, %v1830
        %v1838 = vunpack.c.l.b16 %v1814
        %v1839 = vunpack.c.l.b16 %v1815
        %v1840 = vpack.c.b16 %v1839, %v1838
        %v1843 = vsel %vm718, %v1832, 0
        %v1846 = vsel %vm718, %v1833, 0
        %v1849 = vsel %vm718, %v1834, 0
        %v1852 = vsel %vm718, %v1835, 0
        %1854 = vmatpush.bf16.msra.mxu0 0
        %1855 = vmatpush.bf16.msra.mxu0 0
        %1856 = vmatpush.bf16.msra.mxu0 0
        %1857 = vmatpush.bf16.msra.mxu0 0
        %1858 = vmatpush.bf16.msra.mxu0 0
        %1859 = vmatpush.bf16.msra.mxu0 0
        %1860 = vmatpush.bf16.msra.mxu0 0
        %1861 = vmatpush.bf16.msra.mxu0 %v1840
        %1862 = vmatmul.bf16.gmra.mxu0 %v1843
        %v1863 = vpop.f32.mrf.mxu0
        %v1864 = vadd.f32 0.0, %v1863
        %v1865 = vpop.f32.mrf.mxu0
        %v1866 = vadd.f32 0.0, %v1865
        %1867 = vmatmul.bf16.gmra.mxu0 %v1846
        %v1868 = vpop.f32.mrf.mxu0
        %v1869 = vadd.f32 0.0, %v1868
        %v1870 = vpop.f32.mrf.mxu0
        %v1871 = vadd.f32 0.0, %v1870
        %1872 = vmatmul.bf16.gmra.mxu0 %v1849
        %v1873 = vpop.f32.mrf.mxu0
        %v1874 = vadd.f32 0.0, %v1873
        %v1875 = vpop.f32.mrf.mxu0
        %v1876 = vadd.f32 0.0, %v1875
        %1877 = vmatmul.bf16.gmra.mxu0 %v1852
        %v1878 = vpop.f32.mrf.mxu0
        %v1879 = vadd.f32 0.0, %v1878
        %v1880 = vpop.f32.mrf.mxu0
        %v1881 = vadd.f32 0.0, %v1880
        %1882 = vdwg.mxu0
        %v1883 = vadd.f32 %v1806, %v1864
        %v1884 = vadd.f32 %v1807, %v1866
        %v1885 = vadd.f32 %v1808, %v1869
        %v1886 = vadd.f32 %v1809, %v1871
        %v1887 = vadd.f32 %v1810, %v1874
        %v1888 = vadd.f32 %v1811, %v1876
        %v1889 = vadd.f32 %v1812, %v1879
        %v1890 = vadd.f32 %v1813, %v1881
        %v1892 = vshrl.u32 %v1415, 16
        %v1894 = vrot.slane %v1892, 4
        %v1895 = vshll.u32 %v1415, 16
        %v1897 = vrot.slane %v1895, 5
        %v1898 = vor.u32 %v1894, %v1897
        %v1899 = vrot.slane %v1898, 4
        %v1901 = vshll.u32 %v1416, 16
        %v1903 = vrot.slane %v1901, 5
        %v1904 = vsel %vm584, %v1899, %v1903
        %v1906 = vshrl.u32 %v1417, 16
        %v1908 = vrot.slane %v1906, 4
        %v1909 = vshll.u32 %v1417, 16
        %v1911 = vrot.slane %v1909, 5
        %v1912 = vor.u32 %v1908, %v1911
        %v1913 = vrot.slane %v1912, 4
        %v1915 = vshll.u32 %v1418, 16
        %v1917 = vrot.slane %v1915, 5
        %v1918 = vsel %vm584, %v1913, %v1917
        %v1920 = vshrl.u32 %v1419, 16
        %v1922 = vrot.slane %v1920, 4
        %v1923 = vshll.u32 %v1419, 16
        %v1925 = vrot.slane %v1923, 5
        %v1926 = vor.u32 %v1922, %v1925
        %v1927 = vrot.slane %v1926, 4
        %v1929 = vshll.u32 %v1420, 16
        %v1931 = vrot.slane %v1929, 5
        %v1932 = vsel %vm584, %v1927, %v1931
        %v1934 = vshrl.u32 %v1421, 16
        %v1936 = vrot.slane %v1934, 4
        %v1937 = vshll.u32 %v1421, 16
        %v1939 = vrot.slane %v1937, 5
        %v1940 = vor.u32 %v1936, %v1939
        %v1941 = vrot.slane %v1940, 4
        %v1943 = vshll.u32 %v1422, 16
        %v1945 = vrot.slane %v1943, 5
        %v1946 = vsel %vm584, %v1941, %v1945
        %v1948 = vshrl.u32 %v1423, 16
        %v1950 = vrot.slane %v1948, 4
        %v1951 = vshll.u32 %v1423, 16
        %v1953 = vrot.slane %v1951, 5
        %v1954 = vor.u32 %v1950, %v1953
        %v1955 = vrot.slane %v1954, 4
        %v1957 = vshll.u32 %v1424, 16
        %v1959 = vrot.slane %v1957, 5
        %v1960 = vsel %vm584, %v1955, %v1959
        %v1962 = vshrl.u32 %v1425, 16
        %v1964 = vrot.slane %v1962, 4
        %v1965 = vshll.u32 %v1425, 16
        %v1967 = vrot.slane %v1965, 5
        %v1968 = vor.u32 %v1964, %v1967
        %v1969 = vrot.slane %v1968, 4
        %v1971 = vshll.u32 %v1426, 16
        %v1973 = vrot.slane %v1971, 5
        %v1974 = vsel %vm584, %v1969, %v1973
        %v1976 = vshrl.u32 %v1427, 16
        %v1978 = vrot.slane %v1976, 4
        %v1979 = vshll.u32 %v1427, 16
        %v1981 = vrot.slane %v1979, 5
        %v1982 = vor.u32 %v1978, %v1981
        %v1983 = vrot.slane %v1982, 4
        %v1985 = vshll.u32 %v1428, 16
        %v1987 = vrot.slane %v1985, 5
        %v1988 = vsel %vm584, %v1983, %v1987
        %v1990 = vshrl.u32 %v1429, 16
        %v1992 = vrot.slane %v1990, 4
        %v1993 = vshll.u32 %v1429, 16
        %v1995 = vrot.slane %v1993, 5
        %v1996 = vor.u32 %v1992, %v1995
        %v1997 = vrot.slane %v1996, 4
        %v1999 = vshll.u32 %v1430, 16
        %v2001 = vrot.slane %v1999, 5
        %v2002 = vsel %vm584, %v1997, %v2001
        %v2003 = vld [vmem:[%s1158] sm:$0xf]
        %v2004 = vld [vmem:[%s1158 + $0x4] sm:$0xf]
        %v2005 = vunpack.c.l.b16 %v1904
        %v2006 = vunpack.c.l.b16 %v1918
        %v2007 = vunpack.c.l.b16 %v1932
        %v2008 = vunpack.c.l.b16 %v1946
        %v2009 = vunpack.c.l.b16 %v1960
        %v2010 = vunpack.c.l.b16 %v1974
        %v2011 = vunpack.c.l.b16 %v1988
        %v2012 = vunpack.c.l.b16 %v2002
        %v2013 = vpack.c.b16 %v2006, %v2005
        %v2014 = vpack.c.b16 %v2008, %v2007
        %v2015 = vpack.c.b16 %v2010, %v2009
        %v2016 = vpack.c.b16 %v2012, %v2011
        %v2019 = vunpack.c.l.b16 %v2003
        %v2020 = vunpack.c.l.b16 %v2004
        %v2021 = vpack.c.b16 %v2020, %v2019
        %v2024 = vsel %vm718, %v2013, 0
        %v2027 = vsel %vm718, %v2014, 0
        %v2030 = vsel %vm718, %v2015, 0
        %v2033 = vsel %vm718, %v2016, 0
        %2035 = vmatpush.bf16.msra.mxu0 0
        %2036 = vmatpush.bf16.msra.mxu0 0
        %2037 = vmatpush.bf16.msra.mxu0 0
        %2038 = vmatpush.bf16.msra.mxu0 0
        %2039 = vmatpush.bf16.msra.mxu0 0
        %2040 = vmatpush.bf16.msra.mxu0 0
        %2041 = vmatpush.bf16.msra.mxu0 0
        %2042 = vmatpush.bf16.msra.mxu0 %v2021
        %2043 = vmatmul.bf16.gmra.mxu0 %v2024
        %v2044 = vpop.f32.mrf.mxu0
        %v2045 = vadd.f32 0.0, %v2044
        %v2046 = vpop.f32.mrf.mxu0
        %v2047 = vadd.f32 0.0, %v2046
        %2048 = vmatmul.bf16.gmra.mxu0 %v2027
        %v2049 = vpop.f32.mrf.mxu0
        %v2050 = vadd.f32 0.0, %v2049
        %v2051 = vpop.f32.mrf.mxu0
        %v2052 = vadd.f32 0.0, %v2051
        %2053 = vmatmul.bf16.gmra.mxu0 %v2030
        %v2054 = vpop.f32.mrf.mxu0
        %v2055 = vadd.f32 0.0, %v2054
        %v2056 = vpop.f32.mrf.mxu0
        %v2057 = vadd.f32 0.0, %v2056
        %2058 = vmatmul.bf16.gmra.mxu0 %v2033
        %v2059 = vpop.f32.mrf.mxu0
        %v2060 = vadd.f32 0.0, %v2059
        %v2061 = vpop.f32.mrf.mxu0
        %v2062 = vadd.f32 0.0, %v2061
        %2063 = vdwg.mxu0
        %v2064 = vadd.f32 %v1883, %v2045
        %v2065 = vadd.f32 %v1884, %v2047
        %v2066 = vadd.f32 %v1885, %v2050
        %v2067 = vadd.f32 %v1886, %v2052
        %v2068 = vadd.f32 %v1887, %v2055
        %v2069 = vadd.f32 %v1888, %v2057
        %v2070 = vadd.f32 %v1889, %v2060
        %v2071 = vadd.f32 %v1890, %v2062
        %v2072 = vld [vmem:[%s1228] sm:$0xf]
        %v2073 = vld [vmem:[%s1228 + $0x4] sm:$0xf]
        %v2075 = vunpack.c.l.b16 %v1431
        %v2076 = vpack.c.b16 %v1826, %v1825
        %v2077 = vpack.c.b16 %v1828, %v1827
        %v2078 = vpack.c.b16 %v1830, %v1829
        %v2079 = vpack.c.b16 %v2075, %v1831
        %v2082 = vunpack.c.l.b16 %v2072
        %v2083 = vunpack.c.l.b16 %v2073
        %v2084 = vpack.c.b16 %v2083, %v2082
        %v2087 = vsel %vm718, %v2076, 0
        %v2090 = vsel %vm718, %v2077, 0
        %v2093 = vsel %vm718, %v2078, 0
        %v2096 = vsel %vm718, %v2079, 0
        %2098 = vmatpush.bf16.msra.mxu0 0
        %2099 = vmatpush.bf16.msra.mxu0 0
        %2100 = vmatpush.bf16.msra.mxu0 0
        %2101 = vmatpush.bf16.msra.mxu0 0
        %2102 = vmatpush.bf16.msra.mxu0 0
        %2103 = vmatpush.bf16.msra.mxu0 0
        %2104 = vmatpush.bf16.msra.mxu0 0
        %2105 = vmatpush.bf16.msra.mxu0 %v2084
        %2106 = vmatmul.bf16.gmra.mxu0 %v2087
        %v2107 = vpop.f32.mrf.mxu0
        %v2108 = vadd.f32 0.0, %v2107
        %v2109 = vpop.f32.mrf.mxu0
        %v2110 = vadd.f32 0.0, %v2109
        %2111 = vmatmul.bf16.gmra.mxu0 %v2090
        %v2112 = vpop.f32.mrf.mxu0
        %v2113 = vadd.f32 0.0, %v2112
        %v2114 = vpop.f32.mrf.mxu0
        %v2115 = vadd.f32 0.0, %v2114
        %2116 = vmatmul.bf16.gmra.mxu0 %v2093
        %v2117 = vpop.f32.mrf.mxu0
        %v2118 = vadd.f32 0.0, %v2117
        %v2119 = vpop.f32.mrf.mxu0
        %v2120 = vadd.f32 0.0, %v2119
        %2121 = vmatmul.bf16.gmra.mxu0 %v2096
        %v2122 = vpop.f32.mrf.mxu0
        %v2123 = vadd.f32 0.0, %v2122
        %v2124 = vpop.f32.mrf.mxu0
        %v2125 = vadd.f32 0.0, %v2124
        %2126 = vdwg.mxu0
        %v2127 = vadd.f32 %v2064, %v2108
        %v2128 = vadd.f32 %v2065, %v2110
        %v2129 = vadd.f32 %v2066, %v2113
        %v2130 = vadd.f32 %v2067, %v2115
        %v2131 = vadd.f32 %v2068, %v2118
        %v2132 = vadd.f32 %v2069, %v2120
        %v2133 = vadd.f32 %v2070, %v2123
        %v2134 = vadd.f32 %v2071, %v2125
        %v2136 = vshrl.u32 %v1431, 16
        %v2138 = vrot.slane %v2136, 4
        %v2139 = vshll.u32 %v1431, 16
        %v2141 = vrot.slane %v2139, 5
        %v2142 = vor.u32 %v2138, %v2141
        %v2143 = vrot.slane %v2142, 4
        %v2145 = vshll.u32 %v1432, 16
        %v2147 = vrot.slane %v2145, 5
        %v2148 = vsel %vm584, %v2143, %v2147
        %v2149 = vld [vmem:[%s1306] sm:$0xf]
        %v2150 = vld [vmem:[%s1306 + $0x4] sm:$0xf]
        %v2151 = vunpack.c.l.b16 %v2148
        %v2152 = vpack.c.b16 %v2007, %v2006
        %v2153 = vpack.c.b16 %v2009, %v2008
        %v2154 = vpack.c.b16 %v2011, %v2010
        %v2155 = vpack.c.b16 %v2151, %v2012
        %v2158 = vunpack.c.l.b16 %v2149
        %v2159 = vunpack.c.l.b16 %v2150
        %v2160 = vpack.c.b16 %v2159, %v2158
        %v2163 = vsel %vm718, %v2152, 0
        %v2166 = vsel %vm718, %v2153, 0
        %v2169 = vsel %vm718, %v2154, 0
        %v2172 = vsel %vm718, %v2155, 0
        %2174 = vmatpush.bf16.msra.mxu0 0
        %2175 = vmatpush.bf16.msra.mxu0 0
        %2176 = vmatpush.bf16.msra.mxu0 0
        %2177 = vmatpush.bf16.msra.mxu0 0
        %2178 = vmatpush.bf16.msra.mxu0 0
        %2179 = vmatpush.bf16.msra.mxu0 0
        %2180 = vmatpush.bf16.msra.mxu0 0
        %2181 = vmatpush.bf16.msra.mxu0 %v2160
        %2182 = vmatmul.bf16.gmra.mxu0 %v2163
        %v2183 = vpop.f32.mrf.mxu0
        %v2184 = vadd.f32 0.0, %v2183
        %v2185 = vpop.f32.mrf.mxu0
        %v2186 = vadd.f32 0.0, %v2185
        %2187 = vmatmul.bf16.gmra.mxu0 %v2166
        %v2188 = vpop.f32.mrf.mxu0
        %v2189 = vadd.f32 0.0, %v2188
        %v2190 = vpop.f32.mrf.mxu0
        %v2191 = vadd.f32 0.0, %v2190
        %2192 = vmatmul.bf16.gmra.mxu0 %v2169
        %v2193 = vpop.f32.mrf.mxu0
        %v2194 = vadd.f32 0.0, %v2193
        %v2195 = vpop.f32.mrf.mxu0
        %v2196 = vadd.f32 0.0, %v2195
        %2197 = vmatmul.bf16.gmra.mxu0 %v2172
        %v2198 = vpop.f32.mrf.mxu0
        %v2199 = vadd.f32 0.0, %v2198
        %v2200 = vpop.f32.mrf.mxu0
        %v2201 = vadd.f32 0.0, %v2200
        %2202 = vdwg.mxu0
        %v2203 = vadd.f32 %v2127, %v2184
        %v2204 = vadd.f32 %v2128, %v2186
        %v2205 = vadd.f32 %v2129, %v2189
        %v2206 = vadd.f32 %v2130, %v2191
        %v2207 = vadd.f32 %v2131, %v2194
        %v2208 = vadd.f32 %v2132, %v2196
        %v2209 = vadd.f32 %v2133, %v2199
        %v2210 = vadd.f32 %v2134, %v2201
        %v2211 = vadd.f32 %v2203, %v1370
        %v2212 = vadd.f32 %v2204, %v1370
        %v2213 = vadd.f32 %v2205, %v1370
        %v2214 = vadd.f32 %v2206, %v1370
        %v2215 = vadd.f32 %v2207, %v1370
        %v2216 = vadd.f32 %v2208, %v1370
        %v2217 = vadd.f32 %v2209, %v1370
        %v2218 = vadd.f32 %v2210, %v1370
        %v2219 = vmax.f32 %v2211, 0.0
        %v2220 = vmax.f32 %v2212, 0.0
        %v2221 = vmax.f32 %v2213, 0.0
        %v2222 = vmax.f32 %v2214, 0.0
        %v2223 = vmax.f32 %v2215, 0.0
        %v2224 = vmax.f32 %v2216, 0.0
        %v2225 = vmax.f32 %v2217, 0.0
        %v2226 = vmax.f32 %v2218, 0.0
        %2227 = vst.msk [vmem:[%s539 + $0x40] sm:$0xff] %vm1388, %v2219
        %2228 = vst.msk [vmem:[%s539 + $0x48] sm:$0xff] %vm1388, %v2220
        %2229 = vst.msk [vmem:[%s539 + $0x50] sm:$0xff] %vm1388, %v2221
        %2230 = vst.msk [vmem:[%s539 + $0x58] sm:$0xff] %vm1388, %v2222
        %2231 = vst.msk [vmem:[%s539 + $0x60] sm:$0xff] %vm1388, %v2223
        %2232 = vst.msk [vmem:[%s539 + $0x68] sm:$0xff] %vm1388, %v2224
        %2233 = vst.msk [vmem:[%s539 + $0x70] sm:$0xff] %vm1388, %v2225
        %2234 = vst.msk [vmem:[%s539 + $0x78] sm:$0xff] %vm1388, %v2226
        %v2235 = vld [vmem:[%s505] sm:$0xf]
        %v2236 = vld [vmem:[%s505 + $0x4] sm:$0x1]
        %v2237 = vld [vmem:[%s505 + $0x8] sm:$0xf]
        %v2238 = vld [vmem:[%s505 + $0xc] sm:$0x1]
        %v2239 = vld [vmem:[%s505 + $0x10] sm:$0xf]
        %v2240 = vld [vmem:[%s505 + $0x14] sm:$0x1]
        %v2241 = vld [vmem:[%s505 + $0x18] sm:$0xf]
        %v2242 = vld [vmem:[%s505 + $0x1c] sm:$0x1]
        %v2243 = vld [vmem:[%s505 + $0x20] sm:$0xf]
        %v2244 = vld [vmem:[%s505 + $0x24] sm:$0x1]
        %v2245 = vld [vmem:[%s505 + $0x28] sm:$0xf]
        %v2246 = vld [vmem:[%s505 + $0x2c] sm:$0x1]
        %v2247 = vld [vmem:[%s505 + $0x30] sm:$0xf]
        %v2248 = vld [vmem:[%s505 + $0x34] sm:$0x1]
        %v2249 = vld [vmem:[%s505 + $0x38] sm:$0xf]
        %v2250 = vld [vmem:[%s505 + $0x3c] sm:$0x1]
        %v2251 = vld [vmem:[%s505 + $0x40] sm:$0xf]
        %v2252 = vld [vmem:[%s505 + $0x44] sm:$0x1]
        %v2253 = vld [vmem:[%s518] sm:$0xf]
        %v2254 = vld [vmem:[%s518 + $0x4] sm:$0x1]
        %v2255 = vld [vmem:[%s518 + $0x8] sm:$0xf]
        %v2256 = vld [vmem:[%s518 + $0xc] sm:$0x1]
        %v2257 = vld [vmem:[%s518 + $0x10] sm:$0xf]
        %v2258 = vld [vmem:[%s518 + $0x14] sm:$0x1]
        %v2259 = vld [vmem:[%s518 + $0x18] sm:$0xf]
        %v2260 = vld [vmem:[%s518 + $0x1c] sm:$0x1]
        %v2261 = vld [vmem:[%s518 + $0x20] sm:$0xf]
        %v2262 = vld [vmem:[%s518 + $0x24] sm:$0x1]
        %v2263 = vld [vmem:[%s518 + $0x28] sm:$0xf]
        %v2264 = vld [vmem:[%s518 + $0x2c] sm:$0x1]
        %v2265 = vld [vmem:[%s518 + $0x30] sm:$0xf]
        %v2266 = vld [vmem:[%s518 + $0x34] sm:$0x1]
        %v2267 = vld [vmem:[%s518 + $0x38] sm:$0xf]
        %v2268 = vld [vmem:[%s518 + $0x3c] sm:$0x1]
        %v2269 = vld [vmem:[%s518 + $0x40] sm:$0xf]
        %v2270 = vld [vmem:[%s518 + $0x44] sm:$0x1]
        %v2271 = vld [vmem:[#allocation2] sm:$0xf]
        %v2272 = vld [vmem:[#allocation2 + $0x4] sm:$0xf]
        %v2274 = vshrl.u32 %v2235, 16
        %v2276 = vrot.slane %v2274, 4
        %v2277 = vshll.u32 %v2235, 16
        %v2279 = vrot.slane %v2277, 5
        %v2280 = vor.u32 %v2276, %v2279
        %v2281 = vrot.slane %v2280, 4
        %v2283 = vshll.u32 %v2236, 16
        %v2285 = vrot.slane %v2283, 5
        %v2286 = vsel %vm584, %v2281, %v2285
        %v2288 = vshrl.u32 %v2237, 16
        %v2290 = vrot.slane %v2288, 4
        %v2291 = vshll.u32 %v2237, 16
        %v2293 = vrot.slane %v2291, 5
        %v2294 = vor.u32 %v2290, %v2293
        %v2295 = vrot.slane %v2294, 4
        %v2297 = vshll.u32 %v2238, 16
        %v2299 = vrot.slane %v2297, 5
        %v2300 = vsel %vm584, %v2295, %v2299
        %v2302 = vshrl.u32 %v2239, 16
        %v2304 = vrot.slane %v2302, 4
        %v2305 = vshll.u32 %v2239, 16
        %v2307 = vrot.slane %v2305, 5
        %v2308 = vor.u32 %v2304, %v2307
        %v2309 = vrot.slane %v2308, 4
        %v2311 = vshll.u32 %v2240, 16
        %v2313 = vrot.slane %v2311, 5
        %v2314 = vsel %vm584, %v2309, %v2313
        %v2316 = vshrl.u32 %v2241, 16
        %v2318 = vrot.slane %v2316, 4
        %v2319 = vshll.u32 %v2241, 16
        %v2321 = vrot.slane %v2319, 5
        %v2322 = vor.u32 %v2318, %v2321
        %v2323 = vrot.slane %v2322, 4
        %v2325 = vshll.u32 %v2242, 16
        %v2327 = vrot.slane %v2325, 5
        %v2328 = vsel %vm584, %v2323, %v2327
        %v2330 = vshrl.u32 %v2243, 16
        %v2332 = vrot.slane %v2330, 4
        %v2333 = vshll.u32 %v2243, 16
        %v2335 = vrot.slane %v2333, 5
        %v2336 = vor.u32 %v2332, %v2335
        %v2337 = vrot.slane %v2336, 4
        %v2339 = vshll.u32 %v2244, 16
        %v2341 = vrot.slane %v2339, 5
        %v2342 = vsel %vm584, %v2337, %v2341
        %v2344 = vshrl.u32 %v2245, 16
        %v2346 = vrot.slane %v2344, 4
        %v2347 = vshll.u32 %v2245, 16
        %v2349 = vrot.slane %v2347, 5
        %v2350 = vor.u32 %v2346, %v2349
        %v2351 = vrot.slane %v2350, 4
        %v2353 = vshll.u32 %v2246, 16
        %v2355 = vrot.slane %v2353, 5
        %v2356 = vsel %vm584, %v2351, %v2355
        %v2358 = vshrl.u32 %v2247, 16
        %v2360 = vrot.slane %v2358, 4
        %v2361 = vshll.u32 %v2247, 16
        %v2363 = vrot.slane %v2361, 5
        %v2364 = vor.u32 %v2360, %v2363
        %v2365 = vrot.slane %v2364, 4
        %v2367 = vshll.u32 %v2248, 16
        %v2369 = vrot.slane %v2367, 5
        %v2370 = vsel %vm584, %v2365, %v2369
        %v2372 = vshrl.u32 %v2249, 16
        %v2374 = vrot.slane %v2372, 4
        %v2375 = vshll.u32 %v2249, 16
        %v2377 = vrot.slane %v2375, 5
        %v2378 = vor.u32 %v2374, %v2377
        %v2379 = vrot.slane %v2378, 4
        %v2381 = vshll.u32 %v2250, 16
        %v2383 = vrot.slane %v2381, 5
        %v2384 = vsel %vm584, %v2379, %v2383
        %v2385 = vld [vmem:[%s697] sm:$0xf]
        %v2386 = vld [vmem:[%s697 + $0x4] sm:$0xf]
        %v2387 = vunpack.c.l.b16 %v2286
        %v2388 = vunpack.c.l.b16 %v2300
        %v2389 = vunpack.c.l.b16 %v2314
        %v2390 = vunpack.c.l.b16 %v2328
        %v2391 = vunpack.c.l.b16 %v2342
        %v2392 = vunpack.c.l.b16 %v2356
        %v2393 = vunpack.c.l.b16 %v2370
        %v2394 = vunpack.c.l.b16 %v2384
        %v2395 = vpack.c.b16 %v2388, %v2387
        %v2396 = vpack.c.b16 %v2390, %v2389
        %v2397 = vpack.c.b16 %v2392, %v2391
        %v2398 = vpack.c.b16 %v2394, %v2393
        %v2401 = vunpack.c.l.b16 %v2385
        %v2402 = vunpack.c.l.b16 %v2386
        %v2403 = vpack.c.b16 %v2402, %v2401
        %v2406 = vsel %vm718, %v2395, 0
        %v2409 = vsel %vm718, %v2396, 0
        %v2412 = vsel %vm718, %v2397, 0
        %v2415 = vsel %vm718, %v2398, 0
        %2417 = vmatpush.bf16.msra.mxu0 0
        %2418 = vmatpush.bf16.msra.mxu0 0
        %2419 = vmatpush.bf16.msra.mxu0 0
        %2420 = vmatpush.bf16.msra.mxu0 0
        %2421 = vmatpush.bf16.msra.mxu0 0
        %2422 = vmatpush.bf16.msra.mxu0 0
        %2423 = vmatpush.bf16.msra.mxu0 0
        %2424 = vmatpush.bf16.msra.mxu0 %v2403
        %2425 = vmatmul.bf16.gmra.mxu0 %v2406
        %v2426 = vpop.f32.mrf.mxu0
        %v2427 = vadd.f32 0.0, %v2426
        %v2428 = vpop.f32.mrf.mxu0
        %v2429 = vadd.f32 0.0, %v2428
        %2430 = vmatmul.bf16.gmra.mxu0 %v2409
        %v2431 = vpop.f32.mrf.mxu0
        %v2432 = vadd.f32 0.0, %v2431
        %v2433 = vpop.f32.mrf.mxu0
        %v2434 = vadd.f32 0.0, %v2433
        %2435 = vmatmul.bf16.gmra.mxu0 %v2412
        %v2436 = vpop.f32.mrf.mxu0
        %v2437 = vadd.f32 0.0, %v2436
        %v2438 = vpop.f32.mrf.mxu0
        %v2439 = vadd.f32 0.0, %v2438
        %2440 = vmatmul.bf16.gmra.mxu0 %v2415
        %v2441 = vpop.f32.mrf.mxu0
        %v2442 = vadd.f32 0.0, %v2441
        %v2443 = vpop.f32.mrf.mxu0
        %v2444 = vadd.f32 0.0, %v2443
        %2445 = vdwg.mxu0
        %v2454 = vunpack.c.l.b16 %v2235
        %v2455 = vunpack.c.l.b16 %v2237
        %v2456 = vunpack.c.l.b16 %v2239
        %v2457 = vunpack.c.l.b16 %v2241
        %v2458 = vunpack.c.l.b16 %v2243
        %v2459 = vunpack.c.l.b16 %v2245
        %v2460 = vunpack.c.l.b16 %v2247
        %v2461 = vunpack.c.l.b16 %v2249
        %v2462 = vpack.c.b16 %v2455, %v2454
        %v2463 = vpack.c.b16 %v2457, %v2456
        %v2464 = vpack.c.b16 %v2459, %v2458
        %v2465 = vpack.c.b16 %v2461, %v2460
        %v2468 = vunpack.c.l.b16 %v2271
        %v2469 = vunpack.c.l.b16 %v2272
        %v2470 = vpack.c.b16 %v2469, %v2468
        %v2473 = vsel %vm718, %v2462, 0
        %v2476 = vsel %vm718, %v2463, 0
        %v2479 = vsel %vm718, %v2464, 0
        %v2482 = vsel %vm718, %v2465, 0
        %2484 = vmatpush.bf16.msra.mxu0 0
        %2485 = vmatpush.bf16.msra.mxu0 0
        %2486 = vmatpush.bf16.msra.mxu0 0
        %2487 = vmatpush.bf16.msra.mxu0 0
        %2488 = vmatpush.bf16.msra.mxu0 0
        %2489 = vmatpush.bf16.msra.mxu0 0
        %2490 = vmatpush.bf16.msra.mxu0 0
        %2491 = vmatpush.bf16.msra.mxu0 %v2470
        %2492 = vmatmul.bf16.gmra.mxu0 %v2473
        %v2493 = vpop.f32.mrf.mxu0
        %v2494 = vadd.f32 %v2427, %v2493
        %v2495 = vpop.f32.mrf.mxu0
        %v2496 = vadd.f32 %v2429, %v2495
        %2497 = vmatmul.bf16.gmra.mxu0 %v2476
        %v2498 = vpop.f32.mrf.mxu0
        %v2499 = vadd.f32 %v2432, %v2498
        %v2500 = vpop.f32.mrf.mxu0
        %v2501 = vadd.f32 %v2434, %v2500
        %2502 = vmatmul.bf16.gmra.mxu0 %v2479
        %v2503 = vpop.f32.mrf.mxu0
        %v2504 = vadd.f32 %v2437, %v2503
        %v2505 = vpop.f32.mrf.mxu0
        %v2506 = vadd.f32 %v2439, %v2505
        %2507 = vmatmul.bf16.gmra.mxu0 %v2482
        %v2508 = vpop.f32.mrf.mxu0
        %v2509 = vadd.f32 %v2442, %v2508
        %v2510 = vpop.f32.mrf.mxu0
        %v2511 = vadd.f32 %v2444, %v2510
        %2512 = vdwg.mxu0
        %v2513 = vld [vmem:[%s827] sm:$0xf]
        %v2514 = vld [vmem:[%s827 + $0x4] sm:$0xf]
        %v2516 = vunpack.c.l.b16 %v2251
        %v2517 = vpack.c.b16 %v2456, %v2455
        %v2518 = vpack.c.b16 %v2458, %v2457
        %v2519 = vpack.c.b16 %v2460, %v2459
        %v2520 = vpack.c.b16 %v2516, %v2461
        %v2523 = vunpack.c.l.b16 %v2513
        %v2524 = vunpack.c.l.b16 %v2514
        %v2525 = vpack.c.b16 %v2524, %v2523
        %v2528 = vsel %vm718, %v2517, 0
        %v2531 = vsel %vm718, %v2518, 0
        %v2534 = vsel %vm718, %v2519, 0
        %v2537 = vsel %vm718, %v2520, 0
        %2539 = vmatpush.bf16.msra.mxu0 0
        %2540 = vmatpush.bf16.msra.mxu0 0
        %2541 = vmatpush.bf16.msra.mxu0 0
        %2542 = vmatpush.bf16.msra.mxu0 0
        %2543 = vmatpush.bf16.msra.mxu0 0
        %2544 = vmatpush.bf16.msra.mxu0 0
        %2545 = vmatpush.bf16.msra.mxu0 0
        %2546 = vmatpush.bf16.msra.mxu0 %v2525
        %2547 = vmatmul.bf16.gmra.mxu0 %v2528
        %v2548 = vpop.f32.mrf.mxu0
        %v2549 = vadd.f32 0.0, %v2548
        %v2550 = vpop.f32.mrf.mxu0
        %v2551 = vadd.f32 0.0, %v2550
        %2552 = vmatmul.bf16.gmra.mxu0 %v2531
        %v2553 = vpop.f32.mrf.mxu0
        %v2554 = vadd.f32 0.0, %v2553
        %v2555 = vpop.f32.mrf.mxu0
        %v2556 = vadd.f32 0.0, %v2555
        %2557 = vmatmul.bf16.gmra.mxu0 %v2534
        %v2558 = vpop.f32.mrf.mxu0
        %v2559 = vadd.f32 0.0, %v2558
        %v2560 = vpop.f32.mrf.mxu0
        %v2561 = vadd.f32 0.0, %v2560
        %2562 = vmatmul.bf16.gmra.mxu0 %v2537
        %v2563 = vpop.f32.mrf.mxu0
        %v2564 = vadd.f32 0.0, %v2563
        %v2565 = vpop.f32.mrf.mxu0
        %v2566 = vadd.f32 0.0, %v2565
        %2567 = vdwg.mxu0
        %v2568 = vadd.f32 %v2494, %v2549
        %v2569 = vadd.f32 %v2496, %v2551
        %v2570 = vadd.f32 %v2499, %v2554
        %v2571 = vadd.f32 %v2501, %v2556
        %v2572 = vadd.f32 %v2504, %v2559
        %v2573 = vadd.f32 %v2506, %v2561
        %v2574 = vadd.f32 %v2509, %v2564
        %v2575 = vadd.f32 %v2511, %v2566
        %v2577 = vshrl.u32 %v2251, 16
        %v2579 = vrot.slane %v2577, 4
        %v2580 = vshll.u32 %v2251, 16
        %v2582 = vrot.slane %v2580, 5
        %v2583 = vor.u32 %v2579, %v2582
        %v2584 = vrot.slane %v2583, 4
        %v2586 = vshll.u32 %v2252, 16
        %v2588 = vrot.slane %v2586, 5
        %v2589 = vsel %vm584, %v2584, %v2588
        %v2590 = vld [vmem:[%s905] sm:$0xf]
        %v2591 = vld [vmem:[%s905 + $0x4] sm:$0xf]
        %v2592 = vunpack.c.l.b16 %v2589
        %v2593 = vpack.c.b16 %v2389, %v2388
        %v2594 = vpack.c.b16 %v2391, %v2390
        %v2595 = vpack.c.b16 %v2393, %v2392
        %v2596 = vpack.c.b16 %v2592, %v2394
        %v2599 = vunpack.c.l.b16 %v2590
        %v2600 = vunpack.c.l.b16 %v2591
        %v2601 = vpack.c.b16 %v2600, %v2599
        %v2604 = vsel %vm718, %v2593, 0
        %v2607 = vsel %vm718, %v2594, 0
        %v2610 = vsel %vm718, %v2595, 0
        %v2613 = vsel %vm718, %v2596, 0
        %2615 = vmatpush.bf16.msra.mxu0 0
        %2616 = vmatpush.bf16.msra.mxu0 0
        %2617 = vmatpush.bf16.msra.mxu0 0
        %2618 = vmatpush.bf16.msra.mxu0 0
        %2619 = vmatpush.bf16.msra.mxu0 0
        %2620 = vmatpush.bf16.msra.mxu0 0
        %2621 = vmatpush.bf16.msra.mxu0 0
        %2622 = vmatpush.bf16.msra.mxu0 %v2601
        %2623 = vmatmul.bf16.gmra.mxu0 %v2604
        %v2624 = vpop.f32.mrf.mxu0
        %v2625 = vadd.f32 0.0, %v2624
        %v2626 = vpop.f32.mrf.mxu0
        %v2627 = vadd.f32 0.0, %v2626
        %2628 = vmatmul.bf16.gmra.mxu0 %v2607
        %v2629 = vpop.f32.mrf.mxu0
        %v2630 = vadd.f32 0.0, %v2629
        %v2631 = vpop.f32.mrf.mxu0
        %v2632 = vadd.f32 0.0, %v2631
        %2633 = vmatmul.bf16.gmra.mxu0 %v2610
        %v2634 = vpop.f32.mrf.mxu0
        %v2635 = vadd.f32 0.0, %v2634
        %v2636 = vpop.f32.mrf.mxu0
        %v2637 = vadd.f32 0.0, %v2636
        %2638 = vmatmul.bf16.gmra.mxu0 %v2613
        %v2639 = vpop.f32.mrf.mxu0
        %v2640 = vadd.f32 0.0, %v2639
        %v2641 = vpop.f32.mrf.mxu0
        %v2642 = vadd.f32 0.0, %v2641
        %2643 = vdwg.mxu0
        %v2644 = vadd.f32 %v2568, %v2625
        %v2645 = vadd.f32 %v2569, %v2627
        %v2646 = vadd.f32 %v2570, %v2630
        %v2647 = vadd.f32 %v2571, %v2632
        %v2648 = vadd.f32 %v2572, %v2635
        %v2649 = vadd.f32 %v2573, %v2637
        %v2650 = vadd.f32 %v2574, %v2640
        %v2651 = vadd.f32 %v2575, %v2642
        %v2652 = vld [vmem:[%s968] sm:$0xf]
        %v2653 = vld [vmem:[%s968 + $0x4] sm:$0xf]
        %v2662 = vunpack.c.l.b16 %v2253
        %v2663 = vunpack.c.l.b16 %v2255
        %v2664 = vunpack.c.l.b16 %v2257
        %v2665 = vunpack.c.l.b16 %v2259
        %v2666 = vunpack.c.l.b16 %v2261
        %v2667 = vunpack.c.l.b16 %v2263
        %v2668 = vunpack.c.l.b16 %v2265
        %v2669 = vunpack.c.l.b16 %v2267
        %v2670 = vpack.c.b16 %v2663, %v2662
        %v2671 = vpack.c.b16 %v2665, %v2664
        %v2672 = vpack.c.b16 %v2667, %v2666
        %v2673 = vpack.c.b16 %v2669, %v2668
        %v2676 = vunpack.c.l.b16 %v2652
        %v2677 = vunpack.c.l.b16 %v2653
        %v2678 = vpack.c.b16 %v2677, %v2676
        %v2681 = vsel %vm718, %v2670, 0
        %v2684 = vsel %vm718, %v2671, 0
        %v2687 = vsel %vm718, %v2672, 0
        %v2690 = vsel %vm718, %v2673, 0
        %2692 = vmatpush.bf16.msra.mxu0 0
        %2693 = vmatpush.bf16.msra.mxu0 0
        %2694 = vmatpush.bf16.msra.mxu0 0
        %2695 = vmatpush.bf16.msra.mxu0 0
        %2696 = vmatpush.bf16.msra.mxu0 0
        %2697 = vmatpush.bf16.msra.mxu0 0
        %2698 = vmatpush.bf16.msra.mxu0 0
        %2699 = vmatpush.bf16.msra.mxu0 %v2678
        %2700 = vmatmul.bf16.gmra.mxu0 %v2681
        %v2701 = vpop.f32.mrf.mxu0
        %v2702 = vadd.f32 0.0, %v2701
        %v2703 = vpop.f32.mrf.mxu0
        %v2704 = vadd.f32 0.0, %v2703
        %2705 = vmatmul.bf16.gmra.mxu0 %v2684
        %v2706 = vpop.f32.mrf.mxu0
        %v2707 = vadd.f32 0.0, %v2706
        %v2708 = vpop.f32.mrf.mxu0
        %v2709 = vadd.f32 0.0, %v2708
        %2710 = vmatmul.bf16.gmra.mxu0 %v2687
        %v2711 = vpop.f32.mrf.mxu0
        %v2712 = vadd.f32 0.0, %v2711
        %v2713 = vpop.f32.mrf.mxu0
        %v2714 = vadd.f32 0.0, %v2713
        %2715 = vmatmul.bf16.gmra.mxu0 %v2690
        %v2716 = vpop.f32.mrf.mxu0
        %v2717 = vadd.f32 0.0, %v2716
        %v2718 = vpop.f32.mrf.mxu0
        %v2719 = vadd.f32 0.0, %v2718
        %2720 = vdwg.mxu0
        %v2721 = vadd.f32 %v2644, %v2702
        %v2722 = vadd.f32 %v2645, %v2704
        %v2723 = vadd.f32 %v2646, %v2707
        %v2724 = vadd.f32 %v2647, %v2709
        %v2725 = vadd.f32 %v2648, %v2712
        %v2726 = vadd.f32 %v2649, %v2714
        %v2727 = vadd.f32 %v2650, %v2717
        %v2728 = vadd.f32 %v2651, %v2719
        %v2730 = vshrl.u32 %v2253, 16
        %v2732 = vrot.slane %v2730, 4
        %v2733 = vshll.u32 %v2253, 16
        %v2735 = vrot.slane %v2733, 5
        %v2736 = vor.u32 %v2732, %v2735
        %v2737 = vrot.slane %v2736, 4
        %v2739 = vshll.u32 %v2254, 16
        %v2741 = vrot.slane %v2739, 5
        %v2742 = vsel %vm584, %v2737, %v2741
        %v2744 = vshrl.u32 %v2255, 16
        %v2746 = vrot.slane %v2744, 4
        %v2747 = vshll.u32 %v2255, 16
        %v2749 = vrot.slane %v2747, 5
        %v2750 = vor.u32 %v2746, %v2749
        %v2751 = vrot.slane %v2750, 4
        %v2753 = vshll.u32 %v2256, 16
        %v2755 = vrot.slane %v2753, 5
        %v2756 = vsel %vm584, %v2751, %v2755
        %v2758 = vshrl.u32 %v2257, 16
        %v2760 = vrot.slane %v2758, 4
        %v2761 = vshll.u32 %v2257, 16
        %v2763 = vrot.slane %v2761, 5
        %v2764 = vor.u32 %v2760, %v2763
        %v2765 = vrot.slane %v2764, 4
        %v2767 = vshll.u32 %v2258, 16
        %v2769 = vrot.slane %v2767, 5
        %v2770 = vsel %vm584, %v2765, %v2769
        %v2772 = vshrl.u32 %v2259, 16
        %v2774 = vrot.slane %v2772, 4
        %v2775 = vshll.u32 %v2259, 16
        %v2777 = vrot.slane %v2775, 5
        %v2778 = vor.u32 %v2774, %v2777
        %v2779 = vrot.slane %v2778, 4
        %v2781 = vshll.u32 %v2260, 16
        %v2783 = vrot.slane %v2781, 5
        %v2784 = vsel %vm584, %v2779, %v2783
        %v2786 = vshrl.u32 %v2261, 16
        %v2788 = vrot.slane %v2786, 4
        %v2789 = vshll.u32 %v2261, 16
        %v2791 = vrot.slane %v2789, 5
        %v2792 = vor.u32 %v2788, %v2791
        %v2793 = vrot.slane %v2792, 4
        %v2795 = vshll.u32 %v2262, 16
        %v2797 = vrot.slane %v2795, 5
        %v2798 = vsel %vm584, %v2793, %v2797
        %v2800 = vshrl.u32 %v2263, 16
        %v2802 = vrot.slane %v2800, 4
        %v2803 = vshll.u32 %v2263, 16
        %v2805 = vrot.slane %v2803, 5
        %v2806 = vor.u32 %v2802, %v2805
        %v2807 = vrot.slane %v2806, 4
        %v2809 = vshll.u32 %v2264, 16
        %v2811 = vrot.slane %v2809, 5
        %v2812 = vsel %vm584, %v2807, %v2811
        %v2814 = vshrl.u32 %v2265, 16
        %v2816 = vrot.slane %v2814, 4
        %v2817 = vshll.u32 %v2265, 16
        %v2819 = vrot.slane %v2817, 5
        %v2820 = vor.u32 %v2816, %v2819
        %v2821 = vrot.slane %v2820, 4
        %v2823 = vshll.u32 %v2266, 16
        %v2825 = vrot.slane %v2823, 5
        %v2826 = vsel %vm584, %v2821, %v2825
        %v2828 = vshrl.u32 %v2267, 16
        %v2830 = vrot.slane %v2828, 4
        %v2831 = vshll.u32 %v2267, 16
        %v2833 = vrot.slane %v2831, 5
        %v2834 = vor.u32 %v2830, %v2833
        %v2835 = vrot.slane %v2834, 4
        %v2837 = vshll.u32 %v2268, 16
        %v2839 = vrot.slane %v2837, 5
        %v2840 = vsel %vm584, %v2835, %v2839
        %v2841 = vld [vmem:[%s1158] sm:$0xf]
        %v2842 = vld [vmem:[%s1158 + $0x4] sm:$0xf]
        %v2843 = vunpack.c.l.b16 %v2742
        %v2844 = vunpack.c.l.b16 %v2756
        %v2845 = vunpack.c.l.b16 %v2770
        %v2846 = vunpack.c.l.b16 %v2784
        %v2847 = vunpack.c.l.b16 %v2798
        %v2848 = vunpack.c.l.b16 %v2812
        %v2849 = vunpack.c.l.b16 %v2826
        %v2850 = vunpack.c.l.b16 %v2840
        %v2851 = vpack.c.b16 %v2844, %v2843
        %v2852 = vpack.c.b16 %v2846, %v2845
        %v2853 = vpack.c.b16 %v2848, %v2847
        %v2854 = vpack.c.b16 %v2850, %v2849
        %v2857 = vunpack.c.l.b16 %v2841
        %v2858 = vunpack.c.l.b16 %v2842
        %v2859 = vpack.c.b16 %v2858, %v2857
        %v2862 = vsel %vm718, %v2851, 0
        %v2865 = vsel %vm718, %v2852, 0
        %v2868 = vsel %vm718, %v2853, 0
        %v2871 = vsel %vm718, %v2854, 0
        %2873 = vmatpush.bf16.msra.mxu0 0
        %2874 = vmatpush.bf16.msra.mxu0 0
        %2875 = vmatpush.bf16.msra.mxu0 0
        %2876 = vmatpush.bf16.msra.mxu0 0
        %2877 = vmatpush.bf16.msra.mxu0 0
        %2878 = vmatpush.bf16.msra.mxu0 0
        %2879 = vmatpush.bf16.msra.mxu0 0
        %2880 = vmatpush.bf16.msra.mxu0 %v2859
        %2881 = vmatmul.bf16.gmra.mxu0 %v2862
        %v2882 = vpop.f32.mrf.mxu0
        %v2883 = vadd.f32 0.0, %v2882
        %v2884 = vpop.f32.mrf.mxu0
        %v2885 = vadd.f32 0.0, %v2884
        %2886 = vmatmul.bf16.gmra.mxu0 %v2865
        %v2887 = vpop.f32.mrf.mxu0
        %v2888 = vadd.f32 0.0, %v2887
        %v2889 = vpop.f32.mrf.mxu0
        %v2890 = vadd.f32 0.0, %v2889
        %2891 = vmatmul.bf16.gmra.mxu0 %v2868
        %v2892 = vpop.f32.mrf.mxu0
        %v2893 = vadd.f32 0.0, %v2892
        %v2894 = vpop.f32.mrf.mxu0
        %v2895 = vadd.f32 0.0, %v2894
        %2896 = vmatmul.bf16.gmra.mxu0 %v2871
        %v2897 = vpop.f32.mrf.mxu0
        %v2898 = vadd.f32 0.0, %v2897
        %v2899 = vpop.f32.mrf.mxu0
        %v2900 = vadd.f32 0.0, %v2899
        %2901 = vdwg.mxu0
        %v2902 = vadd.f32 %v2721, %v2883
        %v2903 = vadd.f32 %v2722, %v2885
        %v2904 = vadd.f32 %v2723, %v2888
        %v2905 = vadd.f32 %v2724, %v2890
        %v2906 = vadd.f32 %v2725, %v2893
        %v2907 = vadd.f32 %v2726, %v2895
        %v2908 = vadd.f32 %v2727, %v2898
        %v2909 = vadd.f32 %v2728, %v2900
        %v2910 = vld [vmem:[%s1228] sm:$0xf]
        %v2911 = vld [vmem:[%s1228 + $0x4] sm:$0xf]
        %v2913 = vunpack.c.l.b16 %v2269
        %v2914 = vpack.c.b16 %v2664, %v2663
        %v2915 = vpack.c.b16 %v2666, %v2665
        %v2916 = vpack.c.b16 %v2668, %v2667
        %v2917 = vpack.c.b16 %v2913, %v2669
        %v2920 = vunpack.c.l.b16 %v2910
        %v2921 = vunpack.c.l.b16 %v2911
        %v2922 = vpack.c.b16 %v2921, %v2920
        %v2925 = vsel %vm718, %v2914, 0
        %v2928 = vsel %vm718, %v2915, 0
        %v2931 = vsel %vm718, %v2916, 0
        %v2934 = vsel %vm718, %v2917, 0
        %2936 = vmatpush.bf16.msra.mxu0 0
        %2937 = vmatpush.bf16.msra.mxu0 0
        %2938 = vmatpush.bf16.msra.mxu0 0
        %2939 = vmatpush.bf16.msra.mxu0 0
        %2940 = vmatpush.bf16.msra.mxu0 0
        %2941 = vmatpush.bf16.msra.mxu0 0
        %2942 = vmatpush.bf16.msra.mxu0 0
        %2943 = vmatpush.bf16.msra.mxu0 %v2922
        %2944 = vmatmul.bf16.gmra.mxu0 %v2925
        %v2945 = vpop.f32.mrf.mxu0
        %v2946 = vadd.f32 0.0, %v2945
        %v2947 = vpop.f32.mrf.mxu0
        %v2948 = vadd.f32 0.0, %v2947
        %2949 = vmatmul.bf16.gmra.mxu0 %v2928
        %v2950 = vpop.f32.mrf.mxu0
        %v2951 = vadd.f32 0.0, %v2950
        %v2952 = vpop.f32.mrf.mxu0
        %v2953 = vadd.f32 0.0, %v2952
        %2954 = vmatmul.bf16.gmra.mxu0 %v2931
        %v2955 = vpop.f32.mrf.mxu0
        %v2956 = vadd.f32 0.0, %v2955
        %v2957 = vpop.f32.mrf.mxu0
        %v2958 = vadd.f32 0.0, %v2957
        %2959 = vmatmul.bf16.gmra.mxu0 %v2934
        %v2960 = vpop.f32.mrf.mxu0
        %v2961 = vadd.f32 0.0, %v2960
        %v2962 = vpop.f32.mrf.mxu0
        %v2963 = vadd.f32 0.0, %v2962
        %2964 = vdwg.mxu0
        %v2965 = vadd.f32 %v2902, %v2946
        %v2966 = vadd.f32 %v2903, %v2948
        %v2967 = vadd.f32 %v2904, %v2951
        %v2968 = vadd.f32 %v2905, %v2953
        %v2969 = vadd.f32 %v2906, %v2956
        %v2970 = vadd.f32 %v2907, %v2958
        %v2971 = vadd.f32 %v2908, %v2961
        %v2972 = vadd.f32 %v2909, %v2963
        %v2974 = vshrl.u32 %v2269, 16
        %v2976 = vrot.slane %v2974, 4
        %v2977 = vshll.u32 %v2269, 16
        %v2979 = vrot.slane %v2977, 5
        %v2980 = vor.u32 %v2976, %v2979
        %v2981 = vrot.slane %v2980, 4
        %v2983 = vshll.u32 %v2270, 16
        %v2985 = vrot.slane %v2983, 5
        %v2986 = vsel %vm584, %v2981, %v2985
        %v2987 = vld [vmem:[%s1306] sm:$0xf]
        %v2988 = vld [vmem:[%s1306 + $0x4] sm:$0xf]
        %v2989 = vunpack.c.l.b16 %v2986
        %v2990 = vpack.c.b16 %v2845, %v2844
        %v2991 = vpack.c.b16 %v2847, %v2846
        %v2992 = vpack.c.b16 %v2849, %v2848
        %v2993 = vpack.c.b16 %v2989, %v2850
        %v2996 = vunpack.c.l.b16 %v2987
        %v2997 = vunpack.c.l.b16 %v2988
        %v2998 = vpack.c.b16 %v2997, %v2996
        %v3001 = vsel %vm718, %v2990, 0
        %v3004 = vsel %vm718, %v2991, 0
        %v3007 = vsel %vm718, %v2992, 0
        %v3010 = vsel %vm718, %v2993, 0
        %3012 = vmatpush.bf16.msra.mxu0 0
        %3013 = vmatpush.bf16.msra.mxu0 0
        %3014 = vmatpush.bf16.msra.mxu0 0
        %3015 = vmatpush.bf16.msra.mxu0 0
        %3016 = vmatpush.bf16.msra.mxu0 0
        %3017 = vmatpush.bf16.msra.mxu0 0
        %3018 = vmatpush.bf16.msra.mxu0 0
        %3019 = vmatpush.bf16.msra.mxu0 %v2998
        %3020 = vmatmul.bf16.gmra.mxu0 %v3001
        %v3021 = vpop.f32.mrf.mxu0
        %v3022 = vadd.f32 0.0, %v3021
        %v3023 = vpop.f32.mrf.mxu0
        %v3024 = vadd.f32 0.0, %v3023
        %3025 = vmatmul.bf16.gmra.mxu0 %v3004
        %v3026 = vpop.f32.mrf.mxu0
        %v3027 = vadd.f32 0.0, %v3026
        %v3028 = vpop.f32.mrf.mxu0
        %v3029 = vadd.f32 0.0, %v3028
        %3030 = vmatmul.bf16.gmra.mxu0 %v3007
        %v3031 = vpop.f32.mrf.mxu0
        %v3032 = vadd.f32 0.0, %v3031
        %v3033 = vpop.f32.mrf.mxu0
        %v3034 = vadd.f32 0.0, %v3033
        %3035 = vmatmul.bf16.gmra.mxu0 %v3010
        %v3036 = vpop.f32.mrf.mxu0
        %v3037 = vadd.f32 0.0, %v3036
        %v3038 = vpop.f32.mrf.mxu0
        %v3039 = vadd.f32 0.0, %v3038
        %3040 = vdwg.mxu0
        %v3041 = vadd.f32 %v2965, %v3022
        %v3042 = vadd.f32 %v2966, %v3024
        %v3043 = vadd.f32 %v2967, %v3027
        %v3044 = vadd.f32 %v2968, %v3029
        %v3045 = vadd.f32 %v2969, %v3032
        %v3046 = vadd.f32 %v2970, %v3034
        %v3047 = vadd.f32 %v2971, %v3037
        %v3048 = vadd.f32 %v2972, %v3039
        %v3049 = vadd.f32 %v3041, %v1370
        %v3050 = vadd.f32 %v3042, %v1370
        %v3051 = vadd.f32 %v3043, %v1370
        %v3052 = vadd.f32 %v3044, %v1370
        %v3053 = vadd.f32 %v3045, %v1370
        %v3054 = vadd.f32 %v3046, %v1370
        %v3055 = vadd.f32 %v3047, %v1370
        %v3056 = vadd.f32 %v3048, %v1370
        %v3057 = vmax.f32 %v3049, 0.0
        %v3058 = vmax.f32 %v3050, 0.0
        %v3059 = vmax.f32 %v3051, 0.0
        %v3060 = vmax.f32 %v3052, 0.0
        %v3061 = vmax.f32 %v3053, 0.0
        %v3062 = vmax.f32 %v3054, 0.0
        %v3063 = vmax.f32 %v3055, 0.0
        %v3064 = vmax.f32 %v3056, 0.0
        %3065 = vst.msk [vmem:[%s539 + $0x80] sm:$0xff] %vm1388, %v3057
        %3066 = vst.msk [vmem:[%s539 + $0x88] sm:$0xff] %vm1388, %v3058
        %3067 = vst.msk [vmem:[%s539 + $0x90] sm:$0xff] %vm1388, %v3059
        %3068 = vst.msk [vmem:[%s539 + $0x98] sm:$0xff] %vm1388, %v3060
        %3069 = vst.msk [vmem:[%s539 + $0xa0] sm:$0xff] %vm1388, %v3061
        %3070 = vst.msk [vmem:[%s539 + $0xa8] sm:$0xff] %vm1388, %v3062
        %3071 = vst.msk [vmem:[%s539 + $0xb0] sm:$0xff] %vm1388, %v3063
        %3072 = vst.msk [vmem:[%s539 + $0xb8] sm:$0xff] %vm1388, %v3064
        %v3073 = vld [vmem:[%s518] sm:$0xf]
        %v3074 = vld [vmem:[%s518 + $0x4] sm:$0x1]
        %v3075 = vld [vmem:[%s518 + $0x8] sm:$0xf]
        %v3076 = vld [vmem:[%s518 + $0xc] sm:$0x1]
        %v3077 = vld [vmem:[%s518 + $0x10] sm:$0xf]
        %v3078 = vld [vmem:[%s518 + $0x14] sm:$0x1]
        %v3079 = vld [vmem:[%s518 + $0x18] sm:$0xf]
        %v3080 = vld [vmem:[%s518 + $0x1c] sm:$0x1]
        %v3081 = vld [vmem:[%s518 + $0x20] sm:$0xf]
        %v3082 = vld [vmem:[%s518 + $0x24] sm:$0x1]
        %v3083 = vld [vmem:[%s518 + $0x28] sm:$0xf]
        %v3084 = vld [vmem:[%s518 + $0x2c] sm:$0x1]
        %v3085 = vld [vmem:[%s518 + $0x30] sm:$0xf]
        %v3086 = vld [vmem:[%s518 + $0x34] sm:$0x1]
        %v3087 = vld [vmem:[%s518 + $0x38] sm:$0xf]
        %v3088 = vld [vmem:[%s518 + $0x3c] sm:$0x1]
        %v3089 = vld [vmem:[%s518 + $0x40] sm:$0xf]
        %v3090 = vld [vmem:[%s518 + $0x44] sm:$0x1]
        %v3091 = vld [vmem:[%s531] sm:$0xf]
        %v3092 = vld [vmem:[%s531 + $0x4] sm:$0x1]
        %v3093 = vld [vmem:[%s531 + $0x8] sm:$0xf]
        %v3094 = vld [vmem:[%s531 + $0xc] sm:$0x1]
        %v3095 = vld [vmem:[%s531 + $0x10] sm:$0xf]
        %v3096 = vld [vmem:[%s531 + $0x14] sm:$0x1]
        %v3097 = vld [vmem:[%s531 + $0x18] sm:$0xf]
        %v3098 = vld [vmem:[%s531 + $0x1c] sm:$0x1]
        %v3099 = vld [vmem:[%s531 + $0x20] sm:$0xf]
        %v3100 = vld [vmem:[%s531 + $0x24] sm:$0x1]
        %v3101 = vld [vmem:[%s531 + $0x28] sm:$0xf]
        %v3102 = vld [vmem:[%s531 + $0x2c] sm:$0x1]
        %v3103 = vld [vmem:[%s531 + $0x30] sm:$0xf]
        %v3104 = vld [vmem:[%s531 + $0x34] sm:$0x1]
        %v3105 = vld [vmem:[%s531 + $0x38] sm:$0xf]
        %v3106 = vld [vmem:[%s531 + $0x3c] sm:$0x1]
        %v3107 = vld [vmem:[%s531 + $0x40] sm:$0xf]
        %v3108 = vld [vmem:[%s531 + $0x44] sm:$0x1]
        %v3109 = vld [vmem:[#allocation2] sm:$0xf]
        %v3110 = vld [vmem:[#allocation2 + $0x4] sm:$0xf]
        %v3112 = vshrl.u32 %v3073, 16
        %v3114 = vrot.slane %v3112, 4
        %v3115 = vshll.u32 %v3073, 16
        %v3117 = vrot.slane %v3115, 5
        %v3118 = vor.u32 %v3114, %v3117
        %v3119 = vrot.slane %v3118, 4
        %v3121 = vshll.u32 %v3074, 16
        %v3123 = vrot.slane %v3121, 5
        %v3124 = vsel %vm584, %v3119, %v3123
        %v3126 = vshrl.u32 %v3075, 16
        %v3128 = vrot.slane %v3126, 4
        %v3129 = vshll.u32 %v3075, 16
        %v3131 = vrot.slane %v3129, 5
        %v3132 = vor.u32 %v3128, %v3131
        %v3133 = vrot.slane %v3132, 4
        %v3135 = vshll.u32 %v3076, 16
        %v3137 = vrot.slane %v3135, 5
        %v3138 = vsel %vm584, %v3133, %v3137
        %v3140 = vshrl.u32 %v3077, 16
        %v3142 = vrot.slane %v3140, 4
        %v3143 = vshll.u32 %v3077, 16
        %v3145 = vrot.slane %v3143, 5
        %v3146 = vor.u32 %v3142, %v3145
        %v3147 = vrot.slane %v3146, 4
        %v3149 = vshll.u32 %v3078, 16
        %v3151 = vrot.slane %v3149, 5
        %v3152 = vsel %vm584, %v3147, %v3151
        %v3154 = vshrl.u32 %v3079, 16
        %v3156 = vrot.slane %v3154, 4
        %v3157 = vshll.u32 %v3079, 16
        %v3159 = vrot.slane %v3157, 5
        %v3160 = vor.u32 %v3156, %v3159
        %v3161 = vrot.slane %v3160, 4
        %v3163 = vshll.u32 %v3080, 16
        %v3165 = vrot.slane %v3163, 5
        %v3166 = vsel %vm584, %v3161, %v3165
        %v3168 = vshrl.u32 %v3081, 16
        %v3170 = vrot.slane %v3168, 4
        %v3171 = vshll.u32 %v3081, 16
        %v3173 = vrot.slane %v3171, 5
        %v3174 = vor.u32 %v3170, %v3173
        %v3175 = vrot.slane %v3174, 4
        %v3177 = vshll.u32 %v3082, 16
        %v3179 = vrot.slane %v3177, 5
        %v3180 = vsel %vm584, %v3175, %v3179
        %v3182 = vshrl.u32 %v3083, 16
        %v3184 = vrot.slane %v3182, 4
        %v3185 = vshll.u32 %v3083, 16
        %v3187 = vrot.slane %v3185, 5
        %v3188 = vor.u32 %v3184, %v3187
        %v3189 = vrot.slane %v3188, 4
        %v3191 = vshll.u32 %v3084, 16
        %v3193 = vrot.slane %v3191, 5
        %v3194 = vsel %vm584, %v3189, %v3193
        %v3196 = vshrl.u32 %v3085, 16
        %v3198 = vrot.slane %v3196, 4
        %v3199 = vshll.u32 %v3085, 16
        %v3201 = vrot.slane %v3199, 5
        %v3202 = vor.u32 %v3198, %v3201
        %v3203 = vrot.slane %v3202, 4
        %v3205 = vshll.u32 %v3086, 16
        %v3207 = vrot.slane %v3205, 5
        %v3208 = vsel %vm584, %v3203, %v3207
        %v3210 = vshrl.u32 %v3087, 16
        %v3212 = vrot.slane %v3210, 4
        %v3213 = vshll.u32 %v3087, 16
        %v3215 = vrot.slane %v3213, 5
        %v3216 = vor.u32 %v3212, %v3215
        %v3217 = vrot.slane %v3216, 4
        %v3219 = vshll.u32 %v3088, 16
        %v3221 = vrot.slane %v3219, 5
        %v3222 = vsel %vm584, %v3217, %v3221
        %v3223 = vld [vmem:[%s697] sm:$0xf]
        %v3224 = vld [vmem:[%s697 + $0x4] sm:$0xf]
        %v3225 = vunpack.c.l.b16 %v3124
        %v3226 = vunpack.c.l.b16 %v3138
        %v3227 = vunpack.c.l.b16 %v3152
        %v3228 = vunpack.c.l.b16 %v3166
        %v3229 = vunpack.c.l.b16 %v3180
        %v3230 = vunpack.c.l.b16 %v3194
        %v3231 = vunpack.c.l.b16 %v3208
        %v3232 = vunpack.c.l.b16 %v3222
        %v3233 = vpack.c.b16 %v3226, %v3225
        %v3234 = vpack.c.b16 %v3228, %v3227
        %v3235 = vpack.c.b16 %v3230, %v3229
        %v3236 = vpack.c.b16 %v3232, %v3231
        %v3239 = vunpack.c.l.b16 %v3223
        %v3240 = vunpack.c.l.b16 %v3224
        %v3241 = vpack.c.b16 %v3240, %v3239
        %v3244 = vsel %vm718, %v3233, 0
        %v3247 = vsel %vm718, %v3234, 0
        %v3250 = vsel %vm718, %v3235, 0
        %v3253 = vsel %vm718, %v3236, 0
        %3255 = vmatpush.bf16.msra.mxu0 0
        %3256 = vmatpush.bf16.msra.mxu0 0
        %3257 = vmatpush.bf16.msra.mxu0 0
        %3258 = vmatpush.bf16.msra.mxu0 0
        %3259 = vmatpush.bf16.msra.mxu0 0
        %3260 = vmatpush.bf16.msra.mxu0 0
        %3261 = vmatpush.bf16.msra.mxu0 0
        %3262 = vmatpush.bf16.msra.mxu0 %v3241
        %3263 = vmatmul.bf16.gmra.mxu0 %v3244
        %v3264 = vpop.f32.mrf.mxu0
        %v3265 = vadd.f32 0.0, %v3264
        %v3266 = vpop.f32.mrf.mxu0
        %v3267 = vadd.f32 0.0, %v3266
        %3268 = vmatmul.bf16.gmra.mxu0 %v3247
        %v3269 = vpop.f32.mrf.mxu0
        %v3270 = vadd.f32 0.0, %v3269
        %v3271 = vpop.f32.mrf.mxu0
        %v3272 = vadd.f32 0.0, %v3271
        %3273 = vmatmul.bf16.gmra.mxu0 %v3250
        %v3274 = vpop.f32.mrf.mxu0
        %v3275 = vadd.f32 0.0, %v3274
        %v3276 = vpop.f32.mrf.mxu0
        %v3277 = vadd.f32 0.0, %v3276
        %3278 = vmatmul.bf16.gmra.mxu0 %v3253
        %v3279 = vpop.f32.mrf.mxu0
        %v3280 = vadd.f32 0.0, %v3279
        %v3281 = vpop.f32.mrf.mxu0
        %v3282 = vadd.f32 0.0, %v3281
        %3283 = vdwg.mxu0
        %v3292 = vunpack.c.l.b16 %v3073
        %v3293 = vunpack.c.l.b16 %v3075
        %v3294 = vunpack.c.l.b16 %v3077
        %v3295 = vunpack.c.l.b16 %v3079
        %v3296 = vunpack.c.l.b16 %v3081
        %v3297 = vunpack.c.l.b16 %v3083
        %v3298 = vunpack.c.l.b16 %v3085
        %v3299 = vunpack.c.l.b16 %v3087
        %v3300 = vpack.c.b16 %v3293, %v3292
        %v3301 = vpack.c.b16 %v3295, %v3294
        %v3302 = vpack.c.b16 %v3297, %v3296
        %v3303 = vpack.c.b16 %v3299, %v3298
        %v3306 = vunpack.c.l.b16 %v3109
        %v3307 = vunpack.c.l.b16 %v3110
        %v3308 = vpack.c.b16 %v3307, %v3306
        %v3311 = vsel %vm718, %v3300, 0
        %v3314 = vsel %vm718, %v3301, 0
        %v3317 = vsel %vm718, %v3302, 0
        %v3320 = vsel %vm718, %v3303, 0
        %3322 = vmatpush.bf16.msra.mxu0 0
        %3323 = vmatpush.bf16.msra.mxu0 0
        %3324 = vmatpush.bf16.msra.mxu0 0
        %3325 = vmatpush.bf16.msra.mxu0 0
        %3326 = vmatpush.bf16.msra.mxu0 0
        %3327 = vmatpush.bf16.msra.mxu0 0
        %3328 = vmatpush.bf16.msra.mxu0 0
        %3329 = vmatpush.bf16.msra.mxu0 %v3308
        %3330 = vmatmul.bf16.gmra.mxu0 %v3311
        %v3331 = vpop.f32.mrf.mxu0
        %v3332 = vadd.f32 %v3265, %v3331
        %v3333 = vpop.f32.mrf.mxu0
        %v3334 = vadd.f32 %v3267, %v3333
        %3335 = vmatmul.bf16.gmra.mxu0 %v3314
        %v3336 = vpop.f32.mrf.mxu0
        %v3337 = vadd.f32 %v3270, %v3336
        %v3338 = vpop.f32.mrf.mxu0
        %v3339 = vadd.f32 %v3272, %v3338
        %3340 = vmatmul.bf16.gmra.mxu0 %v3317
        %v3341 = vpop.f32.mrf.mxu0
        %v3342 = vadd.f32 %v3275, %v3341
        %v3343 = vpop.f32.mrf.mxu0
        %v3344 = vadd.f32 %v3277, %v3343
        %3345 = vmatmul.bf16.gmra.mxu0 %v3320
        %v3346 = vpop.f32.mrf.mxu0
        %v3347 = vadd.f32 %v3280, %v3346
        %v3348 = vpop.f32.mrf.mxu0
        %v3349 = vadd.f32 %v3282, %v3348
        %3350 = vdwg.mxu0
        %v3351 = vld [vmem:[%s827] sm:$0xf]
        %v3352 = vld [vmem:[%s827 + $0x4] sm:$0xf]
        %v3354 = vunpack.c.l.b16 %v3089
        %v3355 = vpack.c.b16 %v3294, %v3293
        %v3356 = vpack.c.b16 %v3296, %v3295
        %v3357 = vpack.c.b16 %v3298, %v3297
        %v3358 = vpack.c.b16 %v3354, %v3299
        %v3361 = vunpack.c.l.b16 %v3351
        %v3362 = vunpack.c.l.b16 %v3352
        %v3363 = vpack.c.b16 %v3362, %v3361
        %v3366 = vsel %vm718, %v3355, 0
        %v3369 = vsel %vm718, %v3356, 0
        %v3372 = vsel %vm718, %v3357, 0
        %v3375 = vsel %vm718, %v3358, 0
        %3377 = vmatpush.bf16.msra.mxu0 0
        %3378 = vmatpush.bf16.msra.mxu0 0
        %3379 = vmatpush.bf16.msra.mxu0 0
        %3380 = vmatpush.bf16.msra.mxu0 0
        %3381 = vmatpush.bf16.msra.mxu0 0
        %3382 = vmatpush.bf16.msra.mxu0 0
        %3383 = vmatpush.bf16.msra.mxu0 0
        %3384 = vmatpush.bf16.msra.mxu0 %v3363
        %3385 = vmatmul.bf16.gmra.mxu0 %v3366
        %v3386 = vpop.f32.mrf.mxu0
        %v3387 = vadd.f32 0.0, %v3386
        %v3388 = vpop.f32.mrf.mxu0
        %v3389 = vadd.f32 0.0, %v3388
        %3390 = vmatmul.bf16.gmra.mxu0 %v3369
        %v3391 = vpop.f32.mrf.mxu0
        %v3392 = vadd.f32 0.0, %v3391
        %v3393 = vpop.f32.mrf.mxu0
        %v3394 = vadd.f32 0.0, %v3393
        %3395 = vmatmul.bf16.gmra.mxu0 %v3372
        %v3396 = vpop.f32.mrf.mxu0
        %v3397 = vadd.f32 0.0, %v3396
        %v3398 = vpop.f32.mrf.mxu0
        %v3399 = vadd.f32 0.0, %v3398
        %3400 = vmatmul.bf16.gmra.mxu0 %v3375
        %v3401 = vpop.f32.mrf.mxu0
        %v3402 = vadd.f32 0.0, %v3401
        %v3403 = vpop.f32.mrf.mxu0
        %v3404 = vadd.f32 0.0, %v3403
        %3405 = vdwg.mxu0
        %v3406 = vadd.f32 %v3332, %v3387
        %v3407 = vadd.f32 %v3334, %v3389
        %v3408 = vadd.f32 %v3337, %v3392
        %v3409 = vadd.f32 %v3339, %v3394
        %v3410 = vadd.f32 %v3342, %v3397
        %v3411 = vadd.f32 %v3344, %v3399
        %v3412 = vadd.f32 %v3347, %v3402
        %v3413 = vadd.f32 %v3349, %v3404
        %v3415 = vshrl.u32 %v3089, 16
        %v3417 = vrot.slane %v3415, 4
        %v3418 = vshll.u32 %v3089, 16
        %v3420 = vrot.slane %v3418, 5
        %v3421 = vor.u32 %v3417, %v3420
        %v3422 = vrot.slane %v3421, 4
        %v3424 = vshll.u32 %v3090, 16
        %v3426 = vrot.slane %v3424, 5
        %v3427 = vsel %vm584, %v3422, %v3426
        %v3428 = vld [vmem:[%s905] sm:$0xf]
        %v3429 = vld [vmem:[%s905 + $0x4] sm:$0xf]
        %v3430 = vunpack.c.l.b16 %v3427
        %v3431 = vpack.c.b16 %v3227, %v3226
        %v3432 = vpack.c.b16 %v3229, %v3228
        %v3433 = vpack.c.b16 %v3231, %v3230
        %v3434 = vpack.c.b16 %v3430, %v3232
        %v3437 = vunpack.c.l.b16 %v3428
        %v3438 = vunpack.c.l.b16 %v3429
        %v3439 = vpack.c.b16 %v3438, %v3437
        %v3442 = vsel %vm718, %v3431, 0
        %v3445 = vsel %vm718, %v3432, 0
        %v3448 = vsel %vm718, %v3433, 0
        %v3451 = vsel %vm718, %v3434, 0
        %3453 = vmatpush.bf16.msra.mxu0 0
        %3454 = vmatpush.bf16.msra.mxu0 0
        %3455 = vmatpush.bf16.msra.mxu0 0
        %3456 = vmatpush.bf16.msra.mxu0 0
        %3457 = vmatpush.bf16.msra.mxu0 0
        %3458 = vmatpush.bf16.msra.mxu0 0
        %3459 = vmatpush.bf16.msra.mxu0 0
        %3460 = vmatpush.bf16.msra.mxu0 %v3439
        %3461 = vmatmul.bf16.gmra.mxu0 %v3442
        %v3462 = vpop.f32.mrf.mxu0
        %v3463 = vadd.f32 0.0, %v3462
        %v3464 = vpop.f32.mrf.mxu0
        %v3465 = vadd.f32 0.0, %v3464
        %3466 = vmatmul.bf16.gmra.mxu0 %v3445
        %v3467 = vpop.f32.mrf.mxu0
        %v3468 = vadd.f32 0.0, %v3467
        %v3469 = vpop.f32.mrf.mxu0
        %v3470 = vadd.f32 0.0, %v3469
        %3471 = vmatmul.bf16.gmra.mxu0 %v3448
        %v3472 = vpop.f32.mrf.mxu0
        %v3473 = vadd.f32 0.0, %v3472
        %v3474 = vpop.f32.mrf.mxu0
        %v3475 = vadd.f32 0.0, %v3474
        %3476 = vmatmul.bf16.gmra.mxu0 %v3451
        %v3477 = vpop.f32.mrf.mxu0
        %v3478 = vadd.f32 0.0, %v3477
        %v3479 = vpop.f32.mrf.mxu0
        %v3480 = vadd.f32 0.0, %v3479
        %3481 = vdwg.mxu0
        %v3482 = vadd.f32 %v3406, %v3463
        %v3483 = vadd.f32 %v3407, %v3465
        %v3484 = vadd.f32 %v3408, %v3468
        %v3485 = vadd.f32 %v3409, %v3470
        %v3486 = vadd.f32 %v3410, %v3473
        %v3487 = vadd.f32 %v3411, %v3475
        %v3488 = vadd.f32 %v3412, %v3478
        %v3489 = vadd.f32 %v3413, %v3480
        %v3490 = vld [vmem:[%s968] sm:$0xf]
        %v3491 = vld [vmem:[%s968 + $0x4] sm:$0xf]
        %v3500 = vunpack.c.l.b16 %v3091
        %v3501 = vunpack.c.l.b16 %v3093
        %v3502 = vunpack.c.l.b16 %v3095
        %v3503 = vunpack.c.l.b16 %v3097
        %v3504 = vunpack.c.l.b16 %v3099
        %v3505 = vunpack.c.l.b16 %v3101
        %v3506 = vunpack.c.l.b16 %v3103
        %v3507 = vunpack.c.l.b16 %v3105
        %v3508 = vpack.c.b16 %v3501, %v3500
        %v3509 = vpack.c.b16 %v3503, %v3502
        %v3510 = vpack.c.b16 %v3505, %v3504
        %v3511 = vpack.c.b16 %v3507, %v3506
        %v3514 = vunpack.c.l.b16 %v3490
        %v3515 = vunpack.c.l.b16 %v3491
        %v3516 = vpack.c.b16 %v3515, %v3514
        %v3519 = vsel %vm718, %v3508, 0
        %v3522 = vsel %vm718, %v3509, 0
        %v3525 = vsel %vm718, %v3510, 0
        %v3528 = vsel %vm718, %v3511, 0
        %3530 = vmatpush.bf16.msra.mxu0 0
        %3531 = vmatpush.bf16.msra.mxu0 0
        %3532 = vmatpush.bf16.msra.mxu0 0
        %3533 = vmatpush.bf16.msra.mxu0 0
        %3534 = vmatpush.bf16.msra.mxu0 0
        %3535 = vmatpush.bf16.msra.mxu0 0
        %3536 = vmatpush.bf16.msra.mxu0 0
        %3537 = vmatpush.bf16.msra.mxu0 %v3516
        %3538 = vmatmul.bf16.gmra.mxu0 %v3519
        %v3539 = vpop.f32.mrf.mxu0
        %v3540 = vadd.f32 0.0, %v3539
        %v3541 = vpop.f32.mrf.mxu0
        %v3542 = vadd.f32 0.0, %v3541
        %3543 = vmatmul.bf16.gmra.mxu0 %v3522
        %v3544 = vpop.f32.mrf.mxu0
        %v3545 = vadd.f32 0.0, %v3544
        %v3546 = vpop.f32.mrf.mxu0
        %v3547 = vadd.f32 0.0, %v3546
        %3548 = vmatmul.bf16.gmra.mxu0 %v3525
        %v3549 = vpop.f32.mrf.mxu0
        %v3550 = vadd.f32 0.0, %v3549
        %v3551 = vpop.f32.mrf.mxu0
        %v3552 = vadd.f32 0.0, %v3551
        %3553 = vmatmul.bf16.gmra.mxu0 %v3528
        %v3554 = vpop.f32.mrf.mxu0
        %v3555 = vadd.f32 0.0, %v3554
        %v3556 = vpop.f32.mrf.mxu0
        %v3557 = vadd.f32 0.0, %v3556
        %3558 = vdwg.mxu0
        %v3559 = vadd.f32 %v3482, %v3540
        %v3560 = vadd.f32 %v3483, %v3542
        %v3561 = vadd.f32 %v3484, %v3545
        %v3562 = vadd.f32 %v3485, %v3547
        %v3563 = vadd.f32 %v3486, %v3550
        %v3564 = vadd.f32 %v3487, %v3552
        %v3565 = vadd.f32 %v3488, %v3555
        %v3566 = vadd.f32 %v3489, %v3557
        %v3568 = vshrl.u32 %v3091, 16
        %v3570 = vrot.slane %v3568, 4
        %v3571 = vshll.u32 %v3091, 16
        %v3573 = vrot.slane %v3571, 5
        %v3574 = vor.u32 %v3570, %v3573
        %v3575 = vrot.slane %v3574, 4
        %v3577 = vshll.u32 %v3092, 16
        %v3579 = vrot.slane %v3577, 5
        %v3580 = vsel %vm584, %v3575, %v3579
        %v3582 = vshrl.u32 %v3093, 16
        %v3584 = vrot.slane %v3582, 4
        %v3585 = vshll.u32 %v3093, 16
        %v3587 = vrot.slane %v3585, 5
        %v3588 = vor.u32 %v3584, %v3587
        %v3589 = vrot.slane %v3588, 4
        %v3591 = vshll.u32 %v3094, 16
        %v3593 = vrot.slane %v3591, 5
        %v3594 = vsel %vm584, %v3589, %v3593
        %v3596 = vshrl.u32 %v3095, 16
        %v3598 = vrot.slane %v3596, 4
        %v3599 = vshll.u32 %v3095, 16
        %v3601 = vrot.slane %v3599, 5
        %v3602 = vor.u32 %v3598, %v3601
        %v3603 = vrot.slane %v3602, 4
        %v3605 = vshll.u32 %v3096, 16
        %v3607 = vrot.slane %v3605, 5
        %v3608 = vsel %vm584, %v3603, %v3607
        %v3610 = vshrl.u32 %v3097, 16
        %v3612 = vrot.slane %v3610, 4
        %v3613 = vshll.u32 %v3097, 16
        %v3615 = vrot.slane %v3613, 5
        %v3616 = vor.u32 %v3612, %v3615
        %v3617 = vrot.slane %v3616, 4
        %v3619 = vshll.u32 %v3098, 16
        %v3621 = vrot.slane %v3619, 5
        %v3622 = vsel %vm584, %v3617, %v3621
        %v3624 = vshrl.u32 %v3099, 16
        %v3626 = vrot.slane %v3624, 4
        %v3627 = vshll.u32 %v3099, 16
        %v3629 = vrot.slane %v3627, 5
        %v3630 = vor.u32 %v3626, %v3629
        %v3631 = vrot.slane %v3630, 4
        %v3633 = vshll.u32 %v3100, 16
        %v3635 = vrot.slane %v3633, 5
        %v3636 = vsel %vm584, %v3631, %v3635
        %v3638 = vshrl.u32 %v3101, 16
        %v3640 = vrot.slane %v3638, 4
        %v3641 = vshll.u32 %v3101, 16
        %v3643 = vrot.slane %v3641, 5
        %v3644 = vor.u32 %v3640, %v3643
        %v3645 = vrot.slane %v3644, 4
        %v3647 = vshll.u32 %v3102, 16
        %v3649 = vrot.slane %v3647, 5
        %v3650 = vsel %vm584, %v3645, %v3649
        %v3652 = vshrl.u32 %v3103, 16
        %v3654 = vrot.slane %v3652, 4
        %v3655 = vshll.u32 %v3103, 16
        %v3657 = vrot.slane %v3655, 5
        %v3658 = vor.u32 %v3654, %v3657
        %v3659 = vrot.slane %v3658, 4
        %v3661 = vshll.u32 %v3104, 16
        %v3663 = vrot.slane %v3661, 5
        %v3664 = vsel %vm584, %v3659, %v3663
        %v3666 = vshrl.u32 %v3105, 16
        %v3668 = vrot.slane %v3666, 4
        %v3669 = vshll.u32 %v3105, 16
        %v3671 = vrot.slane %v3669, 5
        %v3672 = vor.u32 %v3668, %v3671
        %v3673 = vrot.slane %v3672, 4
        %v3675 = vshll.u32 %v3106, 16
        %v3677 = vrot.slane %v3675, 5
        %v3678 = vsel %vm584, %v3673, %v3677
        %v3679 = vld [vmem:[%s1158] sm:$0xf]
        %v3680 = vld [vmem:[%s1158 + $0x4] sm:$0xf]
        %v3681 = vunpack.c.l.b16 %v3580
        %v3682 = vunpack.c.l.b16 %v3594
        %v3683 = vunpack.c.l.b16 %v3608
        %v3684 = vunpack.c.l.b16 %v3622
        %v3685 = vunpack.c.l.b16 %v3636
        %v3686 = vunpack.c.l.b16 %v3650
        %v3687 = vunpack.c.l.b16 %v3664
        %v3688 = vunpack.c.l.b16 %v3678
        %v3689 = vpack.c.b16 %v3682, %v3681
        %v3690 = vpack.c.b16 %v3684, %v3683
        %v3691 = vpack.c.b16 %v3686, %v3685
        %v3692 = vpack.c.b16 %v3688, %v3687
        %v3695 = vunpack.c.l.b16 %v3679
        %v3696 = vunpack.c.l.b16 %v3680
        %v3697 = vpack.c.b16 %v3696, %v3695
        %v3700 = vsel %vm718, %v3689, 0
        %v3703 = vsel %vm718, %v3690, 0
        %v3706 = vsel %vm718, %v3691, 0
        %v3709 = vsel %vm718, %v3692, 0
        %3711 = vmatpush.bf16.msra.mxu0 0
        %3712 = vmatpush.bf16.msra.mxu0 0
        %3713 = vmatpush.bf16.msra.mxu0 0
        %3714 = vmatpush.bf16.msra.mxu0 0
        %3715 = vmatpush.bf16.msra.mxu0 0
        %3716 = vmatpush.bf16.msra.mxu0 0
        %3717 = vmatpush.bf16.msra.mxu0 0
        %3718 = vmatpush.bf16.msra.mxu0 %v3697
        %3719 = vmatmul.bf16.gmra.mxu0 %v3700
        %v3720 = vpop.f32.mrf.mxu0
        %v3721 = vadd.f32 0.0, %v3720
        %v3722 = vpop.f32.mrf.mxu0
        %v3723 = vadd.f32 0.0, %v3722
        %3724 = vmatmul.bf16.gmra.mxu0 %v3703
        %v3725 = vpop.f32.mrf.mxu0
        %v3726 = vadd.f32 0.0, %v3725
        %v3727 = vpop.f32.mrf.mxu0
        %v3728 = vadd.f32 0.0, %v3727
        %3729 = vmatmul.bf16.gmra.mxu0 %v3706
        %v3730 = vpop.f32.mrf.mxu0
        %v3731 = vadd.f32 0.0, %v3730
        %v3732 = vpop.f32.mrf.mxu0
        %v3733 = vadd.f32 0.0, %v3732
        %3734 = vmatmul.bf16.gmra.mxu0 %v3709
        %v3735 = vpop.f32.mrf.mxu0
        %v3736 = vadd.f32 0.0, %v3735
        %v3737 = vpop.f32.mrf.mxu0
        %v3738 = vadd.f32 0.0, %v3737
        %3739 = vdwg.mxu0
        %v3740 = vadd.f32 %v3559, %v3721
        %v3741 = vadd.f32 %v3560, %v3723
        %v3742 = vadd.f32 %v3561, %v3726
        %v3743 = vadd.f32 %v3562, %v3728
        %v3744 = vadd.f32 %v3563, %v3731
        %v3745 = vadd.f32 %v3564, %v3733
        %v3746 = vadd.f32 %v3565, %v3736
        %v3747 = vadd.f32 %v3566, %v3738
        %v3748 = vld [vmem:[%s1228] sm:$0xf]
        %v3749 = vld [vmem:[%s1228 + $0x4] sm:$0xf]
        %v3751 = vunpack.c.l.b16 %v3107
        %v3752 = vpack.c.b16 %v3502, %v3501
        %v3753 = vpack.c.b16 %v3504, %v3503
        %v3754 = vpack.c.b16 %v3506, %v3505
        %v3755 = vpack.c.b16 %v3751, %v3507
        %v3758 = vunpack.c.l.b16 %v3748
        %v3759 = vunpack.c.l.b16 %v3749
        %v3760 = vpack.c.b16 %v3759, %v3758
        %v3763 = vsel %vm718, %v3752, 0
        %v3766 = vsel %vm718, %v3753, 0
        %v3769 = vsel %vm718, %v3754, 0
        %v3772 = vsel %vm718, %v3755, 0
        %3774 = vmatpush.bf16.msra.mxu0 0
        %3775 = vmatpush.bf16.msra.mxu0 0
        %3776 = vmatpush.bf16.msra.mxu0 0
        %3777 = vmatpush.bf16.msra.mxu0 0
        %3778 = vmatpush.bf16.msra.mxu0 0
        %3779 = vmatpush.bf16.msra.mxu0 0
        %3780 = vmatpush.bf16.msra.mxu0 0
        %3781 = vmatpush.bf16.msra.mxu0 %v3760
        %3782 = vmatmul.bf16.gmra.mxu0 %v3763
        %v3783 = vpop.f32.mrf.mxu0
        %v3784 = vadd.f32 0.0, %v3783
        %v3785 = vpop.f32.mrf.mxu0
        %v3786 = vadd.f32 0.0, %v3785
        %3787 = vmatmul.bf16.gmra.mxu0 %v3766
        %v3788 = vpop.f32.mrf.mxu0
        %v3789 = vadd.f32 0.0, %v3788
        %v3790 = vpop.f32.mrf.mxu0
        %v3791 = vadd.f32 0.0, %v3790
        %3792 = vmatmul.bf16.gmra.mxu0 %v3769
        %v3793 = vpop.f32.mrf.mxu0
        %v3794 = vadd.f32 0.0, %v3793
        %v3795 = vpop.f32.mrf.mxu0
        %v3796 = vadd.f32 0.0, %v3795
        %3797 = vmatmul.bf16.gmra.mxu0 %v3772
        %v3798 = vpop.f32.mrf.mxu0
        %v3799 = vadd.f32 0.0, %v3798
        %v3800 = vpop.f32.mrf.mxu0
        %v3801 = vadd.f32 0.0, %v3800
        %3802 = vdwg.mxu0
        %v3803 = vadd.f32 %v3740, %v3784
        %v3804 = vadd.f32 %v3741, %v3786
        %v3805 = vadd.f32 %v3742, %v3789
        %v3806 = vadd.f32 %v3743, %v3791
        %v3807 = vadd.f32 %v3744, %v3794
        %v3808 = vadd.f32 %v3745, %v3796
        %v3809 = vadd.f32 %v3746, %v3799
        %v3810 = vadd.f32 %v3747, %v3801
        %v3812 = vshrl.u32 %v3107, 16
        %v3814 = vrot.slane %v3812, 4
        %v3815 = vshll.u32 %v3107, 16
        %v3817 = vrot.slane %v3815, 5
        %v3818 = vor.u32 %v3814, %v3817
        %v3819 = vrot.slane %v3818, 4
        %v3821 = vshll.u32 %v3108, 16
        %v3823 = vrot.slane %v3821, 5
        %v3824 = vsel %vm584, %v3819, %v3823
        %v3825 = vld [vmem:[%s1306] sm:$0xf]
        %v3826 = vld [vmem:[%s1306 + $0x4] sm:$0xf]
        %v3827 = vunpack.c.l.b16 %v3824
        %v3828 = vpack.c.b16 %v3683, %v3682
        %v3829 = vpack.c.b16 %v3685, %v3684
        %v3830 = vpack.c.b16 %v3687, %v3686
        %v3831 = vpack.c.b16 %v3827, %v3688
        %v3834 = vunpack.c.l.b16 %v3825
        %v3835 = vunpack.c.l.b16 %v3826
        %v3836 = vpack.c.b16 %v3835, %v3834
        %v3839 = vsel %vm718, %v3828, 0
        %v3842 = vsel %vm718, %v3829, 0
        %v3845 = vsel %vm718, %v3830, 0
        %v3848 = vsel %vm718, %v3831, 0
        %3850 = vmatpush.bf16.msra.mxu0 0
        %3851 = vmatpush.bf16.msra.mxu0 0
        %3852 = vmatpush.bf16.msra.mxu0 0
        %3853 = vmatpush.bf16.msra.mxu0 0
        %3854 = vmatpush.bf16.msra.mxu0 0
        %3855 = vmatpush.bf16.msra.mxu0 0
        %3856 = vmatpush.bf16.msra.mxu0 0
        %3857 = vmatpush.bf16.msra.mxu0 %v3836
        %3858 = vmatmul.bf16.gmra.mxu0 %v3839
        %v3859 = vpop.f32.mrf.mxu0
        %v3860 = vadd.f32 0.0, %v3859
        %v3861 = vpop.f32.mrf.mxu0
        %v3862 = vadd.f32 0.0, %v3861
        %3863 = vmatmul.bf16.gmra.mxu0 %v3842
        %v3864 = vpop.f32.mrf.mxu0
        %v3865 = vadd.f32 0.0, %v3864
        %v3866 = vpop.f32.mrf.mxu0
        %v3867 = vadd.f32 0.0, %v3866
        %3868 = vmatmul.bf16.gmra.mxu0 %v3845
        %v3869 = vpop.f32.mrf.mxu0
        %v3870 = vadd.f32 0.0, %v3869
        %v3871 = vpop.f32.mrf.mxu0
        %v3872 = vadd.f32 0.0, %v3871
        %3873 = vmatmul.bf16.gmra.mxu0 %v3848
        %v3874 = vpop.f32.mrf.mxu0
        %v3875 = vadd.f32 0.0, %v3874
        %v3876 = vpop.f32.mrf.mxu0
        %v3877 = vadd.f32 0.0, %v3876
        %3878 = vdwg.mxu0
        %v3879 = vadd.f32 %v3803, %v3860
        %v3880 = vadd.f32 %v3804, %v3862
        %v3881 = vadd.f32 %v3805, %v3865
        %v3882 = vadd.f32 %v3806, %v3867
        %v3883 = vadd.f32 %v3807, %v3870
        %v3884 = vadd.f32 %v3808, %v3872
        %v3885 = vadd.f32 %v3809, %v3875
        %v3886 = vadd.f32 %v3810, %v3877
        %v3887 = vadd.f32 %v3879, %v1370
        %v3888 = vadd.f32 %v3880, %v1370
        %v3889 = vadd.f32 %v3881, %v1370
        %v3890 = vadd.f32 %v3882, %v1370
        %v3891 = vadd.f32 %v3883, %v1370
        %v3892 = vadd.f32 %v3884, %v1370
        %v3893 = vadd.f32 %v3885, %v1370
        %v3894 = vadd.f32 %v3886, %v1370
        %v3895 = vmax.f32 %v3887, 0.0
        %v3896 = vmax.f32 %v3888, 0.0
        %v3897 = vmax.f32 %v3889, 0.0
        %v3898 = vmax.f32 %v3890, 0.0
        %v3899 = vmax.f32 %v3891, 0.0
        %v3900 = vmax.f32 %v3892, 0.0
        %v3901 = vmax.f32 %v3893, 0.0
        %v3902 = vmax.f32 %v3894, 0.0
        %3903 = vst.msk [vmem:[%s539 + $0xc0] sm:$0xff] %vm1388, %v3895
        %3904 = vst.msk [vmem:[%s539 + $0xc8] sm:$0xff] %vm1388, %v3896
        %3905 = vst.msk [vmem:[%s539 + $0xd0] sm:$0xff] %vm1388, %v3897
        %3906 = vst.msk [vmem:[%s539 + $0xd8] sm:$0xff] %vm1388, %v3898
        %3907 = vst.msk [vmem:[%s539 + $0xe0] sm:$0xff] %vm1388, %v3899
        %3908 = vst.msk [vmem:[%s539 + $0xe8] sm:$0xff] %vm1388, %v3900
        %3909 = vst.msk [vmem:[%s539 + $0xf0] sm:$0xff] %vm1388, %v3901
        %3910 = vst.msk [vmem:[%s539 + $0xf8] sm:$0xff] %vm1388, %v3902
        %s3911 = sadd.s32 %s24, %s25
        %s3912 = smul.u32 32, %s3911
        %p3913 = scmp.lt.s32.totalorder %s3912, 63
        %s3914 = scalar_select %p3913, %s3912, 63
        %s3915 = smul.addr %s3914, 8
        %s3916 = scalar_lea.vmem %s7, %s3915
        // Predicated region
        $region57: #{a_call__.1} parent=47 // pred_check
          %p3917 = pneg %p252
        $region58: #{a_call__.1} parent=47 // pred_check_branch
          %3919 = sbr.rel (%p3917) target = $region60
        $region59: #{a_call__.1} parent=47 // pred_region
          %s3920 = sadd.s32 %s24, %s25
          %s3921 = smul.u32 32, %s3920
        $region60: #{a_call__.1} parent=47 // pred_fallthru
          _
      $region48: #{a_call__.1} parent=5 // pred_fallthru
        _
      %p3922 = scmp.le.s32.totalorder 2, %s15
      // Predicated region
      $region61: #{a_call__.1} parent=5 // pred_check
        %p3923 = pneg %p3922
      $region62: #{a_call__.1} parent=5 // pred_check_branch
        %3925 = sbr.rel (%p3923) target = $region64
      $region63: #{a_call__.1} parent=5 // pred_region
        %s3926 = ssub.s32 %s15, 2
        // Predicated region
        $region65: #{a_call__.1} parent=63 // pred_check
          %p3927 = pneg %p258
        $region66: #{a_call__.1} parent=63 // pred_check_branch
          %3929 = sbr.rel (%p3927) target = $region68
        $region67: #{a_call__.1} parent=63 // pred_region
          %s3930 = sadd.s32 %s26, %s27
          %s3931 = smul.u32 32, %s3930
          %p3932 = scmp.lt.s32.totalorder %s3931, 63
          %s3933 = scalar_select %p3932, %s3931, 63
          %s3934 = smul.addr %s3933, 8
          %s3935 = scalar_lea.vmem %s7, %s3934
        $region68: #{a_call__.1} parent=63 // pred_fallthru
          _
      $region64: #{a_call__.1} parent=5 // pred_fallthru
        _
    $region6: #{a_call__.1} parent=1 // loop_footer
      %s19 = sadd.s32 1, %s15
    $region7: #{a_call__.1} parent=1 // loop_footer_branch
      %14 = sbr.rel target = $region3
    $region8: #{a_call__.1} parent=1 // loop_exit
      _
    %3936 = vsyncpa [#allocation3], 1
    %s3937 = scalar_lea.sflag [#allocation3], 1
    %3938 = vsyncpa %s3937, 1
    %3939 = vsyncpa [#allocation5], 1

</llo_original>
